<compile_context>
chip_gen: v7x
topology: tpu7x:2x2x1
jax: 0.10.0
libtpu: 0.0.40
codegen_flags: <defaults>
</compile_context>

<pallas_src>
import functools

import jax
import jax.numpy as jnp
from jax.experimental import pallas as pl
from jax.experimental.pallas import tpu as pltpu


# ----------------------------- fused Pallas kernel -----------------------------

def _fused_deconvo_kernel(x_ref,                      # SMEM (B*C0in,)
                          w1_ref, b1_ref,             # (C0in, L0, C0), (L0, C0)
                          wc1_ref, bc1_ref,           # (K, C0,  Co1), (1, Co1)
                          wc2_ref, bc2_ref,           # (K, Co1, Co2), (1, Co2)
                          wc3_ref, bc3_ref,           # (K, Co2, 128), (1, 128)
                          w2_ref, b2_ref,             # (128, size), (1, size)
                          o_ref,                      # (B, Lf, size)
                          acc1_ref, acc2_ref, acc3_ref,  # VMEM scratch accumulators
                          *, B, C0in, K):

    # ConvTranspose1d(stride=1, pad=0) + ReLU via K per-tap matmuls scattered
    # into a bias-initialised accumulator:  acc[l+j, :] += h[l, :] @ w[:, :, j].
    def tconv_relu(h, w_ref, b_ref, acc_ref):
        Lin, _ = h.shape
        Lout, Cout = acc_ref.shape
        acc_ref[...] = jnp.broadcast_to(b_ref[...], (Lout, Cout))
        for j in range(K):                              # static taps, K matmuls
            tap = jnp.dot(h, w_ref[j], preferred_element_type=jnp.float32)
            acc_ref[j:j + Lin, :] = acc_ref[j:j + Lin, :] + tap
        return jnp.maximum(acc_ref[...], 0.0)           # (Lout, Cout)

    for b in range(B):                                  # folded batch (single grid step)
        # ---- layer1: Linear(C0in -> C0*L0) + ReLU, emitted channels-last.
        # h[l, c] = relu( sum_k x[b, k] * w1[k, l, c] + b1[l, c] )
        acc = b1_ref[...]                               # (L0, C0)
        for k in range(C0in):                           # small static unroll
            acc = acc + x_ref[b * C0in + k] * w1_ref[k]
        h = jnp.maximum(acc, 0.0)                       # (L0, C0)

        # ---- three transposed convs + ReLU.
        h = tconv_relu(h, wc1_ref, bc1_ref, acc1_ref)   # (L0 +   K-1 , 2*nf)
        h = tconv_relu(h, wc2_ref, bc2_ref, acc2_ref)   # (L0 + 2(K-1), nf)
        h = tconv_relu(h, wc3_ref, bc3_ref, acc3_ref)   # (80, 128) lane-dense

        # ---- final Linear(128 -> size), already in the required layout.
        y = jnp.dot(h, w2_ref[...], preferred_element_type=jnp.float32) + b2_ref[...]
        o_ref[b, :, :] = y.astype(o_ref.dtype)


def deconvo_forward(pp, x, *, num_filters, kernel):
    """Fused Pallas forward. x: (B, num_filters*3) -> (B, 80, size)."""
    B, C0in = x.shape
    K = kernel
    nf = num_filters
    L0 = 80 - 3 * (K - 1)
    Lf = 80
    size = pp['w2'].shape[1]

    def full(a):
        n = a.ndim
        return pl.BlockSpec(a.shape, lambda i, _n=n: (0,) * _n)

    kern = functools.partial(_fused_deconvo_kernel, B=B, C0in=C0in, K=K)
    x_flat = x.reshape(-1)                              # 1D -> no 2D SMEM padding

    return pl.pallas_call(
        kern,
        out_shape=jax.ShapeDtypeStruct((B, Lf, size), jnp.float32),
        grid=(1,),                                      # batch folded into one step
        in_specs=[
            pl.BlockSpec(memory_space=pltpu.MemorySpace.SMEM),   # x (scalars)
            full(pp['w1']), full(pp['b1']),
            full(pp['wc1']), full(pp['bc1']),
            full(pp['wc2']), full(pp['bc2']),
            full(pp['wc3']), full(pp['bc3']),
            full(pp['w2']), full(pp['b2']),
        ],
        out_specs=pl.BlockSpec((B, Lf, size), lambda i: (0, 0, 0)),
        scratch_shapes=[
            pltpu.VMEM((L0 + (K - 1), 2 * nf), jnp.float32),     # tconv1 acc
            pltpu.VMEM((L0 + 2 * (K - 1), nf), jnp.float32),     # tconv2 acc
            pltpu.VMEM((Lf, 128), jnp.float32),                  # tconv3 acc
        ],
        compiler_params=pltpu.CompilerParams(
            dimension_semantics=("arbitrary",)),
    )(x_flat, pp['w1'], pp['b1'], pp['wc1'], pp['bc1'], pp['wc2'], pp['bc2'],
      pp['wc3'], pp['bc3'], pp['w2'], pp['b2'])


# ----------------------------- params & one-time prep -----------------------------

def init_params(key, num_filters, size, kernel):
    """PyTorch-layout parameters (Linear: (fan_in, fan_out); ConvT1d: (Cin, Cout, K))."""
    C0 = num_filters * 3
    L0 = 80 - 3 * (kernel - 1)
    ks = jax.random.split(key, 10)
    s = 0.05

    def lin(kw, kb, fan_in, fan_out):
        return (jax.random.normal(kw, (fan_in, fan_out), jnp.float32) * s,
                jax.random.normal(kb, (fan_out,), jnp.float32) * s)

    def tconv(kw, kb, cin, cout, K):
        return (jax.random.normal(kw, (cin, cout, K), jnp.float32) * s,
                jax.random.normal(kb, (cout,), jnp.float32) * s)

    w1, b1 = lin(ks[0], ks[1], C0, C0 * L0)
    wt1, bt1 = tconv(ks[2], ks[3], C0, num_filters * 2, kernel)
    wt2, bt2 = tconv(ks[4], ks[5], num_filters * 2, num_filters, kernel)
    wt3, bt3 = tconv(ks[6], ks[7], num_filters, 128, kernel)
    w2, b2 = lin(ks[8], ks[9], 128, size)
    return dict(w1=w1, b1=b1, wt1=wt1, bt1=bt1, wt2=wt2, bt2=bt2,
                wt3=wt3, bt3=bt3, w2=w2, b2=b2)


def prepare_params(params, num_filters, kernel):
    """One-time re-layout of weights into the fused kernel's format."""
    C0 = num_filters * 3
    L0 = 80 - 3 * (kernel - 1)

    def tconv_taps(w):
        # (Cin, Cout, K) -> (K, Cin, Cout); tap j used as  acc[l+j] += h[l] @ w[:, :, j]
        return jnp.transpose(w, (2, 0, 1))

    # Permute layer1 columns so the linear directly produces channels-last (L0, C0).
    w1cl = params['w1'].reshape(-1, C0, L0).transpose(0, 2, 1)  # (C0in, L0, C0)
    b1cl = params['b1'].reshape(C0, L0).T                       # (L0, C0)

    return dict(
        w1=w1cl, b1=b1cl,
        wc1=tconv_taps(params['wt1']), bc1=params['bt1'].reshape(1, -1),
        wc2=tconv_taps(params['wt2']), bc2=params['bt2'].reshape(1, -1),
        wc3=tconv_taps(params['wt3']), bc3=params['bt3'].reshape(1, -1),
        w2=params['w2'], b2=params['b2'].reshape(1, -1),
    )


# ----------------------------- pure-JAX reference -----------------------------

def reference_forward(params, x, num_filters, kernel):
    """Pure-JAX reference in PyTorch's NCL layout (scatter-add formulation)."""
    B = x.shape[0]
    C0 = num_filters * 3
    L0 = 80 - 3 * (kernel - 1)
    h = jnp.maximum(x @ params['w1'] + params['b1'], 0.0)
    h = h.reshape(B, C0, L0)  # NCL

    def tconv(h, w, b):
        _, _, Lin = h.shape
        Cout, K = w.shape[1], w.shape[2]
        out = jnp.zeros((h.shape[0], Cout, Lin + K - 1), jnp.float32)
        for k in range(K):
            out = out.at[:, :, k:k + Lin].add(
                jnp.einsum('bcl,cd->bdl', h, w[:, :, k]))
        return jnp.maximum(out + b[None, :, None], 0.0)

    h = tconv(h, params['wt1'], params['bt1'])
    h = tconv(h, params['wt2'], params['bt2'])
    h = tconv(h, params['wt3'], params['bt3'])      # (B, 128, 80)
    h = jnp.transpose(h, (0, 2, 1))                 # (B, 80, 128)
    return h @ params['w2'] + params['b2']


# ----------------------------- main -----------------------------

if __name__ == "__main__":
    num_filters, kernel, size, batch = 4, 3, 16, 2

    key = jax.random.PRNGKey(0)
    kp, kx = jax.random.split(key)
    params = init_params(kp, num_filters, size, kernel)
    x = jax.random.normal(kx, (batch, num_filters * 3), jnp.float32)

    # One-time weight re-layout (init-time cost, nothing per forward call).
    pp = prepare_params(params, num_filters, kernel)

    fwd = jax.jit(functools.partial(deconvo_forward,
                                    num_filters=num_filters, kernel=kernel))
    out = jax.block_until_ready(fwd(pp, x))

    ref = reference_forward(params, x, num_filters, kernel)
    assert out.shape == (batch, 80, size), out.shape
    assert jnp.allclose(out, ref, atol=1e-4, rtol=1e-4), \
        float(jnp.abs(out - ref).max())

    print("KERNEL_OK")
</pallas_src>

<mosaic_0001>
module attributes {stable_mosaic.version = 11 : i64} {
  func.func @_fused_deconvo_kernel(%arg0: i32, %arg1: memref<24xf32, #tpu.memory_space<smem>>, %arg2: memref<12x74x12xf32, #tpu.memory_space<vmem>>, %arg3: memref<74x12xf32, #tpu.memory_space<vmem>>, %arg4: memref<3x12x8xf32, #tpu.memory_space<vmem>>, %arg5: memref<1x8xf32, #tpu.memory_space<vmem>>, %arg6: memref<3x8x4xf32, #tpu.memory_space<vmem>>, %arg7: memref<1x4xf32, #tpu.memory_space<vmem>>, %arg8: memref<3x4x128xf32, #tpu.memory_space<vmem>>, %arg9: memref<1x128xf32, #tpu.memory_space<vmem>>, %arg10: memref<128x16xf32, #tpu.memory_space<vmem>>, %arg11: memref<1x16xf32, #tpu.memory_space<vmem>>, %arg12: memref<2x80x16xf32, #tpu.memory_space<vmem>>, %arg13: memref<76x8xf32, #tpu.memory_space<vmem>>, %arg14: memref<78x4xf32, #tpu.memory_space<vmem>>, %arg15: memref<80x128xf32, #tpu.memory_space<vmem>>) attributes {dimension_semantics = [#tpu.dimension_semantics<arbitrary>], iteration_bounds = array<i64: 1>, scalar_prefetch = 0 : i64, scratch_operands = 3 : i64, tpu.core_type = #tpu.core_type<tc>, window_params = [{transform_indices = @transform_0, window_bounds = array<i64: 24>}, {pipeline_mode = #tpu.pipeline_mode<synchronous>, transform_indices = @transform_1, window_bounds = array<i64: 12, 74, 12>}, {pipeline_mode = #tpu.pipeline_mode<synchronous>, transform_indices = @transform_2, window_bounds = array<i64: 74, 12>}, {pipeline_mode = #tpu.pipeline_mode<synchronous>, transform_indices = @transform_3, window_bounds = array<i64: 3, 12, 8>}, {pipeline_mode = #tpu.pipeline_mode<synchronous>, transform_indices = @transform_4, window_bounds = array<i64: 1, 8>}, {pipeline_mode = #tpu.pipeline_mode<synchronous>, transform_indices = @transform_5, window_bounds = array<i64: 3, 8, 4>}, {pipeline_mode = #tpu.pipeline_mode<synchronous>, transform_indices = @transform_6, window_bounds = array<i64: 1, 4>}, {pipeline_mode = #tpu.pipeline_mode<synchronous>, transform_indices = @transform_7, window_bounds = array<i64: 3, 4, 128>}, {pipeline_mode = #tpu.pipeline_mode<synchronous>, transform_indices = @transform_8, window_bounds = array<i64: 1, 128>}, {pipeline_mode = #tpu.pipeline_mode<synchronous>, transform_indices = @transform_9, window_bounds = array<i64: 128, 16>}, {pipeline_mode = #tpu.pipeline_mode<synchronous>, transform_indices = @transform_10, window_bounds = array<i64: 1, 16>}, {pipeline_mode = #tpu.pipeline_mode<synchronous>, transform_indices = @transform_11, window_bounds = array<i64: 2, 80, 16>}]} {
    %c0 = arith.constant 0 : index
    %c0_0 = arith.constant 0 : index
    %0 = vector.load %arg3[%c0, %c0_0] : memref<74x12xf32, #tpu.memory_space<vmem>>, vector<74x12xf32>
    %c0_1 = arith.constant 0 : index
    %1 = memref.load %arg1[%c0_1] : memref<24xf32, #tpu.memory_space<smem>>
    %c0_2 = arith.constant 0 : index
    %c0_3 = arith.constant 0 : index
    %c0_4 = arith.constant 0 : index
    %2 = vector.load %arg2[%c0_2, %c0_3, %c0_4] : memref<12x74x12xf32, #tpu.memory_space<vmem>>, vector<1x74x12xf32>
    %3 = vector.shape_cast %2 : vector<1x74x12xf32> to vector<74x12xf32>
    %4 = vector.broadcast %1 : f32 to vector<74x12xf32>
    %5 = arith.mulf %4, %3 : vector<74x12xf32>
    %6 = arith.addf %0, %5 : vector<74x12xf32>
    %c1 = arith.constant 1 : index
    %7 = memref.load %arg1[%c1] : memref<24xf32, #tpu.memory_space<smem>>
    %c1_5 = arith.constant 1 : index
    %c0_6 = arith.constant 0 : index
    %c0_7 = arith.constant 0 : index
    %8 = vector.load %arg2[%c1_5, %c0_6, %c0_7] : memref<12x74x12xf32, #tpu.memory_space<vmem>>, vector<1x74x12xf32>
    %9 = vector.shape_cast %8 : vector<1x74x12xf32> to vector<74x12xf32>
    %10 = vector.broadcast %7 : f32 to vector<74x12xf32>
    %11 = arith.mulf %10, %9 : vector<74x12xf32>
    %12 = arith.addf %6, %11 : vector<74x12xf32>
    %c2 = arith.constant 2 : index
    %13 = memref.load %arg1[%c2] : memref<24xf32, #tpu.memory_space<smem>>
    %c2_8 = arith.constant 2 : index
    %c0_9 = arith.constant 0 : index
    %c0_10 = arith.constant 0 : index
    %14 = vector.load %arg2[%c2_8, %c0_9, %c0_10] : memref<12x74x12xf32, #tpu.memory_space<vmem>>, vector<1x74x12xf32>
    %15 = vector.shape_cast %14 : vector<1x74x12xf32> to vector<74x12xf32>
    %16 = vector.broadcast %13 : f32 to vector<74x12xf32>
    %17 = arith.mulf %16, %15 : vector<74x12xf32>
    %18 = arith.addf %12, %17 : vector<74x12xf32>
    %c3 = arith.constant 3 : index
    %19 = memref.load %arg1[%c3] : memref<24xf32, #tpu.memory_space<smem>>
    %c3_11 = arith.constant 3 : index
    %c0_12 = arith.constant 0 : index
    %c0_13 = arith.constant 0 : index
    %20 = vector.load %arg2[%c3_11, %c0_12, %c0_13] : memref<12x74x12xf32, #tpu.memory_space<vmem>>, vector<1x74x12xf32>
    %21 = vector.shape_cast %20 : vector<1x74x12xf32> to vector<74x12xf32>
    %22 = vector.broadcast %19 : f32 to vector<74x12xf32>
    %23 = arith.mulf %22, %21 : vector<74x12xf32>
    %24 = arith.addf %18, %23 : vector<74x12xf32>
    %c4 = arith.constant 4 : index
    %25 = memref.load %arg1[%c4] : memref<24xf32, #tpu.memory_space<smem>>
    %c4_14 = arith.constant 4 : index
    %c0_15 = arith.constant 0 : index
    %c0_16 = arith.constant 0 : index
    %26 = vector.load %arg2[%c4_14, %c0_15, %c0_16] : memref<12x74x12xf32, #tpu.memory_space<vmem>>, vector<1x74x12xf32>
    %27 = vector.shape_cast %26 : vector<1x74x12xf32> to vector<74x12xf32>
    %28 = vector.broadcast %25 : f32 to vector<74x12xf32>
    %29 = arith.mulf %28, %27 : vector<74x12xf32>
    %30 = arith.addf %24, %29 : vector<74x12xf32>
    %c5 = arith.constant 5 : index
    %31 = memref.load %arg1[%c5] : memref<24xf32, #tpu.memory_space<smem>>
    %c5_17 = arith.constant 5 : index
    %c0_18 = arith.constant 0 : index
    %c0_19 = arith.constant 0 : index
    %32 = vector.load %arg2[%c5_17, %c0_18, %c0_19] : memref<12x74x12xf32, #tpu.memory_space<vmem>>, vector<1x74x12xf32>
    %33 = vector.shape_cast %32 : vector<1x74x12xf32> to vector<74x12xf32>
    %34 = vector.broadcast %31 : f32 to vector<74x12xf32>
    %35 = arith.mulf %34, %33 : vector<74x12xf32>
    %36 = arith.addf %30, %35 : vector<74x12xf32>
    %c6 = arith.constant 6 : index
    %37 = memref.load %arg1[%c6] : memref<24xf32, #tpu.memory_space<smem>>
    %c6_20 = arith.constant 6 : index
    %c0_21 = arith.constant 0 : index
    %c0_22 = arith.constant 0 : index
    %38 = vector.load %arg2[%c6_20, %c0_21, %c0_22] : memref<12x74x12xf32, #tpu.memory_space<vmem>>, vector<1x74x12xf32>
    %39 = vector.shape_cast %38 : vector<1x74x12xf32> to vector<74x12xf32>
    %40 = vector.broadcast %37 : f32 to vector<74x12xf32>
    %41 = arith.mulf %40, %39 : vector<74x12xf32>
    %42 = arith.addf %36, %41 : vector<74x12xf32>
    %c7 = arith.constant 7 : index
    %43 = memref.load %arg1[%c7] : memref<24xf32, #tpu.memory_space<smem>>
    %c7_23 = arith.constant 7 : index
    %c0_24 = arith.constant 0 : index
    %c0_25 = arith.constant 0 : index
    %44 = vector.load %arg2[%c7_23, %c0_24, %c0_25] : memref<12x74x12xf32, #tpu.memory_space<vmem>>, vector<1x74x12xf32>
    %45 = vector.shape_cast %44 : vector<1x74x12xf32> to vector<74x12xf32>
    %46 = vector.broadcast %43 : f32 to vector<74x12xf32>
    %47 = arith.mulf %46, %45 : vector<74x12xf32>
    %48 = arith.addf %42, %47 : vector<74x12xf32>
    %c8 = arith.constant 8 : index
    %49 = memref.load %arg1[%c8] : memref<24xf32, #tpu.memory_space<smem>>
    %c8_26 = arith.constant 8 : index
    %c0_27 = arith.constant 0 : index
    %c0_28 = arith.constant 0 : index
    %50 = vector.load %arg2[%c8_26, %c0_27, %c0_28] : memref<12x74x12xf32, #tpu.memory_space<vmem>>, vector<1x74x12xf32>
    %51 = vector.shape_cast %50 : vector<1x74x12xf32> to vector<74x12xf32>
    %52 = vector.broadcast %49 : f32 to vector<74x12xf32>
    %53 = arith.mulf %52, %51 : vector<74x12xf32>
    %54 = arith.addf %48, %53 : vector<74x12xf32>
    %c9 = arith.constant 9 : index
    %55 = memref.load %arg1[%c9] : memref<24xf32, #tpu.memory_space<smem>>
    %c9_29 = arith.constant 9 : index
    %c0_30 = arith.constant 0 : index
    %c0_31 = arith.constant 0 : index
    %56 = vector.load %arg2[%c9_29, %c0_30, %c0_31] : memref<12x74x12xf32, #tpu.memory_space<vmem>>, vector<1x74x12xf32>
    %57 = vector.shape_cast %56 : vector<1x74x12xf32> to vector<74x12xf32>
    %58 = vector.broadcast %55 : f32 to vector<74x12xf32>
    %59 = arith.mulf %58, %57 : vector<74x12xf32>
    %60 = arith.addf %54, %59 : vector<74x12xf32>
    %c10 = arith.constant 10 : index
    %61 = memref.load %arg1[%c10] : memref<24xf32, #tpu.memory_space<smem>>
    %c10_32 = arith.constant 10 : index
    %c0_33 = arith.constant 0 : index
    %c0_34 = arith.constant 0 : index
    %62 = vector.load %arg2[%c10_32, %c0_33, %c0_34] : memref<12x74x12xf32, #tpu.memory_space<vmem>>, vector<1x74x12xf32>
    %63 = vector.shape_cast %62 : vector<1x74x12xf32> to vector<74x12xf32>
    %64 = vector.broadcast %61 : f32 to vector<74x12xf32>
    %65 = arith.mulf %64, %63 : vector<74x12xf32>
    %66 = arith.addf %60, %65 : vector<74x12xf32>
    %c11 = arith.constant 11 : index
    %67 = memref.load %arg1[%c11] : memref<24xf32, #tpu.memory_space<smem>>
    %c11_35 = arith.constant 11 : index
    %c0_36 = arith.constant 0 : index
    %c0_37 = arith.constant 0 : index
    %68 = vector.load %arg2[%c11_35, %c0_36, %c0_37] : memref<12x74x12xf32, #tpu.memory_space<vmem>>, vector<1x74x12xf32>
    %69 = vector.shape_cast %68 : vector<1x74x12xf32> to vector<74x12xf32>
    %70 = vector.broadcast %67 : f32 to vector<74x12xf32>
    %71 = arith.mulf %70, %69 : vector<74x12xf32>
    %72 = arith.addf %66, %71 : vector<74x12xf32>
    %cst = arith.constant 0.000000e+00 : f32
    %73 = vector.broadcast %cst : f32 to vector<74x12xf32>
    %74 = arith.maximumf %72, %73 : vector<74x12xf32>
    %c0_38 = arith.constant 0 : index
    %c0_39 = arith.constant 0 : index
    %75 = vector.load %arg5[%c0_38, %c0_39] : memref<1x8xf32, #tpu.memory_space<vmem>>, vector<1x8xf32>
    %76 = vector.shape_cast %75 : vector<1x8xf32> to vector<1x8xf32>
    %77 = vector.broadcast %76 : vector<1x8xf32> to vector<76x8xf32>
    %c0_40 = arith.constant 0 : index
    %c0_41 = arith.constant 0 : index
    %78 = vector.load %arg13[%c0_40, %c0_41] : memref<76x8xf32, #tpu.memory_space<vmem>>, vector<76x8xf32>
    tpu.vector_store %arg13[%c0_40, %c0_41], %77 {strides = array<i32>} : memref<76x8xf32, #tpu.memory_space<vmem>>, vector<76x8xf32>,
    %c0_42 = arith.constant 0 : index
    %c0_43 = arith.constant 0 : index
    %c0_44 = arith.constant 0 : index
    %79 = vector.load %arg4[%c0_42, %c0_43, %c0_44] : memref<3x12x8xf32, #tpu.memory_space<vmem>>, vector<1x12x8xf32>
    %80 = vector.shape_cast %79 : vector<1x12x8xf32> to vector<12x8xf32>
    %cst_45 = arith.constant dense<0.000000e+00> : vector<74x8xf32>
    %81 = tpu.matmul %74, %80, %cst_45 {dimension_numbers = #tpu.dot_dimension_numbers<[1], [0], [0], [1], [0, 0, 1, 1], [], []>} : vector<74x12xf32>, vector<12x8xf32>, vector<74x8xf32> -> vector<74x8xf32>
    %c0_46 = arith.constant 0 : index
    %c0_47 = arith.constant 0 : index
    %82 = vector.load %arg13[%c0_46, %c0_47] : memref<76x8xf32, #tpu.memory_space<vmem>>, vector<74x8xf32>
    %83 = arith.addf %82, %81 : vector<74x8xf32>
    %c0_48 = arith.constant 0 : index
    %c0_49 = arith.constant 0 : index
    %84 = vector.load %arg13[%c0_48, %c0_49] : memref<76x8xf32, #tpu.memory_space<vmem>>, vector<74x8xf32>
    tpu.vector_store %arg13[%c0_48, %c0_49], %83 {strides = array<i32>} : memref<76x8xf32, #tpu.memory_space<vmem>>, vector<74x8xf32>,
    %c1_50 = arith.constant 1 : index
    %c0_51 = arith.constant 0 : index
    %c0_52 = arith.constant 0 : index
    %85 = vector.load %arg4[%c1_50, %c0_51, %c0_52] : memref<3x12x8xf32, #tpu.memory_space<vmem>>, vector<1x12x8xf32>
    %86 = vector.shape_cast %85 : vector<1x12x8xf32> to vector<12x8xf32>
    %cst_53 = arith.constant dense<0.000000e+00> : vector<74x8xf32>
    %87 = tpu.matmul %74, %86, %cst_53 {dimension_numbers = #tpu.dot_dimension_numbers<[1], [0], [0], [1], [0, 0, 1, 1], [], []>} : vector<74x12xf32>, vector<12x8xf32>, vector<74x8xf32> -> vector<74x8xf32>
    %c1_54 = arith.constant 1 : index
    %c0_55 = arith.constant 0 : index
    %88 = vector.load %arg13[%c1_54, %c0_55] : memref<76x8xf32, #tpu.memory_space<vmem>>, vector<74x8xf32>
    %89 = arith.addf %88, %87 : vector<74x8xf32>
    %c1_56 = arith.constant 1 : index
    %c0_57 = arith.constant 0 : index
    %90 = vector.load %arg13[%c1_56, %c0_57] : memref<76x8xf32, #tpu.memory_space<vmem>>, vector<74x8xf32>
    tpu.vector_store %arg13[%c1_56, %c0_57], %89 {strides = array<i32>} : memref<76x8xf32, #tpu.memory_space<vmem>>, vector<74x8xf32>,
    %c2_58 = arith.constant 2 : index
    %c0_59 = arith.constant 0 : index
    %c0_60 = arith.constant 0 : index
    %91 = vector.load %arg4[%c2_58, %c0_59, %c0_60] : memref<3x12x8xf32, #tpu.memory_space<vmem>>, vector<1x12x8xf32>
    %92 = vector.shape_cast %91 : vector<1x12x8xf32> to vector<12x8xf32>
    %cst_61 = arith.constant dense<0.000000e+00> : vector<74x8xf32>
    %93 = tpu.matmul %74, %92, %cst_61 {dimension_numbers = #tpu.dot_dimension_numbers<[1], [0], [0], [1], [0, 0, 1, 1], [], []>} : vector<74x12xf32>, vector<12x8xf32>, vector<74x8xf32> -> vector<74x8xf32>
    %c2_62 = arith.constant 2 : index
    %c0_63 = arith.constant 0 : index
    %94 = vector.load %arg13[%c2_62, %c0_63] : memref<76x8xf32, #tpu.memory_space<vmem>>, vector<74x8xf32>
    %95 = arith.addf %94, %93 : vector<74x8xf32>
    %c2_64 = arith.constant 2 : index
    %c0_65 = arith.constant 0 : index
    %96 = vector.load %arg13[%c2_64, %c0_65] : memref<76x8xf32, #tpu.memory_space<vmem>>, vector<74x8xf32>
    tpu.vector_store %arg13[%c2_64, %c0_65], %95 {strides = array<i32>} : memref<76x8xf32, #tpu.memory_space<vmem>>, vector<74x8xf32>,
    %c0_66 = arith.constant 0 : index
    %c0_67 = arith.constant 0 : index
    %97 = vector.load %arg13[%c0_66, %c0_67] : memref<76x8xf32, #tpu.memory_space<vmem>>, vector<76x8xf32>
    %cst_68 = arith.constant 0.000000e+00 : f32
    %98 = vector.broadcast %cst_68 : f32 to vector<76x8xf32>
    %99 = arith.maximumf %97, %98 : vector<76x8xf32>
    %c0_69 = arith.constant 0 : index
    %c0_70 = arith.constant 0 : index
    %100 = vector.load %arg7[%c0_69, %c0_70] : memref<1x4xf32, #tpu.memory_space<vmem>>, vector<1x4xf32>
    %101 = vector.shape_cast %100 : vector<1x4xf32> to vector<1x4xf32>
    %102 = vector.broadcast %101 : vector<1x4xf32> to vector<78x4xf32>
    %c0_71 = arith.constant 0 : index
    %c0_72 = arith.constant 0 : index
    %103 = vector.load %arg14[%c0_71, %c0_72] : memref<78x4xf32, #tpu.memory_space<vmem>>, vector<78x4xf32>
    tpu.vector_store %arg14[%c0_71, %c0_72], %102 {strides = array<i32>} : memref<78x4xf32, #tpu.memory_space<vmem>>, vector<78x4xf32>,
    %c0_73 = arith.constant 0 : index
    %c0_74 = arith.constant 0 : index
    %c0_75 = arith.constant 0 : index
    %104 = vector.load %arg6[%c0_73, %c0_74, %c0_75] : memref<3x8x4xf32, #tpu.memory_space<vmem>>, vector<1x8x4xf32>
    %105 = vector.shape_cast %104 : vector<1x8x4xf32> to vector<8x4xf32>
    %cst_76 = arith.constant dense<0.000000e+00> : vector<76x4xf32>
    %106 = tpu.matmul %99, %105, %cst_76 {dimension_numbers = #tpu.dot_dimension_numbers<[1], [0], [0], [1], [0, 0, 1, 1], [], []>} : vector<76x8xf32>, vector<8x4xf32>, vector<76x4xf32> -> vector<76x4xf32>
    %c0_77 = arith.constant 0 : index
    %c0_78 = arith.constant 0 : index
    %107 = vector.load %arg14[%c0_77, %c0_78] : memref<78x4xf32, #tpu.memory_space<vmem>>, vector<76x4xf32>
    %108 = arith.addf %107, %106 : vector<76x4xf32>
    %c0_79 = arith.constant 0 : index
    %c0_80 = arith.constant 0 : index
    %109 = vector.load %arg14[%c0_79, %c0_80] : memref<78x4xf32, #tpu.memory_space<vmem>>, vector<76x4xf32>
    tpu.vector_store %arg14[%c0_79, %c0_80], %108 {strides = array<i32>} : memref<78x4xf32, #tpu.memory_space<vmem>>, vector<76x4xf32>,
    %c1_81 = arith.constant 1 : index
    %c0_82 = arith.constant 0 : index
    %c0_83 = arith.constant 0 : index
    %110 = vector.load %arg6[%c1_81, %c0_82, %c0_83] : memref<3x8x4xf32, #tpu.memory_space<vmem>>, vector<1x8x4xf32>
    %111 = vector.shape_cast %110 : vector<1x8x4xf32> to vector<8x4xf32>
    %cst_84 = arith.constant dense<0.000000e+00> : vector<76x4xf32>
    %112 = tpu.matmul %99, %111, %cst_84 {dimension_numbers = #tpu.dot_dimension_numbers<[1], [0], [0], [1], [0, 0, 1, 1], [], []>} : vector<76x8xf32>, vector<8x4xf32>, vector<76x4xf32> -> vector<76x4xf32>
    %c1_85 = arith.constant 1 : index
    %c0_86 = arith.constant 0 : index
    %113 = vector.load %arg14[%c1_85, %c0_86] : memref<78x4xf32, #tpu.memory_space<vmem>>, vector<76x4xf32>
    %114 = arith.addf %113, %112 : vector<76x4xf32>
    %c1_87 = arith.constant 1 : index
    %c0_88 = arith.constant 0 : index
    %115 = vector.load %arg14[%c1_87, %c0_88] : memref<78x4xf32, #tpu.memory_space<vmem>>, vector<76x4xf32>
    tpu.vector_store %arg14[%c1_87, %c0_88], %114 {strides = array<i32>} : memref<78x4xf32, #tpu.memory_space<vmem>>, vector<76x4xf32>,
    %c2_89 = arith.constant 2 : index
    %c0_90 = arith.constant 0 : index
    %c0_91 = arith.constant 0 : index
    %116 = vector.load %arg6[%c2_89, %c0_90, %c0_91] : memref<3x8x4xf32, #tpu.memory_space<vmem>>, vector<1x8x4xf32>
    %117 = vector.shape_cast %116 : vector<1x8x4xf32> to vector<8x4xf32>
    %cst_92 = arith.constant dense<0.000000e+00> : vector<76x4xf32>
    %118 = tpu.matmul %99, %117, %cst_92 {dimension_numbers = #tpu.dot_dimension_numbers<[1], [0], [0], [1], [0, 0, 1, 1], [], []>} : vector<76x8xf32>, vector<8x4xf32>, vector<76x4xf32> -> vector<76x4xf32>
    %c2_93 = arith.constant 2 : index
    %c0_94 = arith.constant 0 : index
    %119 = vector.load %arg14[%c2_93, %c0_94] : memref<78x4xf32, #tpu.memory_space<vmem>>, vector<76x4xf32>
    %120 = arith.addf %119, %118 : vector<76x4xf32>
    %c2_95 = arith.constant 2 : index
    %c0_96 = arith.constant 0 : index
    %121 = vector.load %arg14[%c2_95, %c0_96] : memref<78x4xf32, #tpu.memory_space<vmem>>, vector<76x4xf32>
    tpu.vector_store %arg14[%c2_95, %c0_96], %120 {strides = array<i32>} : memref<78x4xf32, #tpu.memory_space<vmem>>, vector<76x4xf32>,
    %c0_97 = arith.constant 0 : index
    %c0_98 = arith.constant 0 : index
    %122 = vector.load %arg14[%c0_97, %c0_98] : memref<78x4xf32, #tpu.memory_space<vmem>>, vector<78x4xf32>
    %cst_99 = arith.constant 0.000000e+00 : f32
    %123 = vector.broadcast %cst_99 : f32 to vector<78x4xf32>
    %124 = arith.maximumf %122, %123 : vector<78x4xf32>
    %c0_100 = arith.constant 0 : index
    %c0_101 = arith.constant 0 : index
    %125 = vector.load %arg9[%c0_100, %c0_101] : memref<1x128xf32, #tpu.memory_space<vmem>>, vector<1x128xf32>
    %126 = vector.shape_cast %125 : vector<1x128xf32> to vector<1x128xf32>
    %127 = vector.broadcast %126 : vector<1x128xf32> to vector<80x128xf32>
    %c0_102 = arith.constant 0 : index
    %c0_103 = arith.constant 0 : index
    %128 = vector.load %arg15[%c0_102, %c0_103] : memref<80x128xf32, #tpu.memory_space<vmem>>, vector<80x128xf32>
    tpu.vector_store %arg15[%c0_102, %c0_103], %127 {strides = array<i32>} : memref<80x128xf32, #tpu.memory_space<vmem>>, vector<80x128xf32>,
    %c0_104 = arith.constant 0 : index
    %c0_105 = arith.constant 0 : index
    %c0_106 = arith.constant 0 : index
    %129 = vector.load %arg8[%c0_104, %c0_105, %c0_106] : memref<3x4x128xf32, #tpu.memory_space<vmem>>, vector<1x4x128xf32>
    %130 = vector.shape_cast %129 : vector<1x4x128xf32> to vector<4x128xf32>
    %cst_107 = arith.constant dense<0.000000e+00> : vector<78x128xf32>
    %131 = tpu.matmul %124, %130, %cst_107 {dimension_numbers = #tpu.dot_dimension_numbers<[1], [0], [0], [1], [0, 0, 1, 1], [], []>} : vector<78x4xf32>, vector<4x128xf32>, vector<78x128xf32> -> vector<78x128xf32>
    %c0_108 = arith.constant 0 : index
    %c0_109 = arith.constant 0 : index
    %132 = vector.load %arg15[%c0_108, %c0_109] : memref<80x128xf32, #tpu.memory_space<vmem>>, vector<78x128xf32>
    %133 = arith.addf %132, %131 : vector<78x128xf32>
    %c0_110 = arith.constant 0 : index
    %c0_111 = arith.constant 0 : index
    %134 = vector.load %arg15[%c0_110, %c0_111] : memref<80x128xf32, #tpu.memory_space<vmem>>, vector<78x128xf32>
    tpu.vector_store %arg15[%c0_110, %c0_111], %133 {strides = array<i32>} : memref<80x128xf32, #tpu.memory_space<vmem>>, vector<78x128xf32>,
    %c1_112 = arith.constant 1 : index
    %c0_113 = arith.constant 0 : index
    %c0_114 = arith.constant 0 : index
    %135 = vector.load %arg8[%c1_112, %c0_113, %c0_114] : memref<3x4x128xf32, #tpu.memory_space<vmem>>, vector<1x4x128xf32>
    %136 = vector.shape_cast %135 : vector<1x4x128xf32> to vector<4x128xf32>
    %cst_115 = arith.constant dense<0.000000e+00> : vector<78x128xf32>
    %137 = tpu.matmul %124, %136, %cst_115 {dimension_numbers = #tpu.dot_dimension_numbers<[1], [0], [0], [1], [0, 0, 1, 1], [], []>} : vector<78x4xf32>, vector<4x128xf32>, vector<78x128xf32> -> vector<78x128xf32>
    %c1_116 = arith.constant 1 : index
    %c0_117 = arith.constant 0 : index
    %138 = vector.load %arg15[%c1_116, %c0_117] : memref<80x128xf32, #tpu.memory_space<vmem>>, vector<78x128xf32>
    %139 = arith.addf %138, %137 : vector<78x128xf32>
    %c1_118 = arith.constant 1 : index
    %c0_119 = arith.constant 0 : index
    %140 = vector.load %arg15[%c1_118, %c0_119] : memref<80x128xf32, #tpu.memory_space<vmem>>, vector<78x128xf32>
    tpu.vector_store %arg15[%c1_118, %c0_119], %139 {strides = array<i32>} : memref<80x128xf32, #tpu.memory_space<vmem>>, vector<78x128xf32>,
    %c2_120 = arith.constant 2 : index
    %c0_121 = arith.constant 0 : index
    %c0_122 = arith.constant 0 : index
    %141 = vector.load %arg8[%c2_120, %c0_121, %c0_122] : memref<3x4x128xf32, #tpu.memory_space<vmem>>, vector<1x4x128xf32>
    %142 = vector.shape_cast %141 : vector<1x4x128xf32> to vector<4x128xf32>
    %cst_123 = arith.constant dense<0.000000e+00> : vector<78x128xf32>
    %143 = tpu.matmul %124, %142, %cst_123 {dimension_numbers = #tpu.dot_dimension_numbers<[1], [0], [0], [1], [0, 0, 1, 1], [], []>} : vector<78x4xf32>, vector<4x128xf32>, vector<78x128xf32> -> vector<78x128xf32>
    %c2_124 = arith.constant 2 : index
    %c0_125 = arith.constant 0 : index
    %144 = vector.load %arg15[%c2_124, %c0_125] : memref<80x128xf32, #tpu.memory_space<vmem>>, vector<78x128xf32>
    %145 = arith.addf %144, %143 : vector<78x128xf32>
    %c2_126 = arith.constant 2 : index
    %c0_127 = arith.constant 0 : index
    %146 = vector.load %arg15[%c2_126, %c0_127] : memref<80x128xf32, #tpu.memory_space<vmem>>, vector<78x128xf32>
    tpu.vector_store %arg15[%c2_126, %c0_127], %145 {strides = array<i32>} : memref<80x128xf32, #tpu.memory_space<vmem>>, vector<78x128xf32>,
    %c0_128 = arith.constant 0 : index
    %c0_129 = arith.constant 0 : index
    %147 = vector.load %arg15[%c0_128, %c0_129] : memref<80x128xf32, #tpu.memory_space<vmem>>, vector<80x128xf32>
    %cst_130 = arith.constant 0.000000e+00 : f32
    %148 = vector.broadcast %cst_130 : f32 to vector<80x128xf32>
    %149 = arith.maximumf %147, %148 : vector<80x128xf32>
    %c0_131 = arith.constant 0 : index
    %c0_132 = arith.constant 0 : index
    %150 = vector.load %arg10[%c0_131, %c0_132] : memref<128x16xf32, #tpu.memory_space<vmem>>, vector<128x16xf32>
    %cst_133 = arith.constant dense<0.000000e+00> : vector<80x16xf32>
    %151 = tpu.matmul %149, %150, %cst_133 {dimension_numbers = #tpu.dot_dimension_numbers<[1], [0], [0], [1], [0, 0, 1, 1], [], []>} : vector<80x128xf32>, vector<128x16xf32>, vector<80x16xf32> -> vector<80x16xf32>
    %c0_134 = arith.constant 0 : index
    %c0_135 = arith.constant 0 : index
    %152 = vector.load %arg11[%c0_134, %c0_135] : memref<1x16xf32, #tpu.memory_space<vmem>>, vector<1x16xf32>
    %153 = vector.broadcast %152 : vector<1x16xf32> to vector<80x16xf32>
    %154 = arith.addf %151, %153 : vector<80x16xf32>
    %c0_136 = arith.constant 0 : index
    %c0_137 = arith.constant 0 : index
    %c0_138 = arith.constant 0 : index
    %155 = vector.load %arg12[%c0_136, %c0_137, %c0_138] : memref<2x80x16xf32, #tpu.memory_space<vmem>>, vector<1x80x16xf32>
    %156 = vector.shape_cast %155 : vector<1x80x16xf32> to vector<80x16xf32>
    %157 = vector.shape_cast %154 : vector<80x16xf32> to vector<1x80x16xf32>
    tpu.vector_store %arg12[%c0_136, %c0_137, %c0_138], %157 {strides = array<i32>} : memref<2x80x16xf32, #tpu.memory_space<vmem>>, vector<1x80x16xf32>,
    %c0_139 = arith.constant 0 : index
    %c0_140 = arith.constant 0 : index
    %158 = vector.load %arg3[%c0_139, %c0_140] : memref<74x12xf32, #tpu.memory_space<vmem>>, vector<74x12xf32>
    %c12 = arith.constant 12 : index
    %159 = memref.load %arg1[%c12] : memref<24xf32, #tpu.memory_space<smem>>
    %c0_141 = arith.constant 0 : index
    %c0_142 = arith.constant 0 : index
    %c0_143 = arith.constant 0 : index
    %160 = vector.load %arg2[%c0_141, %c0_142, %c0_143] : memref<12x74x12xf32, #tpu.memory_space<vmem>>, vector<1x74x12xf32>
    %161 = vector.shape_cast %160 : vector<1x74x12xf32> to vector<74x12xf32>
    %162 = vector.broadcast %159 : f32 to vector<74x12xf32>
    %163 = arith.mulf %162, %161 : vector<74x12xf32>
    %164 = arith.addf %158, %163 : vector<74x12xf32>
    %c13 = arith.constant 13 : index
    %165 = memref.load %arg1[%c13] : memref<24xf32, #tpu.memory_space<smem>>
    %c1_144 = arith.constant 1 : index
    %c0_145 = arith.constant 0 : index
    %c0_146 = arith.constant 0 : index
    %166 = vector.load %arg2[%c1_144, %c0_145, %c0_146] : memref<12x74x12xf32, #tpu.memory_space<vmem>>, vector<1x74x12xf32>
    %167 = vector.shape_cast %166 : vector<1x74x12xf32> to vector<74x12xf32>
    %168 = vector.broadcast %165 : f32 to vector<74x12xf32>
    %169 = arith.mulf %168, %167 : vector<74x12xf32>
    %170 = arith.addf %164, %169 : vector<74x12xf32>
    %c14 = arith.constant 14 : index
    %171 = memref.load %arg1[%c14] : memref<24xf32, #tpu.memory_space<smem>>
    %c2_147 = arith.constant 2 : index
    %c0_148 = arith.constant 0 : index
    %c0_149 = arith.constant 0 : index
    %172 = vector.load %arg2[%c2_147, %c0_148, %c0_149] : memref<12x74x12xf32, #tpu.memory_space<vmem>>, vector<1x74x12xf32>
    %173 = vector.shape_cast %172 : vector<1x74x12xf32> to vector<74x12xf32>
    %174 = vector.broadcast %171 : f32 to vector<74x12xf32>
    %175 = arith.mulf %174, %173 : vector<74x12xf32>
    %176 = arith.addf %170, %175 : vector<74x12xf32>
    %c15 = arith.constant 15 : index
    %177 = memref.load %arg1[%c15] : memref<24xf32, #tpu.memory_space<smem>>
    %c3_150 = arith.constant 3 : index
    %c0_151 = arith.constant 0 : index
    %c0_152 = arith.constant 0 : index
    %178 = vector.load %arg2[%c3_150, %c0_151, %c0_152] : memref<12x74x12xf32, #tpu.memory_space<vmem>>, vector<1x74x12xf32>
    %179 = vector.shape_cast %178 : vector<1x74x12xf32> to vector<74x12xf32>
    %180 = vector.broadcast %177 : f32 to vector<74x12xf32>
    %181 = arith.mulf %180, %179 : vector<74x12xf32>
    %182 = arith.addf %176, %181 : vector<74x12xf32>
    %c16 = arith.constant 16 : index
    %183 = memref.load %arg1[%c16] : memref<24xf32, #tpu.memory_space<smem>>
    %c4_153 = arith.constant 4 : index
    %c0_154 = arith.constant 0 : index
    %c0_155 = arith.constant 0 : index
    %184 = vector.load %arg2[%c4_153, %c0_154, %c0_155] : memref<12x74x12xf32, #tpu.memory_space<vmem>>, vector<1x74x12xf32>
    %185 = vector.shape_cast %184 : vector<1x74x12xf32> to vector<74x12xf32>
    %186 = vector.broadcast %183 : f32 to vector<74x12xf32>
    %187 = arith.mulf %186, %185 : vector<74x12xf32>
    %188 = arith.addf %182, %187 : vector<74x12xf32>
    %c17 = arith.constant 17 : index
    %189 = memref.load %arg1[%c17] : memref<24xf32, #tpu.memory_space<smem>>
    %c5_156 = arith.constant 5 : index
    %c0_157 = arith.constant 0 : index
    %c0_158 = arith.constant 0 : index
    %190 = vector.load %arg2[%c5_156, %c0_157, %c0_158] : memref<12x74x12xf32, #tpu.memory_space<vmem>>, vector<1x74x12xf32>
    %191 = vector.shape_cast %190 : vector<1x74x12xf32> to vector<74x12xf32>
    %192 = vector.broadcast %189 : f32 to vector<74x12xf32>
    %193 = arith.mulf %192, %191 : vector<74x12xf32>
    %194 = arith.addf %188, %193 : vector<74x12xf32>
    %c18 = arith.constant 18 : index
    %195 = memref.load %arg1[%c18] : memref<24xf32, #tpu.memory_space<smem>>
    %c6_159 = arith.constant 6 : index
    %c0_160 = arith.constant 0 : index
    %c0_161 = arith.constant 0 : index
    %196 = vector.load %arg2[%c6_159, %c0_160, %c0_161] : memref<12x74x12xf32, #tpu.memory_space<vmem>>, vector<1x74x12xf32>
    %197 = vector.shape_cast %196 : vector<1x74x12xf32> to vector<74x12xf32>
    %198 = vector.broadcast %195 : f32 to vector<74x12xf32>
    %199 = arith.mulf %198, %197 : vector<74x12xf32>
    %200 = arith.addf %194, %199 : vector<74x12xf32>
    %c19 = arith.constant 19 : index
    %201 = memref.load %arg1[%c19] : memref<24xf32, #tpu.memory_space<smem>>
    %c7_162 = arith.constant 7 : index
    %c0_163 = arith.constant 0 : index
    %c0_164 = arith.constant 0 : index
    %202 = vector.load %arg2[%c7_162, %c0_163, %c0_164] : memref<12x74x12xf32, #tpu.memory_space<vmem>>, vector<1x74x12xf32>
    %203 = vector.shape_cast %202 : vector<1x74x12xf32> to vector<74x12xf32>
    %204 = vector.broadcast %201 : f32 to vector<74x12xf32>
    %205 = arith.mulf %204, %203 : vector<74x12xf32>
    %206 = arith.addf %200, %205 : vector<74x12xf32>
    %c20 = arith.constant 20 : index
    %207 = memref.load %arg1[%c20] : memref<24xf32, #tpu.memory_space<smem>>
    %c8_165 = arith.constant 8 : index
    %c0_166 = arith.constant 0 : index
    %c0_167 = arith.constant 0 : index
    %208 = vector.load %arg2[%c8_165, %c0_166, %c0_167] : memref<12x74x12xf32, #tpu.memory_space<vmem>>, vector<1x74x12xf32>
    %209 = vector.shape_cast %208 : vector<1x74x12xf32> to vector<74x12xf32>
    %210 = vector.broadcast %207 : f32 to vector<74x12xf32>
    %211 = arith.mulf %210, %209 : vector<74x12xf32>
    %212 = arith.addf %206, %211 : vector<74x12xf32>
    %c21 = arith.constant 21 : index
    %213 = memref.load %arg1[%c21] : memref<24xf32, #tpu.memory_space<smem>>
    %c9_168 = arith.constant 9 : index
    %c0_169 = arith.constant 0 : index
    %c0_170 = arith.constant 0 : index
    %214 = vector.load %arg2[%c9_168, %c0_169, %c0_170] : memref<12x74x12xf32, #tpu.memory_space<vmem>>, vector<1x74x12xf32>
    %215 = vector.shape_cast %214 : vector<1x74x12xf32> to vector<74x12xf32>
    %216 = vector.broadcast %213 : f32 to vector<74x12xf32>
    %217 = arith.mulf %216, %215 : vector<74x12xf32>
    %218 = arith.addf %212, %217 : vector<74x12xf32>
    %c22 = arith.constant 22 : index
    %219 = memref.load %arg1[%c22] : memref<24xf32, #tpu.memory_space<smem>>
    %c10_171 = arith.constant 10 : index
    %c0_172 = arith.constant 0 : index
    %c0_173 = arith.constant 0 : index
    %220 = vector.load %arg2[%c10_171, %c0_172, %c0_173] : memref<12x74x12xf32, #tpu.memory_space<vmem>>, vector<1x74x12xf32>
    %221 = vector.shape_cast %220 : vector<1x74x12xf32> to vector<74x12xf32>
    %222 = vector.broadcast %219 : f32 to vector<74x12xf32>
    %223 = arith.mulf %222, %221 : vector<74x12xf32>
    %224 = arith.addf %218, %223 : vector<74x12xf32>
    %c23 = arith.constant 23 : index
    %225 = memref.load %arg1[%c23] : memref<24xf32, #tpu.memory_space<smem>>
    %c11_174 = arith.constant 11 : index
    %c0_175 = arith.constant 0 : index
    %c0_176 = arith.constant 0 : index
    %226 = vector.load %arg2[%c11_174, %c0_175, %c0_176] : memref<12x74x12xf32, #tpu.memory_space<vmem>>, vector<1x74x12xf32>
    %227 = vector.shape_cast %226 : vector<1x74x12xf32> to vector<74x12xf32>
    %228 = vector.broadcast %225 : f32 to vector<74x12xf32>
    %229 = arith.mulf %228, %227 : vector<74x12xf32>
    %230 = arith.addf %224, %229 : vector<74x12xf32>
    %cst_177 = arith.constant 0.000000e+00 : f32
    %231 = vector.broadcast %cst_177 : f32 to vector<74x12xf32>
    %232 = arith.maximumf %230, %231 : vector<74x12xf32>
    %c0_178 = arith.constant 0 : index
    %c0_179 = arith.constant 0 : index
    %233 = vector.load %arg5[%c0_178, %c0_179] : memref<1x8xf32, #tpu.memory_space<vmem>>, vector<1x8xf32>
    %234 = vector.shape_cast %233 : vector<1x8xf32> to vector<1x8xf32>
    %235 = vector.broadcast %234 : vector<1x8xf32> to vector<76x8xf32>
    %c0_180 = arith.constant 0 : index
    %c0_181 = arith.constant 0 : index
    %236 = vector.load %arg13[%c0_180, %c0_181] : memref<76x8xf32, #tpu.memory_space<vmem>>, vector<76x8xf32>
    tpu.vector_store %arg13[%c0_180, %c0_181], %235 {strides = array<i32>} : memref<76x8xf32, #tpu.memory_space<vmem>>, vector<76x8xf32>,
    %c0_182 = arith.constant 0 : index
    %c0_183 = arith.constant 0 : index
    %c0_184 = arith.constant 0 : index
    %237 = vector.load %arg4[%c0_182, %c0_183, %c0_184] : memref<3x12x8xf32, #tpu.memory_space<vmem>>, vector<1x12x8xf32>
    %238 = vector.shape_cast %237 : vector<1x12x8xf32> to vector<12x8xf32>
    %cst_185 = arith.constant dense<0.000000e+00> : vector<74x8xf32>
    %239 = tpu.matmul %232, %238, %cst_185 {dimension_numbers = #tpu.dot_dimension_numbers<[1], [0], [0], [1], [0, 0, 1, 1], [], []>} : vector<74x12xf32>, vector<12x8xf32>, vector<74x8xf32> -> vector<74x8xf32>
    %c0_186 = arith.constant 0 : index
    %c0_187 = arith.constant 0 : index
    %240 = vector.load %arg13[%c0_186, %c0_187] : memref<76x8xf32, #tpu.memory_space<vmem>>, vector<74x8xf32>
    %241 = arith.addf %240, %239 : vector<74x8xf32>
    %c0_188 = arith.constant 0 : index
    %c0_189 = arith.constant 0 : index
    %242 = vector.load %arg13[%c0_188, %c0_189] : memref<76x8xf32, #tpu.memory_space<vmem>>, vector<74x8xf32>
    tpu.vector_store %arg13[%c0_188, %c0_189], %241 {strides = array<i32>} : memref<76x8xf32, #tpu.memory_space<vmem>>, vector<74x8xf32>,
    %c1_190 = arith.constant 1 : index
    %c0_191 = arith.constant 0 : index
    %c0_192 = arith.constant 0 : index
    %243 = vector.load %arg4[%c1_190, %c0_191, %c0_192] : memref<3x12x8xf32, #tpu.memory_space<vmem>>, vector<1x12x8xf32>
    %244 = vector.shape_cast %243 : vector<1x12x8xf32> to vector<12x8xf32>
    %cst_193 = arith.constant dense<0.000000e+00> : vector<74x8xf32>
    %245 = tpu.matmul %232, %244, %cst_193 {dimension_numbers = #tpu.dot_dimension_numbers<[1], [0], [0], [1], [0, 0, 1, 1], [], []>} : vector<74x12xf32>, vector<12x8xf32>, vector<74x8xf32> -> vector<74x8xf32>
    %c1_194 = arith.constant 1 : index
    %c0_195 = arith.constant 0 : index
    %246 = vector.load %arg13[%c1_194, %c0_195] : memref<76x8xf32, #tpu.memory_space<vmem>>, vector<74x8xf32>
    %247 = arith.addf %246, %245 : vector<74x8xf32>
    %c1_196 = arith.constant 1 : index
    %c0_197 = arith.constant 0 : index
    %248 = vector.load %arg13[%c1_196, %c0_197] : memref<76x8xf32, #tpu.memory_space<vmem>>, vector<74x8xf32>
    tpu.vector_store %arg13[%c1_196, %c0_197], %247 {strides = array<i32>} : memref<76x8xf32, #tpu.memory_space<vmem>>, vector<74x8xf32>,
    %c2_198 = arith.constant 2 : index
    %c0_199 = arith.constant 0 : index
    %c0_200 = arith.constant 0 : index
    %249 = vector.load %arg4[%c2_198, %c0_199, %c0_200] : memref<3x12x8xf32, #tpu.memory_space<vmem>>, vector<1x12x8xf32>
    %250 = vector.shape_cast %249 : vector<1x12x8xf32> to vector<12x8xf32>
    %cst_201 = arith.constant dense<0.000000e+00> : vector<74x8xf32>
    %251 = tpu.matmul %232, %250, %cst_201 {dimension_numbers = #tpu.dot_dimension_numbers<[1], [0], [0], [1], [0, 0, 1, 1], [], []>} : vector<74x12xf32>, vector<12x8xf32>, vector<74x8xf32> -> vector<74x8xf32>
    %c2_202 = arith.constant 2 : index
    %c0_203 = arith.constant 0 : index
    %252 = vector.load %arg13[%c2_202, %c0_203] : memref<76x8xf32, #tpu.memory_space<vmem>>, vector<74x8xf32>
    %253 = arith.addf %252, %251 : vector<74x8xf32>
    %c2_204 = arith.constant 2 : index
    %c0_205 = arith.constant 0 : index
    %254 = vector.load %arg13[%c2_204, %c0_205] : memref<76x8xf32, #tpu.memory_space<vmem>>, vector<74x8xf32>
    tpu.vector_store %arg13[%c2_204, %c0_205], %253 {strides = array<i32>} : memref<76x8xf32, #tpu.memory_space<vmem>>, vector<74x8xf32>,
    %c0_206 = arith.constant 0 : index
    %c0_207 = arith.constant 0 : index
    %255 = vector.load %arg13[%c0_206, %c0_207] : memref<76x8xf32, #tpu.memory_space<vmem>>, vector<76x8xf32>
    %cst_208 = arith.constant 0.000000e+00 : f32
    %256 = vector.broadcast %cst_208 : f32 to vector<76x8xf32>
    %257 = arith.maximumf %255, %256 : vector<76x8xf32>
    %c0_209 = arith.constant 0 : index
    %c0_210 = arith.constant 0 : index
    %258 = vector.load %arg7[%c0_209, %c0_210] : memref<1x4xf32, #tpu.memory_space<vmem>>, vector<1x4xf32>
    %259 = vector.shape_cast %258 : vector<1x4xf32> to vector<1x4xf32>
    %260 = vector.broadcast %259 : vector<1x4xf32> to vector<78x4xf32>
    %c0_211 = arith.constant 0 : index
    %c0_212 = arith.constant 0 : index
    %261 = vector.load %arg14[%c0_211, %c0_212] : memref<78x4xf32, #tpu.memory_space<vmem>>, vector<78x4xf32>
    tpu.vector_store %arg14[%c0_211, %c0_212], %260 {strides = array<i32>} : memref<78x4xf32, #tpu.memory_space<vmem>>, vector<78x4xf32>,
    %c0_213 = arith.constant 0 : index
    %c0_214 = arith.constant 0 : index
    %c0_215 = arith.constant 0 : index
    %262 = vector.load %arg6[%c0_213, %c0_214, %c0_215] : memref<3x8x4xf32, #tpu.memory_space<vmem>>, vector<1x8x4xf32>
    %263 = vector.shape_cast %262 : vector<1x8x4xf32> to vector<8x4xf32>
    %cst_216 = arith.constant dense<0.000000e+00> : vector<76x4xf32>
    %264 = tpu.matmul %257, %263, %cst_216 {dimension_numbers = #tpu.dot_dimension_numbers<[1], [0], [0], [1], [0, 0, 1, 1], [], []>} : vector<76x8xf32>, vector<8x4xf32>, vector<76x4xf32> -> vector<76x4xf32>
    %c0_217 = arith.constant 0 : index
    %c0_218 = arith.constant 0 : index
    %265 = vector.load %arg14[%c0_217, %c0_218] : memref<78x4xf32, #tpu.memory_space<vmem>>, vector<76x4xf32>
    %266 = arith.addf %265, %264 : vector<76x4xf32>
    %c0_219 = arith.constant 0 : index
    %c0_220 = arith.constant 0 : index
    %267 = vector.load %arg14[%c0_219, %c0_220] : memref<78x4xf32, #tpu.memory_space<vmem>>, vector<76x4xf32>
    tpu.vector_store %arg14[%c0_219, %c0_220], %266 {strides = array<i32>} : memref<78x4xf32, #tpu.memory_space<vmem>>, vector<76x4xf32>,
    %c1_221 = arith.constant 1 : index
    %c0_222 = arith.constant 0 : index
    %c0_223 = arith.constant 0 : index
    %268 = vector.load %arg6[%c1_221, %c0_222, %c0_223] : memref<3x8x4xf32, #tpu.memory_space<vmem>>, vector<1x8x4xf32>
    %269 = vector.shape_cast %268 : vector<1x8x4xf32> to vector<8x4xf32>
    %cst_224 = arith.constant dense<0.000000e+00> : vector<76x4xf32>
    %270 = tpu.matmul %257, %269, %cst_224 {dimension_numbers = #tpu.dot_dimension_numbers<[1], [0], [0], [1], [0, 0, 1, 1], [], []>} : vector<76x8xf32>, vector<8x4xf32>, vector<76x4xf32> -> vector<76x4xf32>
    %c1_225 = arith.constant 1 : index
    %c0_226 = arith.constant 0 : index
    %271 = vector.load %arg14[%c1_225, %c0_226] : memref<78x4xf32, #tpu.memory_space<vmem>>, vector<76x4xf32>
    %272 = arith.addf %271, %270 : vector<76x4xf32>
    %c1_227 = arith.constant 1 : index
    %c0_228 = arith.constant 0 : index
    %273 = vector.load %arg14[%c1_227, %c0_228] : memref<78x4xf32, #tpu.memory_space<vmem>>, vector<76x4xf32>
    tpu.vector_store %arg14[%c1_227, %c0_228], %272 {strides = array<i32>} : memref<78x4xf32, #tpu.memory_space<vmem>>, vector<76x4xf32>,
    %c2_229 = arith.constant 2 : index
    %c0_230 = arith.constant 0 : index
    %c0_231 = arith.constant 0 : index
    %274 = vector.load %arg6[%c2_229, %c0_230, %c0_231] : memref<3x8x4xf32, #tpu.memory_space<vmem>>, vector<1x8x4xf32>
    %275 = vector.shape_cast %274 : vector<1x8x4xf32> to vector<8x4xf32>
    %cst_232 = arith.constant dense<0.000000e+00> : vector<76x4xf32>
    %276 = tpu.matmul %257, %275, %cst_232 {dimension_numbers = #tpu.dot_dimension_numbers<[1], [0], [0], [1], [0, 0, 1, 1], [], []>} : vector<76x8xf32>, vector<8x4xf32>, vector<76x4xf32> -> vector<76x4xf32>
    %c2_233 = arith.constant 2 : index
    %c0_234 = arith.constant 0 : index
    %277 = vector.load %arg14[%c2_233, %c0_234] : memref<78x4xf32, #tpu.memory_space<vmem>>, vector<76x4xf32>
    %278 = arith.addf %277, %276 : vector<76x4xf32>
    %c2_235 = arith.constant 2 : index
    %c0_236 = arith.constant 0 : index
    %279 = vector.load %arg14[%c2_235, %c0_236] : memref<78x4xf32, #tpu.memory_space<vmem>>, vector<76x4xf32>
    tpu.vector_store %arg14[%c2_235, %c0_236], %278 {strides = array<i32>} : memref<78x4xf32, #tpu.memory_space<vmem>>, vector<76x4xf32>,
    %c0_237 = arith.constant 0 : index
    %c0_238 = arith.constant 0 : index
    %280 = vector.load %arg14[%c0_237, %c0_238] : memref<78x4xf32, #tpu.memory_space<vmem>>, vector<78x4xf32>
    %cst_239 = arith.constant 0.000000e+00 : f32
    %281 = vector.broadcast %cst_239 : f32 to vector<78x4xf32>
    %282 = arith.maximumf %280, %281 : vector<78x4xf32>
    %c0_240 = arith.constant 0 : index
    %c0_241 = arith.constant 0 : index
    %283 = vector.load %arg9[%c0_240, %c0_241] : memref<1x128xf32, #tpu.memory_space<vmem>>, vector<1x128xf32>
    %284 = vector.shape_cast %283 : vector<1x128xf32> to vector<1x128xf32>
    %285 = vector.broadcast %284 : vector<1x128xf32> to vector<80x128xf32>
    %c0_242 = arith.constant 0 : index
    %c0_243 = arith.constant 0 : index
    %286 = vector.load %arg15[%c0_242, %c0_243] : memref<80x128xf32, #tpu.memory_space<vmem>>, vector<80x128xf32>
    tpu.vector_store %arg15[%c0_242, %c0_243], %285 {strides = array<i32>} : memref<80x128xf32, #tpu.memory_space<vmem>>, vector<80x128xf32>,
    %c0_244 = arith.constant 0 : index
    %c0_245 = arith.constant 0 : index
    %c0_246 = arith.constant 0 : index
    %287 = vector.load %arg8[%c0_244, %c0_245, %c0_246] : memref<3x4x128xf32, #tpu.memory_space<vmem>>, vector<1x4x128xf32>
    %288 = vector.shape_cast %287 : vector<1x4x128xf32> to vector<4x128xf32>
    %cst_247 = arith.constant dense<0.000000e+00> : vector<78x128xf32>
    %289 = tpu.matmul %282, %288, %cst_247 {dimension_numbers = #tpu.dot_dimension_numbers<[1], [0], [0], [1], [0, 0, 1, 1], [], []>} : vector<78x4xf32>, vector<4x128xf32>, vector<78x128xf32> -> vector<78x128xf32>
    %c0_248 = arith.constant 0 : index
    %c0_249 = arith.constant 0 : index
    %290 = vector.load %arg15[%c0_248, %c0_249] : memref<80x128xf32, #tpu.memory_space<vmem>>, vector<78x128xf32>
    %291 = arith.addf %290, %289 : vector<78x128xf32>
    %c0_250 = arith.constant 0 : index
    %c0_251 = arith.constant 0 : index
    %292 = vector.load %arg15[%c0_250, %c0_251] : memref<80x128xf32, #tpu.memory_space<vmem>>, vector<78x128xf32>
    tpu.vector_store %arg15[%c0_250, %c0_251], %291 {strides = array<i32>} : memref<80x128xf32, #tpu.memory_space<vmem>>, vector<78x128xf32>,
    %c1_252 = arith.constant 1 : index
    %c0_253 = arith.constant 0 : index
    %c0_254 = arith.constant 0 : index
    %293 = vector.load %arg8[%c1_252, %c0_253, %c0_254] : memref<3x4x128xf32, #tpu.memory_space<vmem>>, vector<1x4x128xf32>
    %294 = vector.shape_cast %293 : vector<1x4x128xf32> to vector<4x128xf32>
    %cst_255 = arith.constant dense<0.000000e+00> : vector<78x128xf32>
    %295 = tpu.matmul %282, %294, %cst_255 {dimension_numbers = #tpu.dot_dimension_numbers<[1], [0], [0], [1], [0, 0, 1, 1], [], []>} : vector<78x4xf32>, vector<4x128xf32>, vector<78x128xf32> -> vector<78x128xf32>
    %c1_256 = arith.constant 1 : index
    %c0_257 = arith.constant 0 : index
    %296 = vector.load %arg15[%c1_256, %c0_257] : memref<80x128xf32, #tpu.memory_space<vmem>>, vector<78x128xf32>
    %297 = arith.addf %296, %295 : vector<78x128xf32>
    %c1_258 = arith.constant 1 : index
    %c0_259 = arith.constant 0 : index
    %298 = vector.load %arg15[%c1_258, %c0_259] : memref<80x128xf32, #tpu.memory_space<vmem>>, vector<78x128xf32>
    tpu.vector_store %arg15[%c1_258, %c0_259], %297 {strides = array<i32>} : memref<80x128xf32, #tpu.memory_space<vmem>>, vector<78x128xf32>,
    %c2_260 = arith.constant 2 : index
    %c0_261 = arith.constant 0 : index
    %c0_262 = arith.constant 0 : index
    %299 = vector.load %arg8[%c2_260, %c0_261, %c0_262] : memref<3x4x128xf32, #tpu.memory_space<vmem>>, vector<1x4x128xf32>
    %300 = vector.shape_cast %299 : vector<1x4x128xf32> to vector<4x128xf32>
    %cst_263 = arith.constant dense<0.000000e+00> : vector<78x128xf32>
    %301 = tpu.matmul %282, %300, %cst_263 {dimension_numbers = #tpu.dot_dimension_numbers<[1], [0], [0], [1], [0, 0, 1, 1], [], []>} : vector<78x4xf32>, vector<4x128xf32>, vector<78x128xf32> -> vector<78x128xf32>
    %c2_264 = arith.constant 2 : index
    %c0_265 = arith.constant 0 : index
    %302 = vector.load %arg15[%c2_264, %c0_265] : memref<80x128xf32, #tpu.memory_space<vmem>>, vector<78x128xf32>
    %303 = arith.addf %302, %301 : vector<78x128xf32>
    %c2_266 = arith.constant 2 : index
    %c0_267 = arith.constant 0 : index
    %304 = vector.load %arg15[%c2_266, %c0_267] : memref<80x128xf32, #tpu.memory_space<vmem>>, vector<78x128xf32>
    tpu.vector_store %arg15[%c2_266, %c0_267], %303 {strides = array<i32>} : memref<80x128xf32, #tpu.memory_space<vmem>>, vector<78x128xf32>,
    %c0_268 = arith.constant 0 : index
    %c0_269 = arith.constant 0 : index
    %305 = vector.load %arg15[%c0_268, %c0_269] : memref<80x128xf32, #tpu.memory_space<vmem>>, vector<80x128xf32>
    %cst_270 = arith.constant 0.000000e+00 : f32
    %306 = vector.broadcast %cst_270 : f32 to vector<80x128xf32>
    %307 = arith.maximumf %305, %306 : vector<80x128xf32>
    %c0_271 = arith.constant 0 : index
    %c0_272 = arith.constant 0 : index
    %308 = vector.load %arg10[%c0_271, %c0_272] : memref<128x16xf32, #tpu.memory_space<vmem>>, vector<128x16xf32>
    %cst_273 = arith.constant dense<0.000000e+00> : vector<80x16xf32>
    %309 = tpu.matmul %307, %308, %cst_273 {dimension_numbers = #tpu.dot_dimension_numbers<[1], [0], [0], [1], [0, 0, 1, 1], [], []>} : vector<80x128xf32>, vector<128x16xf32>, vector<80x16xf32> -> vector<80x16xf32>
    %c0_274 = arith.constant 0 : index
    %c0_275 = arith.constant 0 : index
    %310 = vector.load %arg11[%c0_274, %c0_275] : memref<1x16xf32, #tpu.memory_space<vmem>>, vector<1x16xf32>
    %311 = vector.broadcast %310 : vector<1x16xf32> to vector<80x16xf32>
    %312 = arith.addf %309, %311 : vector<80x16xf32>
    %c1_276 = arith.constant 1 : index
    %c0_277 = arith.constant 0 : index
    %c0_278 = arith.constant 0 : index
    %313 = vector.load %arg12[%c1_276, %c0_277, %c0_278] : memref<2x80x16xf32, #tpu.memory_space<vmem>>, vector<1x80x16xf32>
    %314 = vector.shape_cast %313 : vector<1x80x16xf32> to vector<80x16xf32>
    %315 = vector.shape_cast %312 : vector<80x16xf32> to vector<1x80x16xf32>
    tpu.vector_store %arg12[%c1_276, %c0_277, %c0_278], %315 {strides = array<i32>} : memref<2x80x16xf32, #tpu.memory_space<vmem>>, vector<1x80x16xf32>,
    return
  }
  func.func @transform_0(%arg0: i32) -> i32 {
    %c0_i32 = arith.constant 0 : i32
    %c0_i32_0 = arith.constant 0 : i32
    return %c0_i32 : i32
  }
  func.func @transform_1(%arg0: i32) -> (i32, i32, i32) {
    %c0_i32 = arith.constant 0 : i32
    %c0_i32_0 = arith.constant 0 : i32
    %c0_i32_1 = arith.constant 0 : i32
    %c0_i32_2 = arith.constant 0 : i32
    return %c0_i32, %c0_i32_0, %c0_i32_1 : i32, i32, i32
  }
  func.func @transform_2(%arg0: i32) -> (i32, i32) {
    %c0_i32 = arith.constant 0 : i32
    %c0_i32_0 = arith.constant 0 : i32
    %c0_i32_1 = arith.constant 0 : i32
    return %c0_i32, %c0_i32_0 : i32, i32
  }
  func.func @transform_3(%arg0: i32) -> (i32, i32, i32) {
    %c0_i32 = arith.constant 0 : i32
    %c0_i32_0 = arith.constant 0 : i32
    %c0_i32_1 = arith.constant 0 : i32
    %c0_i32_2 = arith.constant 0 : i32
    return %c0_i32, %c0_i32_0, %c0_i32_1 : i32, i32, i32
  }
  func.func @transform_4(%arg0: i32) -> (i32, i32) {
    %c0_i32 = arith.constant 0 : i32
    %c0_i32_0 = arith.constant 0 : i32
    %c0_i32_1 = arith.constant 0 : i32
    return %c0_i32, %c0_i32_0 : i32, i32
  }
  func.func @transform_5(%arg0: i32) -> (i32, i32, i32) {
    %c0_i32 = arith.constant 0 : i32
    %c0_i32_0 = arith.constant 0 : i32
    %c0_i32_1 = arith.constant 0 : i32
    %c0_i32_2 = arith.constant 0 : i32
    return %c0_i32, %c0_i32_0, %c0_i32_1 : i32, i32, i32
  }
  func.func @transform_6(%arg0: i32) -> (i32, i32) {
    %c0_i32 = arith.constant 0 : i32
    %c0_i32_0 = arith.constant 0 : i32
    %c0_i32_1 = arith.constant 0 : i32
    return %c0_i32, %c0_i32_0 : i32, i32
  }
  func.func @transform_7(%arg0: i32) -> (i32, i32, i32) {
    %c0_i32 = arith.constant 0 : i32
    %c0_i32_0 = arith.constant 0 : i32
    %c0_i32_1 = arith.constant 0 : i32
    %c0_i32_2 = arith.constant 0 : i32
    return %c0_i32, %c0_i32_0, %c0_i32_1 : i32, i32, i32
  }
  func.func @transform_8(%arg0: i32) -> (i32, i32) {
    %c0_i32 = arith.constant 0 : i32
    %c0_i32_0 = arith.constant 0 : i32
    %c0_i32_1 = arith.constant 0 : i32
    return %c0_i32, %c0_i32_0 : i32, i32
  }
  func.func @transform_9(%arg0: i32) -> (i32, i32) {
    %c0_i32 = arith.constant 0 : i32
    %c0_i32_0 = arith.constant 0 : i32
    %c0_i32_1 = arith.constant 0 : i32
    return %c0_i32, %c0_i32_0 : i32, i32
  }
  func.func @transform_10(%arg0: i32) -> (i32, i32) {
    %c0_i32 = arith.constant 0 : i32
    %c0_i32_0 = arith.constant 0 : i32
    %c0_i32_1 = arith.constant 0 : i32
    return %c0_i32, %c0_i32_0 : i32, i32
  }
  func.func @transform_11(%arg0: i32) -> (i32, i32, i32) {
    %c0_i32 = arith.constant 0 : i32
    %c0_i32_0 = arith.constant 0 : i32
    %c0_i32_1 = arith.constant 0 : i32
    %c0_i32_2 = arith.constant 0 : i32
    return %c0_i32, %c0_i32_0, %c0_i32_1 : i32, i32, i32
  }
}

</mosaic_0001>

<llo_original>
// kernel: deconvo_forward.1
$region0: #{deconvo_forward.1}
  #allocation0 [shape = 'u32[]', space=smem, size = 0x4, offset = 0x4, fixed_abs, tag = 'smem constant byte address 0x4 - core index']
  #allocation1 [shape = 'u32[144,128]{1,0:T(1,128)}', space=vmem, size = 0x12000, scoped, tag = 'internal scratch']
  #allocation2 [shape = 'f32[76,8]{1,0:T(8,128)}', space=vmem, size = 0xa000, scoped, tag = 'scratch operand']
  #allocation3 [shape = 'f32[78,4]{1,0:T(8,128)}', space=vmem, size = 0xa000, scoped, tag = 'scratch operand']
  #allocation4 [shape = 'f32[80,128]{1,0:T(8,128)}', space=vmem, size = 0xa000, scoped, tag = 'scratch operand']
  %s0 = inlined_call_operand.vmem [shape: f32[24], index: 0, kind: input, shape index: {}]
  %s1 = inlined_call_operand.vmem [shape: f32[12,74,12], index: 1, kind: input, shape index: {}]
  %s2 = inlined_call_operand.vmem [shape: f32[74,12], index: 2, kind: input, shape index: {}]
  %s3 = inlined_call_operand.vmem [shape: f32[3,12,8], index: 3, kind: input, shape index: {}]
  %s4 = inlined_call_operand.vmem [shape: f32[1,8], index: 4, kind: input, shape index: {}]
  %s5 = inlined_call_operand.vmem [shape: f32[3,8,4], index: 5, kind: input, shape index: {}]
  %s6 = inlined_call_operand.vmem [shape: f32[1,4], index: 6, kind: input, shape index: {}]
  %s7 = inlined_call_operand.vmem [shape: f32[3,4,128], index: 7, kind: input, shape index: {}]
  %s8 = inlined_call_operand.vmem [shape: f32[1,128], index: 8, kind: input, shape index: {}]
  %s9 = inlined_call_operand.vmem [shape: f32[128,16], index: 9, kind: input, shape index: {}]
  %s10 = inlined_call_operand.vmem [shape: f32[1,16], index: 10, kind: input, shape index: {}]
  %s11 = inlined_call_operand.vmem [shape: f32[2,80,16], index: 11, kind: output, shape index: {}]
  %s12 = sld [smem:[#allocation0]]
  $region58: #{deconvo_forward.1} parent=0
    _
  %s14 = ssub.s32 1, %s12
  %s15 = scalar_select 0, %s14, %s12
  $region1: #{deconvo_forward.1} parent=0
    #allocation5 [shape = 'u8[512]{0}', space=smem, size = 0x200, scoped, tag = 'input window, operand 0, single buffered']
    #allocation6 [shape = 's32[1]{0}', space=sflag, size = 0x4, scoped, tag = 'scoped memory for deconvo_forward.1']
    %16 = vsyncpa [#allocation6], 0
    // Predicated region
    $region2: #{deconvo_forward.1} parent=1 // pred_check
      _
    $region3: #{deconvo_forward.1} parent=1 // pred_check_branch
      %18 = sbr.rel (0) target = $region5
    $region4: #{deconvo_forward.1} parent=1 // pred_region
      %s20 = ssub.s32 16, 16
      %21 = vsyncadd [#allocation6], %s20
      %s23 = sshll.u32 %s0, 4
      %s24 = int_to_ptr.vmem [resolvable:$true] %s23
      %26 = dma.vmem_to_smem %s24, 16, [#allocation5], [#allocation6]
    $region5: #{deconvo_forward.1} parent=1 // pred_fallthru
      _
    // Predicated region
    $region6: #{deconvo_forward.1} parent=1 // pred_check
      _
    $region7: #{deconvo_forward.1} parent=1 // pred_check_branch
      %28 = sbr.rel (0) target = $region9
    $region8: #{deconvo_forward.1} parent=1 // pred_region
      _
    $region9: #{deconvo_forward.1} parent=1 // pred_fallthru
      _
    // Predicated region
    $region10: #{deconvo_forward.1} parent=1 // pred_check
      _
    $region11: #{deconvo_forward.1} parent=1 // pred_check_branch
      %30 = sbr.rel (0) target = $region13
    $region12: #{deconvo_forward.1} parent=1 // pred_region
      _
    $region13: #{deconvo_forward.1} parent=1 // pred_fallthru
      _
    // Predicated region
    $region14: #{deconvo_forward.1} parent=1 // pred_check
      _
    $region15: #{deconvo_forward.1} parent=1 // pred_check_branch
      %32 = sbr.rel (0) target = $region17
    $region16: #{deconvo_forward.1} parent=1 // pred_region
      _
    $region17: #{deconvo_forward.1} parent=1 // pred_fallthru
      _
    // Predicated region
    $region18: #{deconvo_forward.1} parent=1 // pred_check
      _
    $region19: #{deconvo_forward.1} parent=1 // pred_check_branch
      %34 = sbr.rel (0) target = $region21
    $region20: #{deconvo_forward.1} parent=1 // pred_region
      _
    $region21: #{deconvo_forward.1} parent=1 // pred_fallthru
      _
    // Predicated region
    $region22: #{deconvo_forward.1} parent=1 // pred_check
      _
    $region23: #{deconvo_forward.1} parent=1 // pred_check_branch
      %36 = sbr.rel (0) target = $region25
    $region24: #{deconvo_forward.1} parent=1 // pred_region
      _
    $region25: #{deconvo_forward.1} parent=1 // pred_fallthru
      _
    // Predicated region
    $region26: #{deconvo_forward.1} parent=1 // pred_check
      _
    $region27: #{deconvo_forward.1} parent=1 // pred_check_branch
      %38 = sbr.rel (0) target = $region29
    $region28: #{deconvo_forward.1} parent=1 // pred_region
      _
    $region29: #{deconvo_forward.1} parent=1 // pred_fallthru
      _
    // Predicated region
    $region30: #{deconvo_forward.1} parent=1 // pred_check
      _
    $region31: #{deconvo_forward.1} parent=1 // pred_check_branch
      %40 = sbr.rel (0) target = $region33
    $region32: #{deconvo_forward.1} parent=1 // pred_region
      _
    $region33: #{deconvo_forward.1} parent=1 // pred_fallthru
      _
    // Predicated region
    $region34: #{deconvo_forward.1} parent=1 // pred_check
      _
    $region35: #{deconvo_forward.1} parent=1 // pred_check_branch
      %42 = sbr.rel (0) target = $region37
    $region36: #{deconvo_forward.1} parent=1 // pred_region
      _
    $region37: #{deconvo_forward.1} parent=1 // pred_fallthru
      _
    // Predicated region
    $region38: #{deconvo_forward.1} parent=1 // pred_check
      _
    $region39: #{deconvo_forward.1} parent=1 // pred_check_branch
      %44 = sbr.rel (0) target = $region41
    $region40: #{deconvo_forward.1} parent=1 // pred_region
      _
    $region41: #{deconvo_forward.1} parent=1 // pred_fallthru
      _
    // Predicated region
    $region42: #{deconvo_forward.1} parent=1 // pred_check
      _
    $region43: #{deconvo_forward.1} parent=1 // pred_check_branch
      %46 = sbr.rel (0) target = $region45
    $region44: #{deconvo_forward.1} parent=1 // pred_region
      _
    $region45: #{deconvo_forward.1} parent=1 // pred_fallthru
      _
    // Predicated region
    $region46: #{deconvo_forward.1} parent=1 // pred_check
      _
    $region47: #{deconvo_forward.1} parent=1 // pred_check_branch
      %48 = sbr.rel (0) target = $region49
    $region48: #{deconvo_forward.1} parent=1 // pred_region
      %49 = dma.done [#allocation6], 16
    $region49: #{deconvo_forward.1} parent=1 // pred_fallthru
      _
    %50 = sfence
    %v51 = vld [vmem:[%s2] sm:$0xff]
    %v52 = vld [vmem:[%s2 + $0x8] sm:$0xff]
    %v53 = vld [vmem:[%s2 + $0x10] sm:$0xff]
    %v54 = vld [vmem:[%s2 + $0x18] sm:$0xff]
    %v55 = vld [vmem:[%s2 + $0x20] sm:$0xff]
    %v56 = vld [vmem:[%s2 + $0x28] sm:$0xff]
    %v57 = vld [vmem:[%s2 + $0x30] sm:$0xff]
    %v58 = vld [vmem:[%s2 + $0x38] sm:$0xff]
    %v59 = vld [vmem:[%s2 + $0x40] sm:$0xff]
    %v60 = vld [vmem:[%s2 + $0x48] sm:$0x3]
    %s61 = sld [smem:[#allocation5]]
    %v62 = vld [vmem:[%s1] sm:$0xff]
    %v63 = vld [vmem:[%s1 + $0x8] sm:$0xff]
    %v64 = vld [vmem:[%s1 + $0x10] sm:$0xff]
    %v65 = vld [vmem:[%s1 + $0x18] sm:$0xff]
    %v66 = vld [vmem:[%s1 + $0x20] sm:$0xff]
    %v67 = vld [vmem:[%s1 + $0x28] sm:$0xff]
    %v68 = vld [vmem:[%s1 + $0x30] sm:$0xff]
    %v69 = vld [vmem:[%s1 + $0x38] sm:$0xff]
    %v70 = vld [vmem:[%s1 + $0x40] sm:$0xff]
    %v71 = vld [vmem:[%s1 + $0x48] sm:$0x3]
    %v72 = vstv %s61
    %v73 = vmul.f32 %v72, %v62
    %v74 = vmul.f32 %v72, %v63
    %v75 = vmul.f32 %v72, %v64
    %v76 = vmul.f32 %v72, %v65
    %v77 = vmul.f32 %v72, %v66
    %v78 = vmul.f32 %v72, %v67
    %v79 = vmul.f32 %v72, %v68
    %v80 = vmul.f32 %v72, %v69
    %v81 = vmul.f32 %v72, %v70
    %v82 = vmul.f32 %v72, %v71
    %v83 = vadd.f32 %v51, %v73
    %v84 = vadd.f32 %v52, %v74
    %v85 = vadd.f32 %v53, %v75
    %v86 = vadd.f32 %v54, %v76
    %v87 = vadd.f32 %v55, %v77
    %v88 = vadd.f32 %v56, %v78
    %v89 = vadd.f32 %v57, %v79
    %v90 = vadd.f32 %v58, %v80
    %v91 = vadd.f32 %v59, %v81
    %v92 = vadd.f32 %v60, %v82
    %s93 = sld [smem:[#allocation5 + $0x1]]
    %s94 = scalar_lea.vmem %s1, 80
    %v95 = vld [vmem:[%s94] sm:$0xff]
    %v96 = vld [vmem:[%s94 + $0x8] sm:$0xff]
    %v97 = vld [vmem:[%s94 + $0x10] sm:$0xff]
    %v98 = vld [vmem:[%s94 + $0x18] sm:$0xff]
    %v99 = vld [vmem:[%s94 + $0x20] sm:$0xff]
    %v100 = vld [vmem:[%s94 + $0x28] sm:$0xff]
    %v101 = vld [vmem:[%s94 + $0x30] sm:$0xff]
    %v102 = vld [vmem:[%s94 + $0x38] sm:$0xff]
    %v103 = vld [vmem:[%s94 + $0x40] sm:$0xff]
    %v104 = vld [vmem:[%s94 + $0x48] sm:$0x3]
    %v105 = vstv %s93
    %v106 = vmul.f32 %v105, %v95
    %v107 = vmul.f32 %v105, %v96
    %v108 = vmul.f32 %v105, %v97
    %v109 = vmul.f32 %v105, %v98
    %v110 = vmul.f32 %v105, %v99
    %v111 = vmul.f32 %v105, %v100
    %v112 = vmul.f32 %v105, %v101
    %v113 = vmul.f32 %v105, %v102
    %v114 = vmul.f32 %v105, %v103
    %v115 = vmul.f32 %v105, %v104
    %v116 = vadd.f32 %v83, %v106
    %v117 = vadd.f32 %v84, %v107
    %v118 = vadd.f32 %v85, %v108
    %v119 = vadd.f32 %v86, %v109
    %v120 = vadd.f32 %v87, %v110
    %v121 = vadd.f32 %v88, %v111
    %v122 = vadd.f32 %v89, %v112
    %v123 = vadd.f32 %v90, %v113
    %v124 = vadd.f32 %v91, %v114
    %v125 = vadd.f32 %v92, %v115
    %s126 = sld [smem:[#allocation5 + $0x2]]
    %s127 = scalar_lea.vmem %s1, 160
    %v128 = vld [vmem:[%s127] sm:$0xff]
    %v129 = vld [vmem:[%s127 + $0x8] sm:$0xff]
    %v130 = vld [vmem:[%s127 + $0x10] sm:$0xff]
    %v131 = vld [vmem:[%s127 + $0x18] sm:$0xff]
    %v132 = vld [vmem:[%s127 + $0x20] sm:$0xff]
    %v133 = vld [vmem:[%s127 + $0x28] sm:$0xff]
    %v134 = vld [vmem:[%s127 + $0x30] sm:$0xff]
    %v135 = vld [vmem:[%s127 + $0x38] sm:$0xff]
    %v136 = vld [vmem:[%s127 + $0x40] sm:$0xff]
    %v137 = vld [vmem:[%s127 + $0x48] sm:$0x3]
    %v138 = vstv %s126
    %v139 = vmul.f32 %v138, %v128
    %v140 = vmul.f32 %v138, %v129
    %v141 = vmul.f32 %v138, %v130
    %v142 = vmul.f32 %v138, %v131
    %v143 = vmul.f32 %v138, %v132
    %v144 = vmul.f32 %v138, %v133
    %v145 = vmul.f32 %v138, %v134
    %v146 = vmul.f32 %v138, %v135
    %v147 = vmul.f32 %v138, %v136
    %v148 = vmul.f32 %v138, %v137
    %v149 = vadd.f32 %v116, %v139
    %v150 = vadd.f32 %v117, %v140
    %v151 = vadd.f32 %v118, %v141
    %v152 = vadd.f32 %v119, %v142
    %v153 = vadd.f32 %v120, %v143
    %v154 = vadd.f32 %v121, %v144
    %v155 = vadd.f32 %v122, %v145
    %v156 = vadd.f32 %v123, %v146
    %v157 = vadd.f32 %v124, %v147
    %v158 = vadd.f32 %v125, %v148
    %s159 = sld [smem:[#allocation5 + $0x3]]
    %s160 = scalar_lea.vmem %s1, 240
    %v161 = vld [vmem:[%s160] sm:$0xff]
    %v162 = vld [vmem:[%s160 + $0x8] sm:$0xff]
    %v163 = vld [vmem:[%s160 + $0x10] sm:$0xff]
    %v164 = vld [vmem:[%s160 + $0x18] sm:$0xff]
    %v165 = vld [vmem:[%s160 + $0x20] sm:$0xff]
    %v166 = vld [vmem:[%s160 + $0x28] sm:$0xff]
    %v167 = vld [vmem:[%s160 + $0x30] sm:$0xff]
    %v168 = vld [vmem:[%s160 + $0x38] sm:$0xff]
    %v169 = vld [vmem:[%s160 + $0x40] sm:$0xff]
    %v170 = vld [vmem:[%s160 + $0x48] sm:$0x3]
    %v171 = vstv %s159
    %v172 = vmul.f32 %v171, %v161
    %v173 = vmul.f32 %v171, %v162
    %v174 = vmul.f32 %v171, %v163
    %v175 = vmul.f32 %v171, %v164
    %v176 = vmul.f32 %v171, %v165
    %v177 = vmul.f32 %v171, %v166
    %v178 = vmul.f32 %v171, %v167
    %v179 = vmul.f32 %v171, %v168
    %v180 = vmul.f32 %v171, %v169
    %v181 = vmul.f32 %v171, %v170
    %v182 = vadd.f32 %v149, %v172
    %v183 = vadd.f32 %v150, %v173
    %v184 = vadd.f32 %v151, %v174
    %v185 = vadd.f32 %v152, %v175
    %v186 = vadd.f32 %v153, %v176
    %v187 = vadd.f32 %v154, %v177
    %v188 = vadd.f32 %v155, %v178
    %v189 = vadd.f32 %v156, %v179
    %v190 = vadd.f32 %v157, %v180
    %v191 = vadd.f32 %v158, %v181
    %s192 = sld [smem:[#allocation5 + $0x4]]
    %s193 = scalar_lea.vmem %s1, 320
    %v194 = vld [vmem:[%s193] sm:$0xff]
    %v195 = vld [vmem:[%s193 + $0x8] sm:$0xff]
    %v196 = vld [vmem:[%s193 + $0x10] sm:$0xff]
    %v197 = vld [vmem:[%s193 + $0x18] sm:$0xff]
    %v198 = vld [vmem:[%s193 + $0x20] sm:$0xff]
    %v199 = vld [vmem:[%s193 + $0x28] sm:$0xff]
    %v200 = vld [vmem:[%s193 + $0x30] sm:$0xff]
    %v201 = vld [vmem:[%s193 + $0x38] sm:$0xff]
    %v202 = vld [vmem:[%s193 + $0x40] sm:$0xff]
    %v203 = vld [vmem:[%s193 + $0x48] sm:$0x3]
    %v204 = vstv %s192
    %v205 = vmul.f32 %v204, %v194
    %v206 = vmul.f32 %v204, %v195
    %v207 = vmul.f32 %v204, %v196
    %v208 = vmul.f32 %v204, %v197
    %v209 = vmul.f32 %v204, %v198
    %v210 = vmul.f32 %v204, %v199
    %v211 = vmul.f32 %v204, %v200
    %v212 = vmul.f32 %v204, %v201
    %v213 = vmul.f32 %v204, %v202
    %v214 = vmul.f32 %v204, %v203
    %v215 = vadd.f32 %v182, %v205
    %v216 = vadd.f32 %v183, %v206
    %v217 = vadd.f32 %v184, %v207
    %v218 = vadd.f32 %v185, %v208
    %v219 = vadd.f32 %v186, %v209
    %v220 = vadd.f32 %v187, %v210
    %v221 = vadd.f32 %v188, %v211
    %v222 = vadd.f32 %v189, %v212
    %v223 = vadd.f32 %v190, %v213
    %v224 = vadd.f32 %v191, %v214
    %s225 = sld [smem:[#allocation5 + $0x5]]
    %s226 = scalar_lea.vmem %s1, 400
    %v227 = vld [vmem:[%s226] sm:$0xff]
    %v228 = vld [vmem:[%s226 + $0x8] sm:$0xff]
    %v229 = vld [vmem:[%s226 + $0x10] sm:$0xff]
    %v230 = vld [vmem:[%s226 + $0x18] sm:$0xff]
    %v231 = vld [vmem:[%s226 + $0x20] sm:$0xff]
    %v232 = vld [vmem:[%s226 + $0x28] sm:$0xff]
    %v233 = vld [vmem:[%s226 + $0x30] sm:$0xff]
    %v234 = vld [vmem:[%s226 + $0x38] sm:$0xff]
    %v235 = vld [vmem:[%s226 + $0x40] sm:$0xff]
    %v236 = vld [vmem:[%s226 + $0x48] sm:$0x3]
    %v237 = vstv %s225
    %v238 = vmul.f32 %v237, %v227
    %v239 = vmul.f32 %v237, %v228
    %v240 = vmul.f32 %v237, %v229
    %v241 = vmul.f32 %v237, %v230
    %v242 = vmul.f32 %v237, %v231
    %v243 = vmul.f32 %v237, %v232
    %v244 = vmul.f32 %v237, %v233
    %v245 = vmul.f32 %v237, %v234
    %v246 = vmul.f32 %v237, %v235
    %v247 = vmul.f32 %v237, %v236
    %v248 = vadd.f32 %v215, %v238
    %v249 = vadd.f32 %v216, %v239
    %v250 = vadd.f32 %v217, %v240
    %v251 = vadd.f32 %v218, %v241
    %v252 = vadd.f32 %v219, %v242
    %v253 = vadd.f32 %v220, %v243
    %v254 = vadd.f32 %v221, %v244
    %v255 = vadd.f32 %v222, %v245
    %v256 = vadd.f32 %v223, %v246
    %v257 = vadd.f32 %v224, %v247
    %s258 = sld [smem:[#allocation5 + $0x6]]
    %s259 = scalar_lea.vmem %s1, 480
    %v260 = vld [vmem:[%s259] sm:$0xff]
    %v261 = vld [vmem:[%s259 + $0x8] sm:$0xff]
    %v262 = vld [vmem:[%s259 + $0x10] sm:$0xff]
    %v263 = vld [vmem:[%s259 + $0x18] sm:$0xff]
    %v264 = vld [vmem:[%s259 + $0x20] sm:$0xff]
    %v265 = vld [vmem:[%s259 + $0x28] sm:$0xff]
    %v266 = vld [vmem:[%s259 + $0x30] sm:$0xff]
    %v267 = vld [vmem:[%s259 + $0x38] sm:$0xff]
    %v268 = vld [vmem:[%s259 + $0x40] sm:$0xff]
    %v269 = vld [vmem:[%s259 + $0x48] sm:$0x3]
    %v270 = vstv %s258
    %v271 = vmul.f32 %v270, %v260
    %v272 = vmul.f32 %v270, %v261
    %v273 = vmul.f32 %v270, %v262
    %v274 = vmul.f32 %v270, %v263
    %v275 = vmul.f32 %v270, %v264
    %v276 = vmul.f32 %v270, %v265
    %v277 = vmul.f32 %v270, %v266
    %v278 = vmul.f32 %v270, %v267
    %v279 = vmul.f32 %v270, %v268
    %v280 = vmul.f32 %v270, %v269
    %v281 = vadd.f32 %v248, %v271
    %v282 = vadd.f32 %v249, %v272
    %v283 = vadd.f32 %v250, %v273
    %v284 = vadd.f32 %v251, %v274
    %v285 = vadd.f32 %v252, %v275
    %v286 = vadd.f32 %v253, %v276
    %v287 = vadd.f32 %v254, %v277
    %v288 = vadd.f32 %v255, %v278
    %v289 = vadd.f32 %v256, %v279
    %v290 = vadd.f32 %v257, %v280
    %s291 = sld [smem:[#allocation5 + $0x7]]
    %s292 = scalar_lea.vmem %s1, 560
    %v293 = vld [vmem:[%s292] sm:$0xff]
    %v294 = vld [vmem:[%s292 + $0x8] sm:$0xff]
    %v295 = vld [vmem:[%s292 + $0x10] sm:$0xff]
    %v296 = vld [vmem:[%s292 + $0x18] sm:$0xff]
    %v297 = vld [vmem:[%s292 + $0x20] sm:$0xff]
    %v298 = vld [vmem:[%s292 + $0x28] sm:$0xff]
    %v299 = vld [vmem:[%s292 + $0x30] sm:$0xff]
    %v300 = vld [vmem:[%s292 + $0x38] sm:$0xff]
    %v301 = vld [vmem:[%s292 + $0x40] sm:$0xff]
    %v302 = vld [vmem:[%s292 + $0x48] sm:$0x3]
    %v303 = vstv %s291
    %v304 = vmul.f32 %v303, %v293
    %v305 = vmul.f32 %v303, %v294
    %v306 = vmul.f32 %v303, %v295
    %v307 = vmul.f32 %v303, %v296
    %v308 = vmul.f32 %v303, %v297
    %v309 = vmul.f32 %v303, %v298
    %v310 = vmul.f32 %v303, %v299
    %v311 = vmul.f32 %v303, %v300
    %v312 = vmul.f32 %v303, %v301
    %v313 = vmul.f32 %v303, %v302
    %v314 = vadd.f32 %v281, %v304
    %v315 = vadd.f32 %v282, %v305
    %v316 = vadd.f32 %v283, %v306
    %v317 = vadd.f32 %v284, %v307
    %v318 = vadd.f32 %v285, %v308
    %v319 = vadd.f32 %v286, %v309
    %v320 = vadd.f32 %v287, %v310
    %v321 = vadd.f32 %v288, %v311
    %v322 = vadd.f32 %v289, %v312
    %v323 = vadd.f32 %v290, %v313
    %s324 = sld [smem:[#allocation5 + $0x8]]
    %s325 = scalar_lea.vmem %s1, 640
    %v326 = vld [vmem:[%s325] sm:$0xff]
    %v327 = vld [vmem:[%s325 + $0x8] sm:$0xff]
    %v328 = vld [vmem:[%s325 + $0x10] sm:$0xff]
    %v329 = vld [vmem:[%s325 + $0x18] sm:$0xff]
    %v330 = vld [vmem:[%s325 + $0x20] sm:$0xff]
    %v331 = vld [vmem:[%s325 + $0x28] sm:$0xff]
    %v332 = vld [vmem:[%s325 + $0x30] sm:$0xff]
    %v333 = vld [vmem:[%s325 + $0x38] sm:$0xff]
    %v334 = vld [vmem:[%s325 + $0x40] sm:$0xff]
    %v335 = vld [vmem:[%s325 + $0x48] sm:$0x3]
    %v336 = vstv %s324
    %v337 = vmul.f32 %v336, %v326
    %v338 = vmul.f32 %v336, %v327
    %v339 = vmul.f32 %v336, %v328
    %v340 = vmul.f32 %v336, %v329
    %v341 = vmul.f32 %v336, %v330
    %v342 = vmul.f32 %v336, %v331
    %v343 = vmul.f32 %v336, %v332
    %v344 = vmul.f32 %v336, %v333
    %v345 = vmul.f32 %v336, %v334
    %v346 = vmul.f32 %v336, %v335
    %v347 = vadd.f32 %v314, %v337
    %v348 = vadd.f32 %v315, %v338
    %v349 = vadd.f32 %v316, %v339
    %v350 = vadd.f32 %v317, %v340
    %v351 = vadd.f32 %v318, %v341
    %v352 = vadd.f32 %v319, %v342
    %v353 = vadd.f32 %v320, %v343
    %v354 = vadd.f32 %v321, %v344
    %v355 = vadd.f32 %v322, %v345
    %v356 = vadd.f32 %v323, %v346
    %s357 = sld [smem:[#allocation5 + $0x9]]
    %s358 = scalar_lea.vmem %s1, 720
    %v359 = vld [vmem:[%s358] sm:$0xff]
    %v360 = vld [vmem:[%s358 + $0x8] sm:$0xff]
    %v361 = vld [vmem:[%s358 + $0x10] sm:$0xff]
    %v362 = vld [vmem:[%s358 + $0x18] sm:$0xff]
    %v363 = vld [vmem:[%s358 + $0x20] sm:$0xff]
    %v364 = vld [vmem:[%s358 + $0x28] sm:$0xff]
    %v365 = vld [vmem:[%s358 + $0x30] sm:$0xff]
    %v366 = vld [vmem:[%s358 + $0x38] sm:$0xff]
    %v367 = vld [vmem:[%s358 + $0x40] sm:$0xff]
    %v368 = vld [vmem:[%s358 + $0x48] sm:$0x3]
    %v369 = vstv %s357
    %v370 = vmul.f32 %v369, %v359
    %v371 = vmul.f32 %v369, %v360
    %v372 = vmul.f32 %v369, %v361
    %v373 = vmul.f32 %v369, %v362
    %v374 = vmul.f32 %v369, %v363
    %v375 = vmul.f32 %v369, %v364
    %v376 = vmul.f32 %v369, %v365
    %v377 = vmul.f32 %v369, %v366
    %v378 = vmul.f32 %v369, %v367
    %v379 = vmul.f32 %v369, %v368
    %v380 = vadd.f32 %v347, %v370
    %v381 = vadd.f32 %v348, %v371
    %v382 = vadd.f32 %v349, %v372
    %v383 = vadd.f32 %v350, %v373
    %v384 = vadd.f32 %v351, %v374
    %v385 = vadd.f32 %v352, %v375
    %v386 = vadd.f32 %v353, %v376
    %v387 = vadd.f32 %v354, %v377
    %v388 = vadd.f32 %v355, %v378
    %v389 = vadd.f32 %v356, %v379
    %s390 = sld [smem:[#allocation5 + $0xa]]
    %s391 = scalar_lea.vmem %s1, 800
    %v392 = vld [vmem:[%s391] sm:$0xff]
    %v393 = vld [vmem:[%s391 + $0x8] sm:$0xff]
    %v394 = vld [vmem:[%s391 + $0x10] sm:$0xff]
    %v395 = vld [vmem:[%s391 + $0x18] sm:$0xff]
    %v396 = vld [vmem:[%s391 + $0x20] sm:$0xff]
    %v397 = vld [vmem:[%s391 + $0x28] sm:$0xff]
    %v398 = vld [vmem:[%s391 + $0x30] sm:$0xff]
    %v399 = vld [vmem:[%s391 + $0x38] sm:$0xff]
    %v400 = vld [vmem:[%s391 + $0x40] sm:$0xff]
    %v401 = vld [vmem:[%s391 + $0x48] sm:$0x3]
    %v402 = vstv %s390
    %v403 = vmul.f32 %v402, %v392
    %v404 = vmul.f32 %v402, %v393
    %v405 = vmul.f32 %v402, %v394
    %v406 = vmul.f32 %v402, %v395
    %v407 = vmul.f32 %v402, %v396
    %v408 = vmul.f32 %v402, %v397
    %v409 = vmul.f32 %v402, %v398
    %v410 = vmul.f32 %v402, %v399
    %v411 = vmul.f32 %v402, %v400
    %v412 = vmul.f32 %v402, %v401
    %v413 = vadd.f32 %v380, %v403
    %v414 = vadd.f32 %v381, %v404
    %v415 = vadd.f32 %v382, %v405
    %v416 = vadd.f32 %v383, %v406
    %v417 = vadd.f32 %v384, %v407
    %v418 = vadd.f32 %v385, %v408
    %v419 = vadd.f32 %v386, %v409
    %v420 = vadd.f32 %v387, %v410
    %v421 = vadd.f32 %v388, %v411
    %v422 = vadd.f32 %v389, %v412
    %s423 = sld [smem:[#allocation5 + $0xb]]
    %s424 = scalar_lea.vmem %s1, 880
    %v425 = vld [vmem:[%s424] sm:$0xff]
    %v426 = vld [vmem:[%s424 + $0x8] sm:$0xff]
    %v427 = vld [vmem:[%s424 + $0x10] sm:$0xff]
    %v428 = vld [vmem:[%s424 + $0x18] sm:$0xff]
    %v429 = vld [vmem:[%s424 + $0x20] sm:$0xff]
    %v430 = vld [vmem:[%s424 + $0x28] sm:$0xff]
    %v431 = vld [vmem:[%s424 + $0x30] sm:$0xff]
    %v432 = vld [vmem:[%s424 + $0x38] sm:$0xff]
    %v433 = vld [vmem:[%s424 + $0x40] sm:$0xff]
    %v434 = vld [vmem:[%s424 + $0x48] sm:$0x3]
    %v435 = vstv %s423
    %v436 = vmul.f32 %v435, %v425
    %v437 = vmul.f32 %v435, %v426
    %v438 = vmul.f32 %v435, %v427
    %v439 = vmul.f32 %v435, %v428
    %v440 = vmul.f32 %v435, %v429
    %v441 = vmul.f32 %v435, %v430
    %v442 = vmul.f32 %v435, %v431
    %v443 = vmul.f32 %v435, %v432
    %v444 = vmul.f32 %v435, %v433
    %v445 = vmul.f32 %v435, %v434
    %v446 = vadd.f32 %v413, %v436
    %v447 = vadd.f32 %v414, %v437
    %v448 = vadd.f32 %v415, %v438
    %v449 = vadd.f32 %v416, %v439
    %v450 = vadd.f32 %v417, %v440
    %v451 = vadd.f32 %v418, %v441
    %v452 = vadd.f32 %v419, %v442
    %v453 = vadd.f32 %v420, %v443
    %v454 = vadd.f32 %v421, %v444
    %v455 = vadd.f32 %v422, %v445
    %v456 = vmax.f32 %v446, 0.0
    %v457 = vmax.f32 %v447, 0.0
    %v458 = vmax.f32 %v448, 0.0
    %v459 = vmax.f32 %v449, 0.0
    %v460 = vmax.f32 %v450, 0.0
    %v461 = vmax.f32 %v451, 0.0
    %v462 = vmax.f32 %v452, 0.0
    %v463 = vmax.f32 %v453, 0.0
    %v464 = vmax.f32 %v454, 0.0
    %v465 = vmax.f32 %v455, 0.0
    %v466 = vld [vmem:[%s4] sm:$0x1]
    %v468 = vlaneseq
    %v469 = vshrl.u32 %v468, 7
    %v470 = vsub.s32 0, %v469
    %v471 = vrot.slane %v466, %v470
    %vm473 = vcmask 64512
    %474 = vst.msk [vmem:[#allocation2] sm:$0xff] %vm473, %v471
    %475 = vst.msk [vmem:[#allocation2 + $0x8] sm:$0xff] %vm473, %v471
    %476 = vst.msk [vmem:[#allocation2 + $0x10] sm:$0xff] %vm473, %v471
    %477 = vst.msk [vmem:[#allocation2 + $0x18] sm:$0xff] %vm473, %v471
    %478 = vst.msk [vmem:[#allocation2 + $0x20] sm:$0xff] %vm473, %v471
    %479 = vst.msk [vmem:[#allocation2 + $0x28] sm:$0xff] %vm473, %v471
    %480 = vst.msk [vmem:[#allocation2 + $0x30] sm:$0xff] %vm473, %v471
    %481 = vst.msk [vmem:[#allocation2 + $0x38] sm:$0xff] %vm473, %v471
    %482 = vst.msk [vmem:[#allocation2 + $0x40] sm:$0xff] %vm473, %v471
    %vm483 = vcmask 60416
    %484 = vst.msk [vmem:[#allocation2 + $0x48] sm:$0xf] %vm483, %v471
    %v485 = vld [vmem:[%s3] sm:$0xff]
    %v486 = vld [vmem:[%s3 + $0x8] sm:$0xf]
    %vm487 = vcmask 97280
    %v489 = vsel %vm487, %v456, 0
    %v492 = vsel %vm487, %v457, 0
    %v495 = vsel %vm487, %v458, 0
    %v498 = vsel %vm487, %v459, 0
    %v501 = vsel %vm487, %v460, 0
    %v504 = vsel %vm487, %v461, 0
    %v507 = vsel %vm487, %v462, 0
    %v510 = vsel %vm487, %v463, 0
    %v513 = vsel %vm487, %v464, 0
    %v516 = vsel %vm487, %v465, 0
    %vm518 = vcmask 1043456
    %v520 = vsel %vm518, %v486, 0
    %522 = vmatprep.subr.mxu0 0.0
    %523 = vmatpush1.msra.mxu0 %v485
    %524 = vmatprep.subr.mxu0 0.0
    %525 = vmatpush1.msra.mxu0 %v520
    %526 = vmatprep.subr.mxu0 0.0
    %527 = vmatpush1.msra.mxu0 0.0
    %528 = vmatprep.subr.mxu0 0.0
    %529 = vmatpush1.msra.mxu0 0.0
    %530 = vmatprep.subr.mxu0 0.0
    %531 = vmatpush1.msra.mxu0 0.0
    %532 = vmatprep.subr.mxu0 0.0
    %533 = vmatpush1.msra.mxu0 0.0
    %534 = vmatprep.subr.mxu0 0.0
    %535 = vmatpush1.msra.mxu0 0.0
    %536 = vmatprep.subr.mxu0 0.0
    %537 = vmatpush1.msra.mxu0 0.0
    %538 = vmatprep.subr.mxu0 0.0
    %539 = vmatpush1.msra.mxu0 0.0
    %540 = vmatprep.subr.mxu0 0.0
    %541 = vmatpush1.msra.mxu0 0.0
    %542 = vmatprep.subr.mxu0 0.0
    %543 = vmatpush1.msra.mxu0 0.0
    %544 = vmatprep.subr.mxu0 0.0
    %545 = vmatpush1.msra.mxu0 0.0
    %546 = vmatprep.subr.mxu0 0.0
    %547 = vmatpush1.msra.mxu0 0.0
    %548 = vmatprep.subr.mxu0 0.0
    %549 = vmatpush1.msra.mxu0 0.0
    %550 = vmatprep.subr.mxu0 0.0
    %551 = vmatpush1.msra.mxu0 0.0
    %552 = vmatprep.subr.mxu0 0.0
    %553 = vmatpush1.msra.mxu0 0.0
    %554 = vmatprep.subr.mxu0 0.0
    %555 = vmatpush1.msra.mxu0 0.0
    %556 = vmatprep.subr.mxu0 0.0
    %557 = vmatpush1.msra.mxu0 0.0
    %558 = vmatprep.subr.mxu0 0.0
    %559 = vmatpush1.msra.mxu0 0.0
    %560 = vmatprep.subr.mxu0 0.0
    %561 = vmatpush1.msra.mxu0 0.0
    %562 = vmatprep.subr.mxu0 0.0
    %563 = vmatpush1.msra.mxu0 0.0
    %564 = vmatprep.subr.mxu0 0.0
    %565 = vmatpush1.msra.mxu0 0.0
    %566 = vmatprep.subr.mxu0 0.0
    %567 = vmatpush1.msra.mxu0 0.0
    %568 = vmatprep.subr.mxu0 0.0
    %569 = vmatpush1.msra.mxu0 0.0
    %570 = vmatprep.subr.mxu0 0.0
    %571 = vmatpush1.msra.mxu0 0.0
    %572 = vmatprep.subr.mxu0 0.0
    %573 = vmatpush1.msra.mxu0 0.0
    %574 = vmatprep.subr.mxu0 0.0
    %575 = vmatpush1.msra.mxu0 0.0
    %576 = vmatprep.subr.mxu0 0.0
    %577 = vmatpush1.msra.mxu0 0.0
    %578 = vmatprep.subr.mxu0 0.0
    %579 = vmatpush1.msra.mxu0 0.0
    %580 = vmatprep.subr.mxu0 0.0
    %581 = vmatpush1.msra.mxu0 0.0
    %582 = vmatprep.subr.mxu0 0.0
    %583 = vmatpush1.msra.mxu0 0.0
    %584 = vmatprep.subr.mxu0 0.0
    %585 = vmatpush1.msra.mxu0 0.0
    %586 = vmatprep.mubr.f32.mxu0 0.0
    %587 = vmatmul.mubr.f32.gmra.mrb[0].mxu0 %v489
    %v588 = vpop.f32.mrb[0].mxu0
    %v589 = vadd.f32 0.0, %v588
    %v590 = vpop.f32.mrb[0].mxu0
    %591 = vmatprep.mubr.f32.mxu0 0.0
    %592 = vmatmul.mubr.f32.gmra.mrb[0].mxu0 %v492
    %v593 = vpop.f32.mrb[0].mxu0
    %v594 = vadd.f32 0.0, %v593
    %v595 = vpop.f32.mrb[0].mxu0
    %596 = vmatprep.mubr.f32.mxu0 0.0
    %597 = vmatmul.mubr.f32.gmra.mrb[0].mxu0 %v495
    %v598 = vpop.f32.mrb[0].mxu0
    %v599 = vadd.f32 0.0, %v598
    %v600 = vpop.f32.mrb[0].mxu0
    %601 = vmatprep.mubr.f32.mxu0 0.0
    %602 = vmatmul.mubr.f32.gmra.mrb[0].mxu0 %v498
    %v603 = vpop.f32.mrb[0].mxu0
    %v604 = vadd.f32 0.0, %v603
    %v605 = vpop.f32.mrb[0].mxu0
    %606 = vmatprep.mubr.f32.mxu0 0.0
    %607 = vmatmul.mubr.f32.gmra.mrb[0].mxu0 %v501
    %v608 = vpop.f32.mrb[0].mxu0
    %v609 = vadd.f32 0.0, %v608
    %v610 = vpop.f32.mrb[0].mxu0
    %611 = vmatprep.mubr.f32.mxu0 0.0
    %612 = vmatmul.mubr.f32.gmra.mrb[0].mxu0 %v504
    %v613 = vpop.f32.mrb[0].mxu0
    %v614 = vadd.f32 0.0, %v613
    %v615 = vpop.f32.mrb[0].mxu0
    %616 = vmatprep.mubr.f32.mxu0 0.0
    %617 = vmatmul.mubr.f32.gmra.mrb[0].mxu0 %v507
    %v618 = vpop.f32.mrb[0].mxu0
    %v619 = vadd.f32 0.0, %v618
    %v620 = vpop.f32.mrb[0].mxu0
    %621 = vmatprep.mubr.f32.mxu0 0.0
    %622 = vmatmul.mubr.f32.gmra.mrb[0].mxu0 %v510
    %v623 = vpop.f32.mrb[0].mxu0
    %v624 = vadd.f32 0.0, %v623
    %v625 = vpop.f32.mrb[0].mxu0
    %626 = vmatprep.mubr.f32.mxu0 0.0
    %627 = vmatmul.mubr.f32.gmra.mrb[0].mxu0 %v513
    %v628 = vpop.f32.mrb[0].mxu0
    %v629 = vadd.f32 0.0, %v628
    %v630 = vpop.f32.mrb[0].mxu0
    %631 = vmatprep.mubr.f32.mxu0 0.0
    %632 = vmatmul.mubr.f32.gmra.mrb[0].mxu0 %v516
    %v633 = vpop.f32.mrb[0].mxu0
    %v634 = vadd.f32 0.0, %v633
    %v635 = vpop.f32.mrb[0].mxu0
    %636 = vdwg.mxu0
    %v637 = vld [vmem:[#allocation2] sm:$0xff]
    %v638 = vld [vmem:[#allocation2 + $0x8] sm:$0xff]
    %v639 = vld [vmem:[#allocation2 + $0x10] sm:$0xff]
    %v640 = vld [vmem:[#allocation2 + $0x18] sm:$0xff]
    %v641 = vld [vmem:[#allocation2 + $0x20] sm:$0xff]
    %v642 = vld [vmem:[#allocation2 + $0x28] sm:$0xff]
    %v643 = vld [vmem:[#allocation2 + $0x30] sm:$0xff]
    %v644 = vld [vmem:[#allocation2 + $0x38] sm:$0xff]
    %v645 = vld [vmem:[#allocation2 + $0x40] sm:$0xff]
    %v646 = vld [vmem:[#allocation2 + $0x48] sm:$0x3]
    %v647 = vadd.f32 %v637, %v589
    %v648 = vadd.f32 %v638, %v594
    %v649 = vadd.f32 %v639, %v599
    %v650 = vadd.f32 %v640, %v604
    %v651 = vadd.f32 %v641, %v609
    %v652 = vadd.f32 %v642, %v614
    %v653 = vadd.f32 %v643, %v619
    %v654 = vadd.f32 %v644, %v624
    %v655 = vadd.f32 %v645, %v629
    %v656 = vadd.f32 %v646, %v634
    %657 = vst.msk [vmem:[#allocation2] sm:$0xff] %vm473, %v647
    %658 = vst.msk [vmem:[#allocation2 + $0x8] sm:$0xff] %vm473, %v648
    %659 = vst.msk [vmem:[#allocation2 + $0x10] sm:$0xff] %vm473, %v649
    %660 = vst.msk [vmem:[#allocation2 + $0x18] sm:$0xff] %vm473, %v650
    %661 = vst.msk [vmem:[#allocation2 + $0x20] sm:$0xff] %vm473, %v651
    %662 = vst.msk [vmem:[#allocation2 + $0x28] sm:$0xff] %vm473, %v652
    %663 = vst.msk [vmem:[#allocation2 + $0x30] sm:$0xff] %vm473, %v653
    %664 = vst.msk [vmem:[#allocation2 + $0x38] sm:$0xff] %vm473, %v654
    %665 = vst.msk [vmem:[#allocation2 + $0x40] sm:$0xff] %vm473, %v655
    %vm666 = vcmask 58368
    %667 = vst.msk [vmem:[#allocation2 + $0x48] sm:$0x3] %vm666, %v656
    %s668 = scalar_lea.vmem %s3, 16
    %v669 = vld [vmem:[%s668] sm:$0xff]
    %v670 = vld [vmem:[%s668 + $0x8] sm:$0xf]
    %v672 = vsel %vm518, %v670, 0
    %674 = vmatprep.subr.mxu0 0.0
    %675 = vmatpush1.msra.mxu0 %v669
    %676 = vmatprep.subr.mxu0 0.0
    %677 = vmatpush1.msra.mxu0 %v672
    %678 = vmatprep.subr.mxu0 0.0
    %679 = vmatpush1.msra.mxu0 0.0
    %680 = vmatprep.subr.mxu0 0.0
    %681 = vmatpush1.msra.mxu0 0.0
    %682 = vmatprep.subr.mxu0 0.0
    %683 = vmatpush1.msra.mxu0 0.0
    %684 = vmatprep.subr.mxu0 0.0
    %685 = vmatpush1.msra.mxu0 0.0
    %686 = vmatprep.subr.mxu0 0.0
    %687 = vmatpush1.msra.mxu0 0.0
    %688 = vmatprep.subr.mxu0 0.0
    %689 = vmatpush1.msra.mxu0 0.0
    %690 = vmatprep.subr.mxu0 0.0
    %691 = vmatpush1.msra.mxu0 0.0
    %692 = vmatprep.subr.mxu0 0.0
    %693 = vmatpush1.msra.mxu0 0.0
    %694 = vmatprep.subr.mxu0 0.0
    %695 = vmatpush1.msra.mxu0 0.0
    %696 = vmatprep.subr.mxu0 0.0
    %697 = vmatpush1.msra.mxu0 0.0
    %698 = vmatprep.subr.mxu0 0.0
    %699 = vmatpush1.msra.mxu0 0.0
    %700 = vmatprep.subr.mxu0 0.0
    %701 = vmatpush1.msra.mxu0 0.0
    %702 = vmatprep.subr.mxu0 0.0
    %703 = vmatpush1.msra.mxu0 0.0
    %704 = vmatprep.subr.mxu0 0.0
    %705 = vmatpush1.msra.mxu0 0.0
    %706 = vmatprep.subr.mxu0 0.0
    %707 = vmatpush1.msra.mxu0 0.0
    %708 = vmatprep.subr.mxu0 0.0
    %709 = vmatpush1.msra.mxu0 0.0
    %710 = vmatprep.subr.mxu0 0.0
    %711 = vmatpush1.msra.mxu0 0.0
    %712 = vmatprep.subr.mxu0 0.0
    %713 = vmatpush1.msra.mxu0 0.0
    %714 = vmatprep.subr.mxu0 0.0
    %715 = vmatpush1.msra.mxu0 0.0
    %716 = vmatprep.subr.mxu0 0.0
    %717 = vmatpush1.msra.mxu0 0.0
    %718 = vmatprep.subr.mxu0 0.0
    %719 = vmatpush1.msra.mxu0 0.0
    %720 = vmatprep.subr.mxu0 0.0
    %721 = vmatpush1.msra.mxu0 0.0
    %722 = vmatprep.subr.mxu0 0.0
    %723 = vmatpush1.msra.mxu0 0.0
    %724 = vmatprep.subr.mxu0 0.0
    %725 = vmatpush1.msra.mxu0 0.0
    %726 = vmatprep.subr.mxu0 0.0
    %727 = vmatpush1.msra.mxu0 0.0
    %728 = vmatprep.subr.mxu0 0.0
    %729 = vmatpush1.msra.mxu0 0.0
    %730 = vmatprep.subr.mxu0 0.0
    %731 = vmatpush1.msra.mxu0 0.0
    %732 = vmatprep.subr.mxu0 0.0
    %733 = vmatpush1.msra.mxu0 0.0
    %734 = vmatprep.subr.mxu0 0.0
    %735 = vmatpush1.msra.mxu0 0.0
    %736 = vmatprep.subr.mxu0 0.0
    %737 = vmatpush1.msra.mxu0 0.0
    %738 = vmatprep.mubr.f32.mxu0 0.0
    %739 = vmatmul.mubr.f32.gmra.mrb[0].mxu0 %v489
    %v740 = vpop.f32.mrb[0].mxu0
    %v741 = vadd.f32 0.0, %v740
    %v742 = vpop.f32.mrb[0].mxu0
    %743 = vmatprep.mubr.f32.mxu0 0.0
    %744 = vmatmul.mubr.f32.gmra.mrb[0].mxu0 %v492
    %v745 = vpop.f32.mrb[0].mxu0
    %v746 = vadd.f32 0.0, %v745
    %v747 = vpop.f32.mrb[0].mxu0
    %748 = vmatprep.mubr.f32.mxu0 0.0
    %749 = vmatmul.mubr.f32.gmra.mrb[0].mxu0 %v495
    %v750 = vpop.f32.mrb[0].mxu0
    %v751 = vadd.f32 0.0, %v750
    %v752 = vpop.f32.mrb[0].mxu0
    %753 = vmatprep.mubr.f32.mxu0 0.0
    %754 = vmatmul.mubr.f32.gmra.mrb[0].mxu0 %v498
    %v755 = vpop.f32.mrb[0].mxu0
    %v756 = vadd.f32 0.0, %v755
    %v757 = vpop.f32.mrb[0].mxu0
    %758 = vmatprep.mubr.f32.mxu0 0.0
    %759 = vmatmul.mubr.f32.gmra.mrb[0].mxu0 %v501
    %v760 = vpop.f32.mrb[0].mxu0
    %v761 = vadd.f32 0.0, %v760
    %v762 = vpop.f32.mrb[0].mxu0
    %763 = vmatprep.mubr.f32.mxu0 0.0
    %764 = vmatmul.mubr.f32.gmra.mrb[0].mxu0 %v504
    %v765 = vpop.f32.mrb[0].mxu0
    %v766 = vadd.f32 0.0, %v765
    %v767 = vpop.f32.mrb[0].mxu0
    %768 = vmatprep.mubr.f32.mxu0 0.0
    %769 = vmatmul.mubr.f32.gmra.mrb[0].mxu0 %v507
    %v770 = vpop.f32.mrb[0].mxu0
    %v771 = vadd.f32 0.0, %v770
    %v772 = vpop.f32.mrb[0].mxu0
    %773 = vmatprep.mubr.f32.mxu0 0.0
    %774 = vmatmul.mubr.f32.gmra.mrb[0].mxu0 %v510
    %v775 = vpop.f32.mrb[0].mxu0
    %v776 = vadd.f32 0.0, %v775
    %v777 = vpop.f32.mrb[0].mxu0
    %778 = vmatprep.mubr.f32.mxu0 0.0
    %779 = vmatmul.mubr.f32.gmra.mrb[0].mxu0 %v513
    %v780 = vpop.f32.mrb[0].mxu0
    %v781 = vadd.f32 0.0, %v780
    %v782 = vpop.f32.mrb[0].mxu0
    %783 = vmatprep.mubr.f32.mxu0 0.0
    %784 = vmatmul.mubr.f32.gmra.mrb[0].mxu0 %v516
    %v785 = vpop.f32.mrb[0].mxu0
    %v786 = vadd.f32 0.0, %v785
    %v787 = vpop.f32.mrb[0].mxu0
    %788 = vdwg.mxu0
    %v789 = vld [vmem:[#allocation2 + $0x1] sm:$0xff]
    %v790 = vld [vmem:[#allocation2 + $0x9] sm:$0xff]
    %v791 = vld [vmem:[#allocation2 + $0x11] sm:$0xff]
    %v792 = vld [vmem:[#allocation2 + $0x19] sm:$0xff]
    %v793 = vld [vmem:[#allocation2 + $0x21] sm:$0xff]
    %v794 = vld [vmem:[#allocation2 + $0x29] sm:$0xff]
    %v795 = vld [vmem:[#allocation2 + $0x31] sm:$0xff]
    %v796 = vld [vmem:[#allocation2 + $0x39] sm:$0xff]
    %v797 = vld [vmem:[#allocation2 + $0x41] sm:$0xff]
    %v798 = vld [vmem:[#allocation2 + $0x49] sm:$0x3]
    %v799 = vadd.f32 %v789, %v741
    %v800 = vadd.f32 %v790, %v746
    %v801 = vadd.f32 %v791, %v751
    %v802 = vadd.f32 %v792, %v756
    %v803 = vadd.f32 %v793, %v761
    %v804 = vadd.f32 %v794, %v766
    %v805 = vadd.f32 %v795, %v771
    %v806 = vadd.f32 %v796, %v776
    %v807 = vadd.f32 %v797, %v781
    %v808 = vadd.f32 %v798, %v786
    %809 = vst.msk [vmem:[#allocation2 + $0x1] sm:$0xff] %vm473, %v799
    %810 = vst.msk [vmem:[#allocation2 + $0x9] sm:$0xff] %vm473, %v800
    %811 = vst.msk [vmem:[#allocation2 + $0x11] sm:$0xff] %vm473, %v801
    %812 = vst.msk [vmem:[#allocation2 + $0x19] sm:$0xff] %vm473, %v802
    %813 = vst.msk [vmem:[#allocation2 + $0x21] sm:$0xff] %vm473, %v803
    %814 = vst.msk [vmem:[#allocation2 + $0x29] sm:$0xff] %vm473, %v804
    %815 = vst.msk [vmem:[#allocation2 + $0x31] sm:$0xff] %vm473, %v805
    %816 = vst.msk [vmem:[#allocation2 + $0x39] sm:$0xff] %vm473, %v806
    %817 = vst.msk [vmem:[#allocation2 + $0x41] sm:$0xff] %vm473, %v807
    %818 = vst.msk [vmem:[#allocation2 + $0x49] sm:$0x3] %vm666, %v808
    %s819 = scalar_lea.vmem %s3, 32
    %v820 = vld [vmem:[%s819] sm:$0xff]
    %v821 = vld [vmem:[%s819 + $0x8] sm:$0xf]
    %v823 = vsel %vm518, %v821, 0
    %825 = vmatprep.subr.mxu0 0.0
    %826 = vmatpush1.msra.mxu0 %v820
    %827 = vmatprep.subr.mxu0 0.0
    %828 = vmatpush1.msra.mxu0 %v823
    %829 = vmatprep.subr.mxu0 0.0
    %830 = vmatpush1.msra.mxu0 0.0
    %831 = vmatprep.subr.mxu0 0.0
    %832 = vmatpush1.msra.mxu0 0.0
    %833 = vmatprep.subr.mxu0 0.0
    %834 = vmatpush1.msra.mxu0 0.0
    %835 = vmatprep.subr.mxu0 0.0
    %836 = vmatpush1.msra.mxu0 0.0
    %837 = vmatprep.subr.mxu0 0.0
    %838 = vmatpush1.msra.mxu0 0.0
    %839 = vmatprep.subr.mxu0 0.0
    %840 = vmatpush1.msra.mxu0 0.0
    %841 = vmatprep.subr.mxu0 0.0
    %842 = vmatpush1.msra.mxu0 0.0
    %843 = vmatprep.subr.mxu0 0.0
    %844 = vmatpush1.msra.mxu0 0.0
    %845 = vmatprep.subr.mxu0 0.0
    %846 = vmatpush1.msra.mxu0 0.0
    %847 = vmatprep.subr.mxu0 0.0
    %848 = vmatpush1.msra.mxu0 0.0
    %849 = vmatprep.subr.mxu0 0.0
    %850 = vmatpush1.msra.mxu0 0.0
    %851 = vmatprep.subr.mxu0 0.0
    %852 = vmatpush1.msra.mxu0 0.0
    %853 = vmatprep.subr.mxu0 0.0
    %854 = vmatpush1.msra.mxu0 0.0
    %855 = vmatprep.subr.mxu0 0.0
    %856 = vmatpush1.msra.mxu0 0.0
    %857 = vmatprep.subr.mxu0 0.0
    %858 = vmatpush1.msra.mxu0 0.0
    %859 = vmatprep.subr.mxu0 0.0
    %860 = vmatpush1.msra.mxu0 0.0
    %861 = vmatprep.subr.mxu0 0.0
    %862 = vmatpush1.msra.mxu0 0.0
    %863 = vmatprep.subr.mxu0 0.0
    %864 = vmatpush1.msra.mxu0 0.0
    %865 = vmatprep.subr.mxu0 0.0
    %866 = vmatpush1.msra.mxu0 0.0
    %867 = vmatprep.subr.mxu0 0.0
    %868 = vmatpush1.msra.mxu0 0.0
    %869 = vmatprep.subr.mxu0 0.0
    %870 = vmatpush1.msra.mxu0 0.0
    %871 = vmatprep.subr.mxu0 0.0
    %872 = vmatpush1.msra.mxu0 0.0
    %873 = vmatprep.subr.mxu0 0.0
    %874 = vmatpush1.msra.mxu0 0.0
    %875 = vmatprep.subr.mxu0 0.0
    %876 = vmatpush1.msra.mxu0 0.0
    %877 = vmatprep.subr.mxu0 0.0
    %878 = vmatpush1.msra.mxu0 0.0
    %879 = vmatprep.subr.mxu0 0.0
    %880 = vmatpush1.msra.mxu0 0.0
    %881 = vmatprep.subr.mxu0 0.0
    %882 = vmatpush1.msra.mxu0 0.0
    %883 = vmatprep.subr.mxu0 0.0
    %884 = vmatpush1.msra.mxu0 0.0
    %885 = vmatprep.subr.mxu0 0.0
    %886 = vmatpush1.msra.mxu0 0.0
    %887 = vmatprep.subr.mxu0 0.0
    %888 = vmatpush1.msra.mxu0 0.0
    %889 = vmatprep.mubr.f32.mxu0 0.0
    %890 = vmatmul.mubr.f32.gmra.mrb[0].mxu0 %v489
    %v891 = vpop.f32.mrb[0].mxu0
    %v892 = vadd.f32 0.0, %v891
    %v893 = vpop.f32.mrb[0].mxu0
    %894 = vmatprep.mubr.f32.mxu0 0.0
    %895 = vmatmul.mubr.f32.gmra.mrb[0].mxu0 %v492
    %v896 = vpop.f32.mrb[0].mxu0
    %v897 = vadd.f32 0.0, %v896
    %v898 = vpop.f32.mrb[0].mxu0
    %899 = vmatprep.mubr.f32.mxu0 0.0
    %900 = vmatmul.mubr.f32.gmra.mrb[0].mxu0 %v495
    %v901 = vpop.f32.mrb[0].mxu0
    %v902 = vadd.f32 0.0, %v901
    %v903 = vpop.f32.mrb[0].mxu0
    %904 = vmatprep.mubr.f32.mxu0 0.0
    %905 = vmatmul.mubr.f32.gmra.mrb[0].mxu0 %v498
    %v906 = vpop.f32.mrb[0].mxu0
    %v907 = vadd.f32 0.0, %v906
    %v908 = vpop.f32.mrb[0].mxu0
    %909 = vmatprep.mubr.f32.mxu0 0.0
    %910 = vmatmul.mubr.f32.gmra.mrb[0].mxu0 %v501
    %v911 = vpop.f32.mrb[0].mxu0
    %v912 = vadd.f32 0.0, %v911
    %v913 = vpop.f32.mrb[0].mxu0
    %914 = vmatprep.mubr.f32.mxu0 0.0
    %915 = vmatmul.mubr.f32.gmra.mrb[0].mxu0 %v504
    %v916 = vpop.f32.mrb[0].mxu0
    %v917 = vadd.f32 0.0, %v916
    %v918 = vpop.f32.mrb[0].mxu0
    %919 = vmatprep.mubr.f32.mxu0 0.0
    %920 = vmatmul.mubr.f32.gmra.mrb[0].mxu0 %v507
    %v921 = vpop.f32.mrb[0].mxu0
    %v922 = vadd.f32 0.0, %v921
    %v923 = vpop.f32.mrb[0].mxu0
    %924 = vmatprep.mubr.f32.mxu0 0.0
    %925 = vmatmul.mubr.f32.gmra.mrb[0].mxu0 %v510
    %v926 = vpop.f32.mrb[0].mxu0
    %v927 = vadd.f32 0.0, %v926
    %v928 = vpop.f32.mrb[0].mxu0
    %929 = vmatprep.mubr.f32.mxu0 0.0
    %930 = vmatmul.mubr.f32.gmra.mrb[0].mxu0 %v513
    %v931 = vpop.f32.mrb[0].mxu0
    %v932 = vadd.f32 0.0, %v931
    %v933 = vpop.f32.mrb[0].mxu0
    %934 = vmatprep.mubr.f32.mxu0 0.0
    %935 = vmatmul.mubr.f32.gmra.mrb[0].mxu0 %v516
    %v936 = vpop.f32.mrb[0].mxu0
    %v937 = vadd.f32 0.0, %v936
    %v938 = vpop.f32.mrb[0].mxu0
    %939 = vdwg.mxu0
    %v940 = vld [vmem:[#allocation2 + $0x2] sm:$0xff]
    %v941 = vld [vmem:[#allocation2 + $0xa] sm:$0xff]
    %v942 = vld [vmem:[#allocation2 + $0x12] sm:$0xff]
    %v943 = vld [vmem:[#allocation2 + $0x1a] sm:$0xff]
    %v944 = vld [vmem:[#allocation2 + $0x22] sm:$0xff]
    %v945 = vld [vmem:[#allocation2 + $0x2a] sm:$0xff]
    %v946 = vld [vmem:[#allocation2 + $0x32] sm:$0xff]
    %v947 = vld [vmem:[#allocation2 + $0x3a] sm:$0xff]
    %v948 = vld [vmem:[#allocation2 + $0x42] sm:$0xff]
    %v949 = vld [vmem:[#allocation2 + $0x4a] sm:$0x3]
    %v950 = vadd.f32 %v940, %v892
    %v951 = vadd.f32 %v941, %v897
    %v952 = vadd.f32 %v942, %v902
    %v953 = vadd.f32 %v943, %v907
    %v954 = vadd.f32 %v944, %v912
    %v955 = vadd.f32 %v945, %v917
    %v956 = vadd.f32 %v946, %v922
    %v957 = vadd.f32 %v947, %v927
    %v958 = vadd.f32 %v948, %v932
    %v959 = vadd.f32 %v949, %v937
    %960 = vst.msk [vmem:[#allocation2 + $0x2] sm:$0xff] %vm473, %v950
    %961 = vst.msk [vmem:[#allocation2 + $0xa] sm:$0xff] %vm473, %v951
    %962 = vst.msk [vmem:[#allocation2 + $0x12] sm:$0xff] %vm473, %v952
    %963 = vst.msk [vmem:[#allocation2 + $0x1a] sm:$0xff] %vm473, %v953
    %964 = vst.msk [vmem:[#allocation2 + $0x22] sm:$0xff] %vm473, %v954
    %965 = vst.msk [vmem:[#allocation2 + $0x2a] sm:$0xff] %vm473, %v955
    %966 = vst.msk [vmem:[#allocation2 + $0x32] sm:$0xff] %vm473, %v956
    %967 = vst.msk [vmem:[#allocation2 + $0x3a] sm:$0xff] %vm473, %v957
    %968 = vst.msk [vmem:[#allocation2 + $0x42] sm:$0xff] %vm473, %v958
    %969 = vst.msk [vmem:[#allocation2 + $0x4a] sm:$0x3] %vm666, %v959
    %v970 = vld [vmem:[#allocation2] sm:$0xff]
    %v971 = vld [vmem:[#allocation2 + $0x8] sm:$0xff]
    %v972 = vld [vmem:[#allocation2 + $0x10] sm:$0xff]
    %v973 = vld [vmem:[#allocation2 + $0x18] sm:$0xff]
    %v974 = vld [vmem:[#allocation2 + $0x20] sm:$0xff]
    %v975 = vld [vmem:[#allocation2 + $0x28] sm:$0xff]
    %v976 = vld [vmem:[#allocation2 + $0x30] sm:$0xff]
    %v977 = vld [vmem:[#allocation2 + $0x38] sm:$0xff]
    %v978 = vld [vmem:[#allocation2 + $0x40] sm:$0xff]
    %v979 = vld [vmem:[#allocation2 + $0x48] sm:$0xf]
    %v980 = vmax.f32 %v970, 0.0
    %v981 = vmax.f32 %v971, 0.0
    %v982 = vmax.f32 %v972, 0.0
    %v983 = vmax.f32 %v973, 0.0
    %v984 = vmax.f32 %v974, 0.0
    %v985 = vmax.f32 %v975, 0.0
    %v986 = vmax.f32 %v976, 0.0
    %v987 = vmax.f32 %v977, 0.0
    %v988 = vmax.f32 %v978, 0.0
    %v989 = vmax.f32 %v979, 0.0
    %v990 = vld [vmem:[%s6] sm:$0x1]
    %v992 = vlaneseq
    %v993 = vshrl.u32 %v992, 7
    %v994 = vsub.s32 0, %v993
    %v995 = vrot.slane %v990, %v994
    %vm997 = vcmask 31744
    %998 = vst.msk [vmem:[#allocation3] sm:$0xff] %vm997, %v995
    %999 = vst.msk [vmem:[#allocation3 + $0x8] sm:$0xff] %vm997, %v995
    %1000 = vst.msk [vmem:[#allocation3 + $0x10] sm:$0xff] %vm997, %v995
    %1001 = vst.msk [vmem:[#allocation3 + $0x18] sm:$0xff] %vm997, %v995
    %1002 = vst.msk [vmem:[#allocation3 + $0x20] sm:$0xff] %vm997, %v995
    %1003 = vst.msk [vmem:[#allocation3 + $0x28] sm:$0xff] %vm997, %v995
    %1004 = vst.msk [vmem:[#allocation3 + $0x30] sm:$0xff] %vm997, %v995
    %1005 = vst.msk [vmem:[#allocation3 + $0x38] sm:$0xff] %vm997, %v995
    %1006 = vst.msk [vmem:[#allocation3 + $0x40] sm:$0xff] %vm997, %v995
    %vm1007 = vcmask 29696
    %1008 = vst.msk [vmem:[#allocation3 + $0x48] sm:$0x3f] %vm1007, %v995
    %v1009 = vld [vmem:[%s5] sm:$0xff]
    %v1011 = vsel %vm473, %v980, 0
    %v1014 = vsel %vm473, %v981, 0
    %v1017 = vsel %vm473, %v982, 0
    %v1020 = vsel %vm473, %v983, 0
    %v1023 = vsel %vm473, %v984, 0
    %v1026 = vsel %vm473, %v985, 0
    %v1029 = vsel %vm473, %v986, 0
    %v1032 = vsel %vm473, %v987, 0
    %v1035 = vsel %vm473, %v988, 0
    %v1038 = vsel %vm473, %v989, 0
    %1040 = vmatprep.subr.mxu0 0.0
    %1041 = vmatpush1.msra.mxu0 %v1009
    %1042 = vmatprep.subr.mxu0 0.0
    %1043 = vmatpush1.msra.mxu0 0.0
    %1044 = vmatprep.subr.mxu0 0.0
    %1045 = vmatpush1.msra.mxu0 0.0
    %1046 = vmatprep.subr.mxu0 0.0
    %1047 = vmatpush1.msra.mxu0 0.0
    %1048 = vmatprep.subr.mxu0 0.0
    %1049 = vmatpush1.msra.mxu0 0.0
    %1050 = vmatprep.subr.mxu0 0.0
    %1051 = vmatpush1.msra.mxu0 0.0
    %1052 = vmatprep.subr.mxu0 0.0
    %1053 = vmatpush1.msra.mxu0 0.0
    %1054 = vmatprep.subr.mxu0 0.0
    %1055 = vmatpush1.msra.mxu0 0.0
    %1056 = vmatprep.subr.mxu0 0.0
    %1057 = vmatpush1.msra.mxu0 0.0
    %1058 = vmatprep.subr.mxu0 0.0
    %1059 = vmatpush1.msra.mxu0 0.0
    %1060 = vmatprep.subr.mxu0 0.0
    %1061 = vmatpush1.msra.mxu0 0.0
    %1062 = vmatprep.subr.mxu0 0.0
    %1063 = vmatpush1.msra.mxu0 0.0
    %1064 = vmatprep.subr.mxu0 0.0
    %1065 = vmatpush1.msra.mxu0 0.0
    %1066 = vmatprep.subr.mxu0 0.0
    %1067 = vmatpush1.msra.mxu0 0.0
    %1068 = vmatprep.subr.mxu0 0.0
    %1069 = vmatpush1.msra.mxu0 0.0
    %1070 = vmatprep.subr.mxu0 0.0
    %1071 = vmatpush1.msra.mxu0 0.0
    %1072 = vmatprep.subr.mxu0 0.0
    %1073 = vmatpush1.msra.mxu0 0.0
    %1074 = vmatprep.subr.mxu0 0.0
    %1075 = vmatpush1.msra.mxu0 0.0
    %1076 = vmatprep.subr.mxu0 0.0
    %1077 = vmatpush1.msra.mxu0 0.0
    %1078 = vmatprep.subr.mxu0 0.0
    %1079 = vmatpush1.msra.mxu0 0.0
    %1080 = vmatprep.subr.mxu0 0.0
    %1081 = vmatpush1.msra.mxu0 0.0
    %1082 = vmatprep.subr.mxu0 0.0
    %1083 = vmatpush1.msra.mxu0 0.0
    %1084 = vmatprep.subr.mxu0 0.0
    %1085 = vmatpush1.msra.mxu0 0.0
    %1086 = vmatprep.subr.mxu0 0.0
    %1087 = vmatpush1.msra.mxu0 0.0
    %1088 = vmatprep.subr.mxu0 0.0
    %1089 = vmatpush1.msra.mxu0 0.0
    %1090 = vmatprep.subr.mxu0 0.0
    %1091 = vmatpush1.msra.mxu0 0.0
    %1092 = vmatprep.subr.mxu0 0.0
    %1093 = vmatpush1.msra.mxu0 0.0
    %1094 = vmatprep.subr.mxu0 0.0
    %1095 = vmatpush1.msra.mxu0 0.0
    %1096 = vmatprep.subr.mxu0 0.0
    %1097 = vmatpush1.msra.mxu0 0.0
    %1098 = vmatprep.subr.mxu0 0.0
    %1099 = vmatpush1.msra.mxu0 0.0
    %1100 = vmatprep.subr.mxu0 0.0
    %1101 = vmatpush1.msra.mxu0 0.0
    %1102 = vmatprep.subr.mxu0 0.0
    %1103 = vmatpush1.msra.mxu0 0.0
    %1104 = vmatprep.mubr.f32.mxu0 0.0
    %1105 = vmatmul.mubr.f32.gmra.mrb[0].mxu0 %v1011
    %v1106 = vpop.f32.mrb[0].mxu0
    %v1107 = vadd.f32 0.0, %v1106
    %v1108 = vpop.f32.mrb[0].mxu0
    %1109 = vmatprep.mubr.f32.mxu0 0.0
    %1110 = vmatmul.mubr.f32.gmra.mrb[0].mxu0 %v1014
    %v1111 = vpop.f32.mrb[0].mxu0
    %v1112 = vadd.f32 0.0, %v1111
    %v1113 = vpop.f32.mrb[0].mxu0
    %1114 = vmatprep.mubr.f32.mxu0 0.0
    %1115 = vmatmul.mubr.f32.gmra.mrb[0].mxu0 %v1017
    %v1116 = vpop.f32.mrb[0].mxu0
    %v1117 = vadd.f32 0.0, %v1116
    %v1118 = vpop.f32.mrb[0].mxu0
    %1119 = vmatprep.mubr.f32.mxu0 0.0
    %1120 = vmatmul.mubr.f32.gmra.mrb[0].mxu0 %v1020
    %v1121 = vpop.f32.mrb[0].mxu0
    %v1122 = vadd.f32 0.0, %v1121
    %v1123 = vpop.f32.mrb[0].mxu0
    %1124 = vmatprep.mubr.f32.mxu0 0.0
    %1125 = vmatmul.mubr.f32.gmra.mrb[0].mxu0 %v1023
    %v1126 = vpop.f32.mrb[0].mxu0
    %v1127 = vadd.f32 0.0, %v1126
    %v1128 = vpop.f32.mrb[0].mxu0
    %1129 = vmatprep.mubr.f32.mxu0 0.0
    %1130 = vmatmul.mubr.f32.gmra.mrb[0].mxu0 %v1026
    %v1131 = vpop.f32.mrb[0].mxu0
    %v1132 = vadd.f32 0.0, %v1131
    %v1133 = vpop.f32.mrb[0].mxu0
    %1134 = vmatprep.mubr.f32.mxu0 0.0
    %1135 = vmatmul.mubr.f32.gmra.mrb[0].mxu0 %v1029
    %v1136 = vpop.f32.mrb[0].mxu0
    %v1137 = vadd.f32 0.0, %v1136
    %v1138 = vpop.f32.mrb[0].mxu0
    %1139 = vmatprep.mubr.f32.mxu0 0.0
    %1140 = vmatmul.mubr.f32.gmra.mrb[0].mxu0 %v1032
    %v1141 = vpop.f32.mrb[0].mxu0
    %v1142 = vadd.f32 0.0, %v1141
    %v1143 = vpop.f32.mrb[0].mxu0
    %1144 = vmatprep.mubr.f32.mxu0 0.0
    %1145 = vmatmul.mubr.f32.gmra.mrb[0].mxu0 %v1035
    %v1146 = vpop.f32.mrb[0].mxu0
    %v1147 = vadd.f32 0.0, %v1146
    %v1148 = vpop.f32.mrb[0].mxu0
    %1149 = vmatprep.mubr.f32.mxu0 0.0
    %1150 = vmatmul.mubr.f32.gmra.mrb[0].mxu0 %v1038
    %v1151 = vpop.f32.mrb[0].mxu0
    %v1152 = vadd.f32 0.0, %v1151
    %v1153 = vpop.f32.mrb[0].mxu0
    %1154 = vdwg.mxu0
    %v1155 = vld [vmem:[#allocation3] sm:$0xff]
    %v1156 = vld [vmem:[#allocation3 + $0x8] sm:$0xff]
    %v1157 = vld [vmem:[#allocation3 + $0x10] sm:$0xff]
    %v1158 = vld [vmem:[#allocation3 + $0x18] sm:$0xff]
    %v1159 = vld [vmem:[#allocation3 + $0x20] sm:$0xff]
    %v1160 = vld [vmem:[#allocation3 + $0x28] sm:$0xff]
    %v1161 = vld [vmem:[#allocation3 + $0x30] sm:$0xff]
    %v1162 = vld [vmem:[#allocation3 + $0x38] sm:$0xff]
    %v1163 = vld [vmem:[#allocation3 + $0x40] sm:$0xff]
    %v1164 = vld [vmem:[#allocation3 + $0x48] sm:$0xf]
    %v1165 = vadd.f32 %v1155, %v1107
    %v1166 = vadd.f32 %v1156, %v1112
    %v1167 = vadd.f32 %v1157, %v1117
    %v1168 = vadd.f32 %v1158, %v1122
    %v1169 = vadd.f32 %v1159, %v1127
    %v1170 = vadd.f32 %v1160, %v1132
    %v1171 = vadd.f32 %v1161, %v1137
    %v1172 = vadd.f32 %v1162, %v1142
    %v1173 = vadd.f32 %v1163, %v1147
    %v1174 = vadd.f32 %v1164, %v1152
    %1175 = vst.msk [vmem:[#allocation3] sm:$0xff] %vm997, %v1165
    %1176 = vst.msk [vmem:[#allocation3 + $0x8] sm:$0xff] %vm997, %v1166
    %1177 = vst.msk [vmem:[#allocation3 + $0x10] sm:$0xff] %vm997, %v1167
    %1178 = vst.msk [vmem:[#allocation3 + $0x18] sm:$0xff] %vm997, %v1168
    %1179 = vst.msk [vmem:[#allocation3 + $0x20] sm:$0xff] %vm997, %v1169
    %1180 = vst.msk [vmem:[#allocation3 + $0x28] sm:$0xff] %vm997, %v1170
    %1181 = vst.msk [vmem:[#allocation3 + $0x30] sm:$0xff] %vm997, %v1171
    %1182 = vst.msk [vmem:[#allocation3 + $0x38] sm:$0xff] %vm997, %v1172
    %1183 = vst.msk [vmem:[#allocation3 + $0x40] sm:$0xff] %vm997, %v1173
    %vm1184 = vcmask 27648
    %1185 = vst.msk [vmem:[#allocation3 + $0x48] sm:$0xf] %vm1184, %v1174
    %s1186 = scalar_lea.vmem %s5, 8
    %v1187 = vld [vmem:[%s1186] sm:$0xff]
    %1188 = vmatprep.subr.mxu0 0.0
    %1189 = vmatpush1.msra.mxu0 %v1187
    %1190 = vmatprep.subr.mxu0 0.0
    %1191 = vmatpush1.msra.mxu0 0.0
    %1192 = vmatprep.subr.mxu0 0.0
    %1193 = vmatpush1.msra.mxu0 0.0
    %1194 = vmatprep.subr.mxu0 0.0
    %1195 = vmatpush1.msra.mxu0 0.0
    %1196 = vmatprep.subr.mxu0 0.0
    %1197 = vmatpush1.msra.mxu0 0.0
    %1198 = vmatprep.subr.mxu0 0.0
    %1199 = vmatpush1.msra.mxu0 0.0
    %1200 = vmatprep.subr.mxu0 0.0
    %1201 = vmatpush1.msra.mxu0 0.0
    %1202 = vmatprep.subr.mxu0 0.0
    %1203 = vmatpush1.msra.mxu0 0.0
    %1204 = vmatprep.subr.mxu0 0.0
    %1205 = vmatpush1.msra.mxu0 0.0
    %1206 = vmatprep.subr.mxu0 0.0
    %1207 = vmatpush1.msra.mxu0 0.0
    %1208 = vmatprep.subr.mxu0 0.0
    %1209 = vmatpush1.msra.mxu0 0.0
    %1210 = vmatprep.subr.mxu0 0.0
    %1211 = vmatpush1.msra.mxu0 0.0
    %1212 = vmatprep.subr.mxu0 0.0
    %1213 = vmatpush1.msra.mxu0 0.0
    %1214 = vmatprep.subr.mxu0 0.0
    %1215 = vmatpush1.msra.mxu0 0.0
    %1216 = vmatprep.subr.mxu0 0.0
    %1217 = vmatpush1.msra.mxu0 0.0
    %1218 = vmatprep.subr.mxu0 0.0
    %1219 = vmatpush1.msra.mxu0 0.0
    %1220 = vmatprep.subr.mxu0 0.0
    %1221 = vmatpush1.msra.mxu0 0.0
    %1222 = vmatprep.subr.mxu0 0.0
    %1223 = vmatpush1.msra.mxu0 0.0
    %1224 = vmatprep.subr.mxu0 0.0
    %1225 = vmatpush1.msra.mxu0 0.0
    %1226 = vmatprep.subr.mxu0 0.0
    %1227 = vmatpush1.msra.mxu0 0.0
    %1228 = vmatprep.subr.mxu0 0.0
    %1229 = vmatpush1.msra.mxu0 0.0
    %1230 = vmatprep.subr.mxu0 0.0
    %1231 = vmatpush1.msra.mxu0 0.0
    %1232 = vmatprep.subr.mxu0 0.0
    %1233 = vmatpush1.msra.mxu0 0.0
    %1234 = vmatprep.subr.mxu0 0.0
    %1235 = vmatpush1.msra.mxu0 0.0
    %1236 = vmatprep.subr.mxu0 0.0
    %1237 = vmatpush1.msra.mxu0 0.0
    %1238 = vmatprep.subr.mxu0 0.0
    %1239 = vmatpush1.msra.mxu0 0.0
    %1240 = vmatprep.subr.mxu0 0.0
    %1241 = vmatpush1.msra.mxu0 0.0
    %1242 = vmatprep.subr.mxu0 0.0
    %1243 = vmatpush1.msra.mxu0 0.0
    %1244 = vmatprep.subr.mxu0 0.0
    %1245 = vmatpush1.msra.mxu0 0.0
    %1246 = vmatprep.subr.mxu0 0.0
    %1247 = vmatpush1.msra.mxu0 0.0
    %1248 = vmatprep.subr.mxu0 0.0
    %1249 = vmatpush1.msra.mxu0 0.0
    %1250 = vmatprep.subr.mxu0 0.0
    %1251 = vmatpush1.msra.mxu0 0.0
    %1252 = vmatprep.mubr.f32.mxu0 0.0
    %1253 = vmatmul.mubr.f32.gmra.mrb[0].mxu0 %v1011
    %v1254 = vpop.f32.mrb[0].mxu0
    %v1255 = vadd.f32 0.0, %v1254
    %v1256 = vpop.f32.mrb[0].mxu0
    %1257 = vmatprep.mubr.f32.mxu0 0.0
    %1258 = vmatmul.mubr.f32.gmra.mrb[0].mxu0 %v1014
    %v1259 = vpop.f32.mrb[0].mxu0
    %v1260 = vadd.f32 0.0, %v1259
    %v1261 = vpop.f32.mrb[0].mxu0
    %1262 = vmatprep.mubr.f32.mxu0 0.0
    %1263 = vmatmul.mubr.f32.gmra.mrb[0].mxu0 %v1017
    %v1264 = vpop.f32.mrb[0].mxu0
    %v1265 = vadd.f32 0.0, %v1264
    %v1266 = vpop.f32.mrb[0].mxu0
    %1267 = vmatprep.mubr.f32.mxu0 0.0
    %1268 = vmatmul.mubr.f32.gmra.mrb[0].mxu0 %v1020
    %v1269 = vpop.f32.mrb[0].mxu0
    %v1270 = vadd.f32 0.0, %v1269
    %v1271 = vpop.f32.mrb[0].mxu0
    %1272 = vmatprep.mubr.f32.mxu0 0.0
    %1273 = vmatmul.mubr.f32.gmra.mrb[0].mxu0 %v1023
    %v1274 = vpop.f32.mrb[0].mxu0
    %v1275 = vadd.f32 0.0, %v1274
    %v1276 = vpop.f32.mrb[0].mxu0
    %1277 = vmatprep.mubr.f32.mxu0 0.0
    %1278 = vmatmul.mubr.f32.gmra.mrb[0].mxu0 %v1026
    %v1279 = vpop.f32.mrb[0].mxu0
    %v1280 = vadd.f32 0.0, %v1279
    %v1281 = vpop.f32.mrb[0].mxu0
    %1282 = vmatprep.mubr.f32.mxu0 0.0
    %1283 = vmatmul.mubr.f32.gmra.mrb[0].mxu0 %v1029
    %v1284 = vpop.f32.mrb[0].mxu0
    %v1285 = vadd.f32 0.0, %v1284
    %v1286 = vpop.f32.mrb[0].mxu0
    %1287 = vmatprep.mubr.f32.mxu0 0.0
    %1288 = vmatmul.mubr.f32.gmra.mrb[0].mxu0 %v1032
    %v1289 = vpop.f32.mrb[0].mxu0
    %v1290 = vadd.f32 0.0, %v1289
    %v1291 = vpop.f32.mrb[0].mxu0
    %1292 = vmatprep.mubr.f32.mxu0 0.0
    %1293 = vmatmul.mubr.f32.gmra.mrb[0].mxu0 %v1035
    %v1294 = vpop.f32.mrb[0].mxu0
    %v1295 = vadd.f32 0.0, %v1294
    %v1296 = vpop.f32.mrb[0].mxu0
    %1297 = vmatprep.mubr.f32.mxu0 0.0
    %1298 = vmatmul.mubr.f32.gmra.mrb[0].mxu0 %v1038
    %v1299 = vpop.f32.mrb[0].mxu0
    %v1300 = vadd.f32 0.0, %v1299
    %v1301 = vpop.f32.mrb[0].mxu0
    %1302 = vdwg.mxu0
    %v1303 = vld [vmem:[#allocation3 + $0x1] sm:$0xff]
    %v1304 = vld [vmem:[#allocation3 + $0x9] sm:$0xff]
    %v1305 = vld [vmem:[#allocation3 + $0x11] sm:$0xff]
    %v1306 = vld [vmem:[#allocation3 + $0x19] sm:$0xff]
    %v1307 = vld [vmem:[#allocation3 + $0x21] sm:$0xff]
    %v1308 = vld [vmem:[#allocation3 + $0x29] sm:$0xff]
    %v1309 = vld [vmem:[#allocation3 + $0x31] sm:$0xff]
    %v1310 = vld [vmem:[#allocation3 + $0x39] sm:$0xff]
    %v1311 = vld [vmem:[#allocation3 + $0x41] sm:$0xff]
    %v1312 = vld [vmem:[#allocation3 + $0x49] sm:$0xf]
    %v1313 = vadd.f32 %v1303, %v1255
    %v1314 = vadd.f32 %v1304, %v1260
    %v1315 = vadd.f32 %v1305, %v1265
    %v1316 = vadd.f32 %v1306, %v1270
    %v1317 = vadd.f32 %v1307, %v1275
    %v1318 = vadd.f32 %v1308, %v1280
    %v1319 = vadd.f32 %v1309, %v1285
    %v1320 = vadd.f32 %v1310, %v1290
    %v1321 = vadd.f32 %v1311, %v1295
    %v1322 = vadd.f32 %v1312, %v1300
    %1323 = vst.msk [vmem:[#allocation3 + $0x1] sm:$0xff] %vm997, %v1313
    %1324 = vst.msk [vmem:[#allocation3 + $0x9] sm:$0xff] %vm997, %v1314
    %1325 = vst.msk [vmem:[#allocation3 + $0x11] sm:$0xff] %vm997, %v1315
    %1326 = vst.msk [vmem:[#allocation3 + $0x19] sm:$0xff] %vm997, %v1316
    %1327 = vst.msk [vmem:[#allocation3 + $0x21] sm:$0xff] %vm997, %v1317
    %1328 = vst.msk [vmem:[#allocation3 + $0x29] sm:$0xff] %vm997, %v1318
    %1329 = vst.msk [vmem:[#allocation3 + $0x31] sm:$0xff] %vm997, %v1319
    %1330 = vst.msk [vmem:[#allocation3 + $0x39] sm:$0xff] %vm997, %v1320
    %1331 = vst.msk [vmem:[#allocation3 + $0x41] sm:$0xff] %vm997, %v1321
    %1332 = vst.msk [vmem:[#allocation3 + $0x49] sm:$0xf] %vm1184, %v1322
    %s1333 = scalar_lea.vmem %s5, 16
    %v1334 = vld [vmem:[%s1333] sm:$0xff]
    %1335 = vmatprep.subr.mxu0 0.0
    %1336 = vmatpush1.msra.mxu0 %v1334
    %1337 = vmatprep.subr.mxu0 0.0
    %1338 = vmatpush1.msra.mxu0 0.0
    %1339 = vmatprep.subr.mxu0 0.0
    %1340 = vmatpush1.msra.mxu0 0.0
    %1341 = vmatprep.subr.mxu0 0.0
    %1342 = vmatpush1.msra.mxu0 0.0
    %1343 = vmatprep.subr.mxu0 0.0
    %1344 = vmatpush1.msra.mxu0 0.0
    %1345 = vmatprep.subr.mxu0 0.0
    %1346 = vmatpush1.msra.mxu0 0.0
    %1347 = vmatprep.subr.mxu0 0.0
    %1348 = vmatpush1.msra.mxu0 0.0
    %1349 = vmatprep.subr.mxu0 0.0
    %1350 = vmatpush1.msra.mxu0 0.0
    %1351 = vmatprep.subr.mxu0 0.0
    %1352 = vmatpush1.msra.mxu0 0.0
    %1353 = vmatprep.subr.mxu0 0.0
    %1354 = vmatpush1.msra.mxu0 0.0
    %1355 = vmatprep.subr.mxu0 0.0
    %1356 = vmatpush1.msra.mxu0 0.0
    %1357 = vmatprep.subr.mxu0 0.0
    %1358 = vmatpush1.msra.mxu0 0.0
    %1359 = vmatprep.subr.mxu0 0.0
    %1360 = vmatpush1.msra.mxu0 0.0
    %1361 = vmatprep.subr.mxu0 0.0
    %1362 = vmatpush1.msra.mxu0 0.0
    %1363 = vmatprep.subr.mxu0 0.0
    %1364 = vmatpush1.msra.mxu0 0.0
    %1365 = vmatprep.subr.mxu0 0.0
    %1366 = vmatpush1.msra.mxu0 0.0
    %1367 = vmatprep.subr.mxu0 0.0
    %1368 = vmatpush1.msra.mxu0 0.0
    %1369 = vmatprep.subr.mxu0 0.0
    %1370 = vmatpush1.msra.mxu0 0.0
    %1371 = vmatprep.subr.mxu0 0.0
    %1372 = vmatpush1.msra.mxu0 0.0
    %1373 = vmatprep.subr.mxu0 0.0
    %1374 = vmatpush1.msra.mxu0 0.0
    %1375 = vmatprep.subr.mxu0 0.0
    %1376 = vmatpush1.msra.mxu0 0.0
    %1377 = vmatprep.subr.mxu0 0.0
    %1378 = vmatpush1.msra.mxu0 0.0
    %1379 = vmatprep.subr.mxu0 0.0
    %1380 = vmatpush1.msra.mxu0 0.0
    %1381 = vmatprep.subr.mxu0 0.0
    %1382 = vmatpush1.msra.mxu0 0.0
    %1383 = vmatprep.subr.mxu0 0.0
    %1384 = vmatpush1.msra.mxu0 0.0
    %1385 = vmatprep.subr.mxu0 0.0
    %1386 = vmatpush1.msra.mxu0 0.0
    %1387 = vmatprep.subr.mxu0 0.0
    %1388 = vmatpush1.msra.mxu0 0.0
    %1389 = vmatprep.subr.mxu0 0.0
    %1390 = vmatpush1.msra.mxu0 0.0
    %1391 = vmatprep.subr.mxu0 0.0
    %1392 = vmatpush1.msra.mxu0 0.0
    %1393 = vmatprep.subr.mxu0 0.0
    %1394 = vmatpush1.msra.mxu0 0.0
    %1395 = vmatprep.subr.mxu0 0.0
    %1396 = vmatpush1.msra.mxu0 0.0
    %1397 = vmatprep.subr.mxu0 0.0
    %1398 = vmatpush1.msra.mxu0 0.0
    %1399 = vmatprep.mubr.f32.mxu0 0.0
    %1400 = vmatmul.mubr.f32.gmra.mrb[0].mxu0 %v1011
    %v1401 = vpop.f32.mrb[0].mxu0
    %v1402 = vadd.f32 0.0, %v1401
    %v1403 = vpop.f32.mrb[0].mxu0
    %1404 = vmatprep.mubr.f32.mxu0 0.0
    %1405 = vmatmul.mubr.f32.gmra.mrb[0].mxu0 %v1014
    %v1406 = vpop.f32.mrb[0].mxu0
    %v1407 = vadd.f32 0.0, %v1406
    %v1408 = vpop.f32.mrb[0].mxu0
    %1409 = vmatprep.mubr.f32.mxu0 0.0
    %1410 = vmatmul.mubr.f32.gmra.mrb[0].mxu0 %v1017
    %v1411 = vpop.f32.mrb[0].mxu0
    %v1412 = vadd.f32 0.0, %v1411
    %v1413 = vpop.f32.mrb[0].mxu0
    %1414 = vmatprep.mubr.f32.mxu0 0.0
    %1415 = vmatmul.mubr.f32.gmra.mrb[0].mxu0 %v1020
    %v1416 = vpop.f32.mrb[0].mxu0
    %v1417 = vadd.f32 0.0, %v1416
    %v1418 = vpop.f32.mrb[0].mxu0
    %1419 = vmatprep.mubr.f32.mxu0 0.0
    %1420 = vmatmul.mubr.f32.gmra.mrb[0].mxu0 %v1023
    %v1421 = vpop.f32.mrb[0].mxu0
    %v1422 = vadd.f32 0.0, %v1421
    %v1423 = vpop.f32.mrb[0].mxu0
    %1424 = vmatprep.mubr.f32.mxu0 0.0
    %1425 = vmatmul.mubr.f32.gmra.mrb[0].mxu0 %v1026
    %v1426 = vpop.f32.mrb[0].mxu0
    %v1427 = vadd.f32 0.0, %v1426
    %v1428 = vpop.f32.mrb[0].mxu0
    %1429 = vmatprep.mubr.f32.mxu0 0.0
    %1430 = vmatmul.mubr.f32.gmra.mrb[0].mxu0 %v1029
    %v1431 = vpop.f32.mrb[0].mxu0
    %v1432 = vadd.f32 0.0, %v1431
    %v1433 = vpop.f32.mrb[0].mxu0
    %1434 = vmatprep.mubr.f32.mxu0 0.0
    %1435 = vmatmul.mubr.f32.gmra.mrb[0].mxu0 %v1032
    %v1436 = vpop.f32.mrb[0].mxu0
    %v1437 = vadd.f32 0.0, %v1436
    %v1438 = vpop.f32.mrb[0].mxu0
    %1439 = vmatprep.mubr.f32.mxu0 0.0
    %1440 = vmatmul.mubr.f32.gmra.mrb[0].mxu0 %v1035
    %v1441 = vpop.f32.mrb[0].mxu0
    %v1442 = vadd.f32 0.0, %v1441
    %v1443 = vpop.f32.mrb[0].mxu0
    %1444 = vmatprep.mubr.f32.mxu0 0.0
    %1445 = vmatmul.mubr.f32.gmra.mrb[0].mxu0 %v1038
    %v1446 = vpop.f32.mrb[0].mxu0
    %v1447 = vadd.f32 0.0, %v1446
    %v1448 = vpop.f32.mrb[0].mxu0
    %1449 = vdwg.mxu0
    %v1450 = vld [vmem:[#allocation3 + $0x2] sm:$0xff]
    %v1451 = vld [vmem:[#allocation3 + $0xa] sm:$0xff]
    %v1452 = vld [vmem:[#allocation3 + $0x12] sm:$0xff]
    %v1453 = vld [vmem:[#allocation3 + $0x1a] sm:$0xff]
    %v1454 = vld [vmem:[#allocation3 + $0x22] sm:$0xff]
    %v1455 = vld [vmem:[#allocation3 + $0x2a] sm:$0xff]
    %v1456 = vld [vmem:[#allocation3 + $0x32] sm:$0xff]
    %v1457 = vld [vmem:[#allocation3 + $0x3a] sm:$0xff]
    %v1458 = vld [vmem:[#allocation3 + $0x42] sm:$0xff]
    %v1459 = vld [vmem:[#allocation3 + $0x4a] sm:$0xf]
    %v1460 = vadd.f32 %v1450, %v1402
    %v1461 = vadd.f32 %v1451, %v1407
    %v1462 = vadd.f32 %v1452, %v1412
    %v1463 = vadd.f32 %v1453, %v1417
    %v1464 = vadd.f32 %v1454, %v1422
    %v1465 = vadd.f32 %v1455, %v1427
    %v1466 = vadd.f32 %v1456, %v1432
    %v1467 = vadd.f32 %v1457, %v1437
    %v1468 = vadd.f32 %v1458, %v1442
    %v1469 = vadd.f32 %v1459, %v1447
    %1470 = vst.msk [vmem:[#allocation3 + $0x2] sm:$0xff] %vm997, %v1460
    %1471 = vst.msk [vmem:[#allocation3 + $0xa] sm:$0xff] %vm997, %v1461
    %1472 = vst.msk [vmem:[#allocation3 + $0x12] sm:$0xff] %vm997, %v1462
    %1473 = vst.msk [vmem:[#allocation3 + $0x1a] sm:$0xff] %vm997, %v1463
    %1474 = vst.msk [vmem:[#allocation3 + $0x22] sm:$0xff] %vm997, %v1464
    %1475 = vst.msk [vmem:[#allocation3 + $0x2a] sm:$0xff] %vm997, %v1465
    %1476 = vst.msk [vmem:[#allocation3 + $0x32] sm:$0xff] %vm997, %v1466
    %1477 = vst.msk [vmem:[#allocation3 + $0x3a] sm:$0xff] %vm997, %v1467
    %1478 = vst.msk [vmem:[#allocation3 + $0x42] sm:$0xff] %vm997, %v1468
    %1479 = vst.msk [vmem:[#allocation3 + $0x4a] sm:$0xf] %vm1184, %v1469
    %v1480 = vld [vmem:[#allocation3] sm:$0xff]
    %v1481 = vld [vmem:[#allocation3 + $0x8] sm:$0xff]
    %v1482 = vld [vmem:[#allocation3 + $0x10] sm:$0xff]
    %v1483 = vld [vmem:[#allocation3 + $0x18] sm:$0xff]
    %v1484 = vld [vmem:[#allocation3 + $0x20] sm:$0xff]
    %v1485 = vld [vmem:[#allocation3 + $0x28] sm:$0xff]
    %v1486 = vld [vmem:[#allocation3 + $0x30] sm:$0xff]
    %v1487 = vld [vmem:[#allocation3 + $0x38] sm:$0xff]
    %v1488 = vld [vmem:[#allocation3 + $0x40] sm:$0xff]
    %v1489 = vld [vmem:[#allocation3 + $0x48] sm:$0x3f]
    %v1490 = vmax.f32 %v1480, 0.0
    %v1491 = vmax.f32 %v1481, 0.0
    %v1492 = vmax.f32 %v1482, 0.0
    %v1493 = vmax.f32 %v1483, 0.0
    %v1494 = vmax.f32 %v1484, 0.0
    %v1495 = vmax.f32 %v1485, 0.0
    %v1496 = vmax.f32 %v1486, 0.0
    %v1497 = vmax.f32 %v1487, 0.0
    %v1498 = vmax.f32 %v1488, 0.0
    %v1499 = vmax.f32 %v1489, 0.0
    %v1500 = vld [vmem:[%s8] sm:$0x1]
    %v1502 = vlaneseq
    %v1503 = vshrl.u32 %v1502, 7
    %v1504 = vsub.s32 0, %v1503
    %v1505 = vrot.slane %v1500, %v1504
    %1507 = vst [vmem:[#allocation4] sm:$0xff] %v1505
    %1508 = vst [vmem:[#allocation4 + $0x8] sm:$0xff] %v1505
    %1509 = vst [vmem:[#allocation4 + $0x10] sm:$0xff] %v1505
    %1510 = vst [vmem:[#allocation4 + $0x18] sm:$0xff] %v1505
    %1511 = vst [vmem:[#allocation4 + $0x20] sm:$0xff] %v1505
    %1512 = vst [vmem:[#allocation4 + $0x28] sm:$0xff] %v1505
    %1513 = vst [vmem:[#allocation4 + $0x30] sm:$0xff] %v1505
    %1514 = vst [vmem:[#allocation4 + $0x38] sm:$0xff] %v1505
    %1515 = vst [vmem:[#allocation4 + $0x40] sm:$0xff] %v1505
    %1516 = vst [vmem:[#allocation4 + $0x48] sm:$0xff] %v1505
    %v1517 = vld [vmem:[%s7] sm:$0xf]
    %v1519 = vsel %vm997, %v1490, 0
    %v1522 = vsel %vm997, %v1491, 0
    %v1525 = vsel %vm997, %v1492, 0
    %v1528 = vsel %vm997, %v1493, 0
    %v1531 = vsel %vm997, %v1494, 0
    %v1534 = vsel %vm997, %v1495, 0
    %v1537 = vsel %vm997, %v1496, 0
    %v1540 = vsel %vm997, %v1497, 0
    %v1543 = vsel %vm997, %v1498, 0
    %v1546 = vsel %vm997, %v1499, 0
    %v1549 = vsel %vm518, %v1517, 0
    %1551 = vmatprep.subr.mxu0 0.0
    %1552 = vmatpush1.msra.mxu0 %v1549
    %1553 = vmatprep.subr.mxu0 0.0
    %1554 = vmatpush1.msra.mxu0 0.0
    %1555 = vmatprep.subr.mxu0 0.0
    %1556 = vmatpush1.msra.mxu0 0.0
    %1557 = vmatprep.subr.mxu0 0.0
    %1558 = vmatpush1.msra.mxu0 0.0
    %1559 = vmatprep.subr.mxu0 0.0
    %1560 = vmatpush1.msra.mxu0 0.0
    %1561 = vmatprep.subr.mxu0 0.0
    %1562 = vmatpush1.msra.mxu0 0.0
    %1563 = vmatprep.subr.mxu0 0.0
    %1564 = vmatpush1.msra.mxu0 0.0
    %1565 = vmatprep.subr.mxu0 0.0
    %1566 = vmatpush1.msra.mxu0 0.0
    %1567 = vmatprep.subr.mxu0 0.0
    %1568 = vmatpush1.msra.mxu0 0.0
    %1569 = vmatprep.subr.mxu0 0.0
    %1570 = vmatpush1.msra.mxu0 0.0
    %1571 = vmatprep.subr.mxu0 0.0
    %1572 = vmatpush1.msra.mxu0 0.0
    %1573 = vmatprep.subr.mxu0 0.0
    %1574 = vmatpush1.msra.mxu0 0.0
    %1575 = vmatprep.subr.mxu0 0.0
    %1576 = vmatpush1.msra.mxu0 0.0
    %1577 = vmatprep.subr.mxu0 0.0
    %1578 = vmatpush1.msra.mxu0 0.0
    %1579 = vmatprep.subr.mxu0 0.0
    %1580 = vmatpush1.msra.mxu0 0.0
    %1581 = vmatprep.subr.mxu0 0.0
    %1582 = vmatpush1.msra.mxu0 0.0
    %1583 = vmatprep.subr.mxu0 0.0
    %1584 = vmatpush1.msra.mxu0 0.0
    %1585 = vmatprep.subr.mxu0 0.0
    %1586 = vmatpush1.msra.mxu0 0.0
    %1587 = vmatprep.subr.mxu0 0.0
    %1588 = vmatpush1.msra.mxu0 0.0
    %1589 = vmatprep.subr.mxu0 0.0
    %1590 = vmatpush1.msra.mxu0 0.0
    %1591 = vmatprep.subr.mxu0 0.0
    %1592 = vmatpush1.msra.mxu0 0.0
    %1593 = vmatprep.subr.mxu0 0.0
    %1594 = vmatpush1.msra.mxu0 0.0
    %1595 = vmatprep.subr.mxu0 0.0
    %1596 = vmatpush1.msra.mxu0 0.0
    %1597 = vmatprep.subr.mxu0 0.0
    %1598 = vmatpush1.msra.mxu0 0.0
    %1599 = vmatprep.subr.mxu0 0.0
    %1600 = vmatpush1.msra.mxu0 0.0
    %1601 = vmatprep.subr.mxu0 0.0
    %1602 = vmatpush1.msra.mxu0 0.0
    %1603 = vmatprep.subr.mxu0 0.0
    %1604 = vmatpush1.msra.mxu0 0.0
    %1605 = vmatprep.subr.mxu0 0.0
    %1606 = vmatpush1.msra.mxu0 0.0
    %1607 = vmatprep.subr.mxu0 0.0
    %1608 = vmatpush1.msra.mxu0 0.0
    %1609 = vmatprep.subr.mxu0 0.0
    %1610 = vmatpush1.msra.mxu0 0.0
    %1611 = vmatprep.subr.mxu0 0.0
    %1612 = vmatpush1.msra.mxu0 0.0
    %1613 = vmatprep.subr.mxu0 0.0
    %1614 = vmatpush1.msra.mxu0 0.0
    %1615 = vmatprep.mubr.f32.mxu0 0.0
    %1616 = vmatmul.mubr.f32.gmra.mrb[0].mxu0 %v1519
    %v1617 = vpop.f32.mrb[0].mxu0
    %v1618 = vadd.f32 0.0, %v1617
    %v1619 = vpop.f32.mrb[0].mxu0
    %1620 = vmatprep.mubr.f32.mxu0 0.0
    %1621 = vmatmul.mubr.f32.gmra.mrb[0].mxu0 %v1522
    %v1622 = vpop.f32.mrb[0].mxu0
    %v1623 = vadd.f32 0.0, %v1622
    %v1624 = vpop.f32.mrb[0].mxu0
    %1625 = vmatprep.mubr.f32.mxu0 0.0
    %1626 = vmatmul.mubr.f32.gmra.mrb[0].mxu0 %v1525
    %v1627 = vpop.f32.mrb[0].mxu0
    %v1628 = vadd.f32 0.0, %v1627
    %v1629 = vpop.f32.mrb[0].mxu0
    %1630 = vmatprep.mubr.f32.mxu0 0.0
    %1631 = vmatmul.mubr.f32.gmra.mrb[0].mxu0 %v1528
    %v1632 = vpop.f32.mrb[0].mxu0
    %v1633 = vadd.f32 0.0, %v1632
    %v1634 = vpop.f32.mrb[0].mxu0
    %1635 = vmatprep.mubr.f32.mxu0 0.0
    %1636 = vmatmul.mubr.f32.gmra.mrb[0].mxu0 %v1531
    %v1637 = vpop.f32.mrb[0].mxu0
    %v1638 = vadd.f32 0.0, %v1637
    %v1639 = vpop.f32.mrb[0].mxu0
    %1640 = vmatprep.mubr.f32.mxu0 0.0
    %1641 = vmatmul.mubr.f32.gmra.mrb[0].mxu0 %v1534
    %v1642 = vpop.f32.mrb[0].mxu0
    %v1643 = vadd.f32 0.0, %v1642
    %v1644 = vpop.f32.mrb[0].mxu0
    %1645 = vmatprep.mubr.f32.mxu0 0.0
    %1646 = vmatmul.mubr.f32.gmra.mrb[0].mxu0 %v1537
    %v1647 = vpop.f32.mrb[0].mxu0
    %v1648 = vadd.f32 0.0, %v1647
    %v1649 = vpop.f32.mrb[0].mxu0
    %1650 = vmatprep.mubr.f32.mxu0 0.0
    %1651 = vmatmul.mubr.f32.gmra.mrb[0].mxu0 %v1540
    %v1652 = vpop.f32.mrb[0].mxu0
    %v1653 = vadd.f32 0.0, %v1652
    %v1654 = vpop.f32.mrb[0].mxu0
    %1655 = vmatprep.mubr.f32.mxu0 0.0
    %1656 = vmatmul.mubr.f32.gmra.mrb[0].mxu0 %v1543
    %v1657 = vpop.f32.mrb[0].mxu0
    %v1658 = vadd.f32 0.0, %v1657
    %v1659 = vpop.f32.mrb[0].mxu0
    %1660 = vmatprep.mubr.f32.mxu0 0.0
    %1661 = vmatmul.mubr.f32.gmra.mrb[0].mxu0 %v1546
    %v1662 = vpop.f32.mrb[0].mxu0
    %v1663 = vadd.f32 0.0, %v1662
    %v1664 = vpop.f32.mrb[0].mxu0
    %1665 = vdwg.mxu0
    %v1666 = vld [vmem:[#allocation4] sm:$0xff]
    %v1667 = vld [vmem:[#allocation4 + $0x8] sm:$0xff]
    %v1668 = vld [vmem:[#allocation4 + $0x10] sm:$0xff]
    %v1669 = vld [vmem:[#allocation4 + $0x18] sm:$0xff]
    %v1670 = vld [vmem:[#allocation4 + $0x20] sm:$0xff]
    %v1671 = vld [vmem:[#allocation4 + $0x28] sm:$0xff]
    %v1672 = vld [vmem:[#allocation4 + $0x30] sm:$0xff]
    %v1673 = vld [vmem:[#allocation4 + $0x38] sm:$0xff]
    %v1674 = vld [vmem:[#allocation4 + $0x40] sm:$0xff]
    %v1675 = vld [vmem:[#allocation4 + $0x48] sm:$0x3f]
    %v1676 = vadd.f32 %v1666, %v1618
    %v1677 = vadd.f32 %v1667, %v1623
    %v1678 = vadd.f32 %v1668, %v1628
    %v1679 = vadd.f32 %v1669, %v1633
    %v1680 = vadd.f32 %v1670, %v1638
    %v1681 = vadd.f32 %v1671, %v1643
    %v1682 = vadd.f32 %v1672, %v1648
    %v1683 = vadd.f32 %v1673, %v1653
    %v1684 = vadd.f32 %v1674, %v1658
    %v1685 = vadd.f32 %v1675, %v1663
    %1686 = vst [vmem:[#allocation4] sm:$0xff] %v1676
    %1687 = vst [vmem:[#allocation4 + $0x8] sm:$0xff] %v1677
    %1688 = vst [vmem:[#allocation4 + $0x10] sm:$0xff] %v1678
    %1689 = vst [vmem:[#allocation4 + $0x18] sm:$0xff] %v1679
    %1690 = vst [vmem:[#allocation4 + $0x20] sm:$0xff] %v1680
    %1691 = vst [vmem:[#allocation4 + $0x28] sm:$0xff] %v1681
    %1692 = vst [vmem:[#allocation4 + $0x30] sm:$0xff] %v1682
    %1693 = vst [vmem:[#allocation4 + $0x38] sm:$0xff] %v1683
    %1694 = vst [vmem:[#allocation4 + $0x40] sm:$0xff] %v1684
    %1695 = vst [vmem:[#allocation4 + $0x48] sm:$0x3f] %v1685
    %s1696 = scalar_lea.vmem %s7, 4
    %v1697 = vld [vmem:[%s1696] sm:$0xf]
    %v1699 = vsel %vm518, %v1697, 0
    %1701 = vmatprep.subr.mxu0 0.0
    %1702 = vmatpush1.msra.mxu0 %v1699
    %1703 = vmatprep.subr.mxu0 0.0
    %1704 = vmatpush1.msra.mxu0 0.0
    %1705 = vmatprep.subr.mxu0 0.0
    %1706 = vmatpush1.msra.mxu0 0.0
    %1707 = vmatprep.subr.mxu0 0.0
    %1708 = vmatpush1.msra.mxu0 0.0
    %1709 = vmatprep.subr.mxu0 0.0
    %1710 = vmatpush1.msra.mxu0 0.0
    %1711 = vmatprep.subr.mxu0 0.0
    %1712 = vmatpush1.msra.mxu0 0.0
    %1713 = vmatprep.subr.mxu0 0.0
    %1714 = vmatpush1.msra.mxu0 0.0
    %1715 = vmatprep.subr.mxu0 0.0
    %1716 = vmatpush1.msra.mxu0 0.0
    %1717 = vmatprep.subr.mxu0 0.0
    %1718 = vmatpush1.msra.mxu0 0.0
    %1719 = vmatprep.subr.mxu0 0.0
    %1720 = vmatpush1.msra.mxu0 0.0
    %1721 = vmatprep.subr.mxu0 0.0
    %1722 = vmatpush1.msra.mxu0 0.0
    %1723 = vmatprep.subr.mxu0 0.0
    %1724 = vmatpush1.msra.mxu0 0.0
    %1725 = vmatprep.subr.mxu0 0.0
    %1726 = vmatpush1.msra.mxu0 0.0
    %1727 = vmatprep.subr.mxu0 0.0
    %1728 = vmatpush1.msra.mxu0 0.0
    %1729 = vmatprep.subr.mxu0 0.0
    %1730 = vmatpush1.msra.mxu0 0.0
    %1731 = vmatprep.subr.mxu0 0.0
    %1732 = vmatpush1.msra.mxu0 0.0
    %1733 = vmatprep.subr.mxu0 0.0
    %1734 = vmatpush1.msra.mxu0 0.0
    %1735 = vmatprep.subr.mxu0 0.0
    %1736 = vmatpush1.msra.mxu0 0.0
    %1737 = vmatprep.subr.mxu0 0.0
    %1738 = vmatpush1.msra.mxu0 0.0
    %1739 = vmatprep.subr.mxu0 0.0
    %1740 = vmatpush1.msra.mxu0 0.0
    %1741 = vmatprep.subr.mxu0 0.0
    %1742 = vmatpush1.msra.mxu0 0.0
    %1743 = vmatprep.subr.mxu0 0.0
    %1744 = vmatpush1.msra.mxu0 0.0
    %1745 = vmatprep.subr.mxu0 0.0
    %1746 = vmatpush1.msra.mxu0 0.0
    %1747 = vmatprep.subr.mxu0 0.0
    %1748 = vmatpush1.msra.mxu0 0.0
    %1749 = vmatprep.subr.mxu0 0.0
    %1750 = vmatpush1.msra.mxu0 0.0
    %1751 = vmatprep.subr.mxu0 0.0
    %1752 = vmatpush1.msra.mxu0 0.0
    %1753 = vmatprep.subr.mxu0 0.0
    %1754 = vmatpush1.msra.mxu0 0.0
    %1755 = vmatprep.subr.mxu0 0.0
    %1756 = vmatpush1.msra.mxu0 0.0
    %1757 = vmatprep.subr.mxu0 0.0
    %1758 = vmatpush1.msra.mxu0 0.0
    %1759 = vmatprep.subr.mxu0 0.0
    %1760 = vmatpush1.msra.mxu0 0.0
    %1761 = vmatprep.subr.mxu0 0.0
    %1762 = vmatpush1.msra.mxu0 0.0
    %1763 = vmatprep.subr.mxu0 0.0
    %1764 = vmatpush1.msra.mxu0 0.0
    %1765 = vmatprep.mubr.f32.mxu0 0.0
    %1766 = vmatmul.mubr.f32.gmra.mrb[0].mxu0 %v1519
    %v1767 = vpop.f32.mrb[0].mxu0
    %v1768 = vadd.f32 0.0, %v1767
    %v1769 = vpop.f32.mrb[0].mxu0
    %1770 = vmatprep.mubr.f32.mxu0 0.0
    %1771 = vmatmul.mubr.f32.gmra.mrb[0].mxu0 %v1522
    %v1772 = vpop.f32.mrb[0].mxu0
    %v1773 = vadd.f32 0.0, %v1772
    %v1774 = vpop.f32.mrb[0].mxu0
    %1775 = vmatprep.mubr.f32.mxu0 0.0
    %1776 = vmatmul.mubr.f32.gmra.mrb[0].mxu0 %v1525
    %v1777 = vpop.f32.mrb[0].mxu0
    %v1778 = vadd.f32 0.0, %v1777
    %v1779 = vpop.f32.mrb[0].mxu0
    %1780 = vmatprep.mubr.f32.mxu0 0.0
    %1781 = vmatmul.mubr.f32.gmra.mrb[0].mxu0 %v1528
    %v1782 = vpop.f32.mrb[0].mxu0
    %v1783 = vadd.f32 0.0, %v1782
    %v1784 = vpop.f32.mrb[0].mxu0
    %1785 = vmatprep.mubr.f32.mxu0 0.0
    %1786 = vmatmul.mubr.f32.gmra.mrb[0].mxu0 %v1531
    %v1787 = vpop.f32.mrb[0].mxu0
    %v1788 = vadd.f32 0.0, %v1787
    %v1789 = vpop.f32.mrb[0].mxu0
    %1790 = vmatprep.mubr.f32.mxu0 0.0
    %1791 = vmatmul.mubr.f32.gmra.mrb[0].mxu0 %v1534
    %v1792 = vpop.f32.mrb[0].mxu0
    %v1793 = vadd.f32 0.0, %v1792
    %v1794 = vpop.f32.mrb[0].mxu0
    %1795 = vmatprep.mubr.f32.mxu0 0.0
    %1796 = vmatmul.mubr.f32.gmra.mrb[0].mxu0 %v1537
    %v1797 = vpop.f32.mrb[0].mxu0
    %v1798 = vadd.f32 0.0, %v1797
    %v1799 = vpop.f32.mrb[0].mxu0
    %1800 = vmatprep.mubr.f32.mxu0 0.0
    %1801 = vmatmul.mubr.f32.gmra.mrb[0].mxu0 %v1540
    %v1802 = vpop.f32.mrb[0].mxu0
    %v1803 = vadd.f32 0.0, %v1802
    %v1804 = vpop.f32.mrb[0].mxu0
    %1805 = vmatprep.mubr.f32.mxu0 0.0
    %1806 = vmatmul.mubr.f32.gmra.mrb[0].mxu0 %v1543
    %v1807 = vpop.f32.mrb[0].mxu0
    %v1808 = vadd.f32 0.0, %v1807
    %v1809 = vpop.f32.mrb[0].mxu0
    %1810 = vmatprep.mubr.f32.mxu0 0.0
    %1811 = vmatmul.mubr.f32.gmra.mrb[0].mxu0 %v1546
    %v1812 = vpop.f32.mrb[0].mxu0
    %v1813 = vadd.f32 0.0, %v1812
    %v1814 = vpop.f32.mrb[0].mxu0
    %1815 = vdwg.mxu0
    %v1816 = vld [vmem:[#allocation4 + $0x1] sm:$0xff]
    %v1817 = vld [vmem:[#allocation4 + $0x9] sm:$0xff]
    %v1818 = vld [vmem:[#allocation4 + $0x11] sm:$0xff]
    %v1819 = vld [vmem:[#allocation4 + $0x19] sm:$0xff]
    %v1820 = vld [vmem:[#allocation4 + $0x21] sm:$0xff]
    %v1821 = vld [vmem:[#allocation4 + $0x29] sm:$0xff]
    %v1822 = vld [vmem:[#allocation4 + $0x31] sm:$0xff]
    %v1823 = vld [vmem:[#allocation4 + $0x39] sm:$0xff]
    %v1824 = vld [vmem:[#allocation4 + $0x41] sm:$0xff]
    %v1825 = vld [vmem:[#allocation4 + $0x49] sm:$0x3f]
    %v1826 = vadd.f32 %v1816, %v1768
    %v1827 = vadd.f32 %v1817, %v1773
    %v1828 = vadd.f32 %v1818, %v1778
    %v1829 = vadd.f32 %v1819, %v1783
    %v1830 = vadd.f32 %v1820, %v1788
    %v1831 = vadd.f32 %v1821, %v1793
    %v1832 = vadd.f32 %v1822, %v1798
    %v1833 = vadd.f32 %v1823, %v1803
    %v1834 = vadd.f32 %v1824, %v1808
    %v1835 = vadd.f32 %v1825, %v1813
    %1836 = vst [vmem:[#allocation4 + $0x1] sm:$0xff] %v1826
    %1837 = vst [vmem:[#allocation4 + $0x9] sm:$0xff] %v1827
    %1838 = vst [vmem:[#allocation4 + $0x11] sm:$0xff] %v1828
    %1839 = vst [vmem:[#allocation4 + $0x19] sm:$0xff] %v1829
    %1840 = vst [vmem:[#allocation4 + $0x21] sm:$0xff] %v1830
    %1841 = vst [vmem:[#allocation4 + $0x29] sm:$0xff] %v1831
    %1842 = vst [vmem:[#allocation4 + $0x31] sm:$0xff] %v1832
    %1843 = vst [vmem:[#allocation4 + $0x39] sm:$0xff] %v1833
    %1844 = vst [vmem:[#allocation4 + $0x41] sm:$0xff] %v1834
    %1845 = vst [vmem:[#allocation4 + $0x49] sm:$0x3f] %v1835
    %s1846 = scalar_lea.vmem %s7, 8
    %v1847 = vld [vmem:[%s1846] sm:$0xf]
    %v1849 = vsel %vm518, %v1847, 0
    %1851 = vmatprep.subr.mxu0 0.0
    %1852 = vmatpush1.msra.mxu0 %v1849
    %1853 = vmatprep.subr.mxu0 0.0
    %1854 = vmatpush1.msra.mxu0 0.0
    %1855 = vmatprep.subr.mxu0 0.0
    %1856 = vmatpush1.msra.mxu0 0.0
    %1857 = vmatprep.subr.mxu0 0.0
    %1858 = vmatpush1.msra.mxu0 0.0
    %1859 = vmatprep.subr.mxu0 0.0
    %1860 = vmatpush1.msra.mxu0 0.0
    %1861 = vmatprep.subr.mxu0 0.0
    %1862 = vmatpush1.msra.mxu0 0.0
    %1863 = vmatprep.subr.mxu0 0.0
    %1864 = vmatpush1.msra.mxu0 0.0
    %1865 = vmatprep.subr.mxu0 0.0
    %1866 = vmatpush1.msra.mxu0 0.0
    %1867 = vmatprep.subr.mxu0 0.0
    %1868 = vmatpush1.msra.mxu0 0.0
    %1869 = vmatprep.subr.mxu0 0.0
    %1870 = vmatpush1.msra.mxu0 0.0
    %1871 = vmatprep.subr.mxu0 0.0
    %1872 = vmatpush1.msra.mxu0 0.0
    %1873 = vmatprep.subr.mxu0 0.0
    %1874 = vmatpush1.msra.mxu0 0.0
    %1875 = vmatprep.subr.mxu0 0.0
    %1876 = vmatpush1.msra.mxu0 0.0
    %1877 = vmatprep.subr.mxu0 0.0
    %1878 = vmatpush1.msra.mxu0 0.0
    %1879 = vmatprep.subr.mxu0 0.0
    %1880 = vmatpush1.msra.mxu0 0.0
    %1881 = vmatprep.subr.mxu0 0.0
    %1882 = vmatpush1.msra.mxu0 0.0
    %1883 = vmatprep.subr.mxu0 0.0
    %1884 = vmatpush1.msra.mxu0 0.0
    %1885 = vmatprep.subr.mxu0 0.0
    %1886 = vmatpush1.msra.mxu0 0.0
    %1887 = vmatprep.subr.mxu0 0.0
    %1888 = vmatpush1.msra.mxu0 0.0
    %1889 = vmatprep.subr.mxu0 0.0
    %1890 = vmatpush1.msra.mxu0 0.0
    %1891 = vmatprep.subr.mxu0 0.0
    %1892 = vmatpush1.msra.mxu0 0.0
    %1893 = vmatprep.subr.mxu0 0.0
    %1894 = vmatpush1.msra.mxu0 0.0
    %1895 = vmatprep.subr.mxu0 0.0
    %1896 = vmatpush1.msra.mxu0 0.0
    %1897 = vmatprep.subr.mxu0 0.0
    %1898 = vmatpush1.msra.mxu0 0.0
    %1899 = vmatprep.subr.mxu0 0.0
    %1900 = vmatpush1.msra.mxu0 0.0
    %1901 = vmatprep.subr.mxu0 0.0
    %1902 = vmatpush1.msra.mxu0 0.0
    %1903 = vmatprep.subr.mxu0 0.0
    %1904 = vmatpush1.msra.mxu0 0.0
    %1905 = vmatprep.subr.mxu0 0.0
    %1906 = vmatpush1.msra.mxu0 0.0
    %1907 = vmatprep.subr.mxu0 0.0
    %1908 = vmatpush1.msra.mxu0 0.0
    %1909 = vmatprep.subr.mxu0 0.0
    %1910 = vmatpush1.msra.mxu0 0.0
    %1911 = vmatprep.subr.mxu0 0.0
    %1912 = vmatpush1.msra.mxu0 0.0
    %1913 = vmatprep.subr.mxu0 0.0
    %1914 = vmatpush1.msra.mxu0 0.0
    %1915 = vmatprep.mubr.f32.mxu0 0.0
    %1916 = vmatmul.mubr.f32.gmra.mrb[0].mxu0 %v1519
    %v1917 = vpop.f32.mrb[0].mxu0
    %v1918 = vadd.f32 0.0, %v1917
    %v1919 = vpop.f32.mrb[0].mxu0
    %1920 = vmatprep.mubr.f32.mxu0 0.0
    %1921 = vmatmul.mubr.f32.gmra.mrb[0].mxu0 %v1522
    %v1922 = vpop.f32.mrb[0].mxu0
    %v1923 = vadd.f32 0.0, %v1922
    %v1924 = vpop.f32.mrb[0].mxu0
    %1925 = vmatprep.mubr.f32.mxu0 0.0
    %1926 = vmatmul.mubr.f32.gmra.mrb[0].mxu0 %v1525
    %v1927 = vpop.f32.mrb[0].mxu0
    %v1928 = vadd.f32 0.0, %v1927
    %v1929 = vpop.f32.mrb[0].mxu0
    %1930 = vmatprep.mubr.f32.mxu0 0.0
    %1931 = vmatmul.mubr.f32.gmra.mrb[0].mxu0 %v1528
    %v1932 = vpop.f32.mrb[0].mxu0
    %v1933 = vadd.f32 0.0, %v1932
    %v1934 = vpop.f32.mrb[0].mxu0
    %1935 = vmatprep.mubr.f32.mxu0 0.0
    %1936 = vmatmul.mubr.f32.gmra.mrb[0].mxu0 %v1531
    %v1937 = vpop.f32.mrb[0].mxu0
    %v1938 = vadd.f32 0.0, %v1937
    %v1939 = vpop.f32.mrb[0].mxu0
    %1940 = vmatprep.mubr.f32.mxu0 0.0
    %1941 = vmatmul.mubr.f32.gmra.mrb[0].mxu0 %v1534
    %v1942 = vpop.f32.mrb[0].mxu0
    %v1943 = vadd.f32 0.0, %v1942
    %v1944 = vpop.f32.mrb[0].mxu0
    %1945 = vmatprep.mubr.f32.mxu0 0.0
    %1946 = vmatmul.mubr.f32.gmra.mrb[0].mxu0 %v1537
    %v1947 = vpop.f32.mrb[0].mxu0
    %v1948 = vadd.f32 0.0, %v1947
    %v1949 = vpop.f32.mrb[0].mxu0
    %1950 = vmatprep.mubr.f32.mxu0 0.0
    %1951 = vmatmul.mubr.f32.gmra.mrb[0].mxu0 %v1540
    %v1952 = vpop.f32.mrb[0].mxu0
    %v1953 = vadd.f32 0.0, %v1952
    %v1954 = vpop.f32.mrb[0].mxu0
    %1955 = vmatprep.mubr.f32.mxu0 0.0
    %1956 = vmatmul.mubr.f32.gmra.mrb[0].mxu0 %v1543
    %v1957 = vpop.f32.mrb[0].mxu0
    %v1958 = vadd.f32 0.0, %v1957
    %v1959 = vpop.f32.mrb[0].mxu0
    %1960 = vmatprep.mubr.f32.mxu0 0.0
    %1961 = vmatmul.mubr.f32.gmra.mrb[0].mxu0 %v1546
    %v1962 = vpop.f32.mrb[0].mxu0
    %v1963 = vadd.f32 0.0, %v1962
    %v1964 = vpop.f32.mrb[0].mxu0
    %1965 = vdwg.mxu0
    %v1966 = vld [vmem:[#allocation4 + $0x2] sm:$0xff]
    %v1967 = vld [vmem:[#allocation4 + $0xa] sm:$0xff]
    %v1968 = vld [vmem:[#allocation4 + $0x12] sm:$0xff]
    %v1969 = vld [vmem:[#allocation4 + $0x1a] sm:$0xff]
    %v1970 = vld [vmem:[#allocation4 + $0x22] sm:$0xff]
    %v1971 = vld [vmem:[#allocation4 + $0x2a] sm:$0xff]
    %v1972 = vld [vmem:[#allocation4 + $0x32] sm:$0xff]
    %v1973 = vld [vmem:[#allocation4 + $0x3a] sm:$0xff]
    %v1974 = vld [vmem:[#allocation4 + $0x42] sm:$0xff]
    %v1975 = vld [vmem:[#allocation4 + $0x4a] sm:$0x3f]
    %v1976 = vadd.f32 %v1966, %v1918
    %v1977 = vadd.f32 %v1967, %v1923
    %v1978 = vadd.f32 %v1968, %v1928
    %v1979 = vadd.f32 %v1969, %v1933
    %v1980 = vadd.f32 %v1970, %v1938
    %v1981 = vadd.f32 %v1971, %v1943
    %v1982 = vadd.f32 %v1972, %v1948
    %v1983 = vadd.f32 %v1973, %v1953
    %v1984 = vadd.f32 %v1974, %v1958
    %v1985 = vadd.f32 %v1975, %v1963
    %1986 = vst [vmem:[#allocation4 + $0x2] sm:$0xff] %v1976
    %1987 = vst [vmem:[#allocation4 + $0xa] sm:$0xff] %v1977
    %1988 = vst [vmem:[#allocation4 + $0x12] sm:$0xff] %v1978
    %1989 = vst [vmem:[#allocation4 + $0x1a] sm:$0xff] %v1979
    %1990 = vst [vmem:[#allocation4 + $0x22] sm:$0xff] %v1980
    %1991 = vst [vmem:[#allocation4 + $0x2a] sm:$0xff] %v1981
    %1992 = vst [vmem:[#allocation4 + $0x32] sm:$0xff] %v1982
    %1993 = vst [vmem:[#allocation4 + $0x3a] sm:$0xff] %v1983
    %1994 = vst [vmem:[#allocation4 + $0x42] sm:$0xff] %v1984
    %1995 = vst [vmem:[#allocation4 + $0x4a] sm:$0x3f] %v1985
    %v1996 = vld [vmem:[#allocation4] sm:$0xff]
    %v1997 = vld [vmem:[#allocation4 + $0x8] sm:$0xff]
    %v1998 = vld [vmem:[#allocation4 + $0x10] sm:$0xff]
    %v1999 = vld [vmem:[#allocation4 + $0x18] sm:$0xff]
    %v2000 = vld [vmem:[#allocation4 + $0x20] sm:$0xff]
    %v2001 = vld [vmem:[#allocation4 + $0x28] sm:$0xff]
    %v2002 = vld [vmem:[#allocation4 + $0x30] sm:$0xff]
    %v2003 = vld [vmem:[#allocation4 + $0x38] sm:$0xff]
    %v2004 = vld [vmem:[#allocation4 + $0x40] sm:$0xff]
    %v2005 = vld [vmem:[#allocation4 + $0x48] sm:$0xff]
    %v2006 = vmax.f32 %v1996, 0.0
    %v2007 = vmax.f32 %v1997, 0.0
    %v2008 = vmax.f32 %v1998, 0.0
    %v2009 = vmax.f32 %v1999, 0.0
    %v2010 = vmax.f32 %v2000, 0.0
    %v2011 = vmax.f32 %v2001, 0.0
    %v2012 = vmax.f32 %v2002, 0.0
    %v2013 = vmax.f32 %v2003, 0.0
    %v2014 = vmax.f32 %v2004, 0.0
    %v2015 = vmax.f32 %v2005, 0.0
    %v2016 = vld [vmem:[%s9] sm:$0xff]
    %v2017 = vld [vmem:[%s9 + $0x8] sm:$0xff]
    %v2018 = vld [vmem:[%s9 + $0x10] sm:$0xff]
    %v2019 = vld [vmem:[%s9 + $0x18] sm:$0xff]
    %v2020 = vld [vmem:[%s9 + $0x20] sm:$0xff]
    %v2021 = vld [vmem:[%s9 + $0x28] sm:$0xff]
    %v2022 = vld [vmem:[%s9 + $0x30] sm:$0xff]
    %v2023 = vld [vmem:[%s9 + $0x38] sm:$0xff]
    %v2024 = vld [vmem:[%s9 + $0x40] sm:$0xff]
    %v2025 = vld [vmem:[%s9 + $0x48] sm:$0xff]
    %v2026 = vld [vmem:[%s9 + $0x50] sm:$0xff]
    %v2027 = vld [vmem:[%s9 + $0x58] sm:$0xff]
    %v2028 = vld [vmem:[%s9 + $0x60] sm:$0xff]
    %v2029 = vld [vmem:[%s9 + $0x68] sm:$0xff]
    %v2030 = vld [vmem:[%s9 + $0x70] sm:$0xff]
    %v2031 = vld [vmem:[%s9 + $0x78] sm:$0xff]
    %v2032 = vld [vmem:[%s10] sm:$0x1]
    %v2034 = vlaneseq
    %v2035 = vshrl.u32 %v2034, 7
    %v2036 = vsub.s32 0, %v2035
    %v2037 = vrot.slane %v2032, %v2036
    %2039 = vmatprep.subr.mxu0 0.0
    %2040 = vmatpush1.msra.mxu0 %v2016
    %2041 = vmatprep.subr.mxu0 0.0
    %2042 = vmatpush1.msra.mxu0 %v2017
    %2043 = vmatprep.subr.mxu0 0.0
    %2044 = vmatpush1.msra.mxu0 %v2018
    %2045 = vmatprep.subr.mxu0 0.0
    %2046 = vmatpush1.msra.mxu0 %v2019
    %2047 = vmatprep.subr.mxu0 0.0
    %2048 = vmatpush1.msra.mxu0 %v2020
    %2049 = vmatprep.subr.mxu0 0.0
    %2050 = vmatpush1.msra.mxu0 %v2021
    %2051 = vmatprep.subr.mxu0 0.0
    %2052 = vmatpush1.msra.mxu0 %v2022
    %2053 = vmatprep.subr.mxu0 0.0
    %2054 = vmatpush1.msra.mxu0 %v2023
    %2055 = vmatprep.subr.mxu0 0.0
    %2056 = vmatpush1.msra.mxu0 %v2024
    %2057 = vmatprep.subr.mxu0 0.0
    %2058 = vmatpush1.msra.mxu0 %v2025
    %2059 = vmatprep.subr.mxu0 0.0
    %2060 = vmatpush1.msra.mxu0 %v2026
    %2061 = vmatprep.subr.mxu0 0.0
    %2062 = vmatpush1.msra.mxu0 %v2027
    %2063 = vmatprep.subr.mxu0 0.0
    %2064 = vmatpush1.msra.mxu0 %v2028
    %2065 = vmatprep.subr.mxu0 0.0
    %2066 = vmatpush1.msra.mxu0 %v2029
    %2067 = vmatprep.subr.mxu0 0.0
    %2068 = vmatpush1.msra.mxu0 %v2030
    %2069 = vmatprep.subr.mxu0 0.0
    %2070 = vmatpush1.msra.mxu0 %v2031
    %2071 = vmatprep.subr.mxu0 0.0
    %2072 = vmatpush1.msra.mxu0 0.0
    %2073 = vmatprep.subr.mxu0 0.0
    %2074 = vmatpush1.msra.mxu0 0.0
    %2075 = vmatprep.subr.mxu0 0.0
    %2076 = vmatpush1.msra.mxu0 0.0
    %2077 = vmatprep.subr.mxu0 0.0
    %2078 = vmatpush1.msra.mxu0 0.0
    %2079 = vmatprep.subr.mxu0 0.0
    %2080 = vmatpush1.msra.mxu0 0.0
    %2081 = vmatprep.subr.mxu0 0.0
    %2082 = vmatpush1.msra.mxu0 0.0
    %2083 = vmatprep.subr.mxu0 0.0
    %2084 = vmatpush1.msra.mxu0 0.0
    %2085 = vmatprep.subr.mxu0 0.0
    %2086 = vmatpush1.msra.mxu0 0.0
    %2087 = vmatprep.subr.mxu0 0.0
    %2088 = vmatpush1.msra.mxu0 0.0
    %2089 = vmatprep.subr.mxu0 0.0
    %2090 = vmatpush1.msra.mxu0 0.0
    %2091 = vmatprep.subr.mxu0 0.0
    %2092 = vmatpush1.msra.mxu0 0.0
    %2093 = vmatprep.subr.mxu0 0.0
    %2094 = vmatpush1.msra.mxu0 0.0
    %2095 = vmatprep.subr.mxu0 0.0
    %2096 = vmatpush1.msra.mxu0 0.0
    %2097 = vmatprep.subr.mxu0 0.0
    %2098 = vmatpush1.msra.mxu0 0.0
    %2099 = vmatprep.subr.mxu0 0.0
    %2100 = vmatpush1.msra.mxu0 0.0
    %2101 = vmatprep.subr.mxu0 0.0
    %2102 = vmatpush1.msra.mxu0 0.0
    %2103 = vmatprep.mubr.f32.mxu0 0.0
    %2104 = vmatmul.mubr.f32.gmra.mrb[0].mxu0 %v2006
    %v2105 = vpop.f32.mrb[0].mxu0
    %v2106 = vadd.f32 %v2037, %v2105
    %v2107 = vpop.f32.mrb[0].mxu0
    %2108 = vmatprep.mubr.f32.mxu0 0.0
    %2109 = vmatmul.mubr.f32.gmra.mrb[0].mxu0 %v2007
    %v2110 = vpop.f32.mrb[0].mxu0
    %v2111 = vadd.f32 %v2037, %v2110
    %v2112 = vpop.f32.mrb[0].mxu0
    %2113 = vmatprep.mubr.f32.mxu0 0.0
    %2114 = vmatmul.mubr.f32.gmra.mrb[0].mxu0 %v2008
    %v2115 = vpop.f32.mrb[0].mxu0
    %v2116 = vadd.f32 %v2037, %v2115
    %v2117 = vpop.f32.mrb[0].mxu0
    %2118 = vmatprep.mubr.f32.mxu0 0.0
    %2119 = vmatmul.mubr.f32.gmra.mrb[0].mxu0 %v2009
    %v2120 = vpop.f32.mrb[0].mxu0
    %v2121 = vadd.f32 %v2037, %v2120
    %v2122 = vpop.f32.mrb[0].mxu0
    %2123 = vmatprep.mubr.f32.mxu0 0.0
    %2124 = vmatmul.mubr.f32.gmra.mrb[0].mxu0 %v2010
    %v2125 = vpop.f32.mrb[0].mxu0
    %v2126 = vadd.f32 %v2037, %v2125
    %v2127 = vpop.f32.mrb[0].mxu0
    %2128 = vmatprep.mubr.f32.mxu0 0.0
    %2129 = vmatmul.mubr.f32.gmra.mrb[0].mxu0 %v2011
    %v2130 = vpop.f32.mrb[0].mxu0
    %v2131 = vadd.f32 %v2037, %v2130
    %v2132 = vpop.f32.mrb[0].mxu0
    %2133 = vmatprep.mubr.f32.mxu0 0.0
    %2134 = vmatmul.mubr.f32.gmra.mrb[0].mxu0 %v2012
    %v2135 = vpop.f32.mrb[0].mxu0
    %v2136 = vadd.f32 %v2037, %v2135
    %v2137 = vpop.f32.mrb[0].mxu0
    %2138 = vmatprep.mubr.f32.mxu0 0.0
    %2139 = vmatmul.mubr.f32.gmra.mrb[0].mxu0 %v2013
    %v2140 = vpop.f32.mrb[0].mxu0
    %v2141 = vadd.f32 %v2037, %v2140
    %v2142 = vpop.f32.mrb[0].mxu0
    %2143 = vmatprep.mubr.f32.mxu0 0.0
    %2144 = vmatmul.mubr.f32.gmra.mrb[0].mxu0 %v2014
    %v2145 = vpop.f32.mrb[0].mxu0
    %v2146 = vadd.f32 %v2037, %v2145
    %v2147 = vpop.f32.mrb[0].mxu0
    %2148 = vmatprep.mubr.f32.mxu0 0.0
    %2149 = vmatmul.mubr.f32.gmra.mrb[0].mxu0 %v2015
    %v2150 = vpop.f32.mrb[0].mxu0
    %v2151 = vadd.f32 %v2037, %v2150
    %v2152 = vpop.f32.mrb[0].mxu0
    %2153 = vdwg.mxu0
    %vm2154 = vcmask 130048
    %2155 = vst.msk [vmem:[%s11] sm:$0xff] %vm2154, %v2106
    %2156 = vst.msk [vmem:[%s11 + $0x8] sm:$0xff] %vm2154, %v2111
    %2157 = vst.msk [vmem:[%s11 + $0x10] sm:$0xff] %vm2154, %v2116
    %2158 = vst.msk [vmem:[%s11 + $0x18] sm:$0xff] %vm2154, %v2121
    %2159 = vst.msk [vmem:[%s11 + $0x20] sm:$0xff] %vm2154, %v2126
    %2160 = vst.msk [vmem:[%s11 + $0x28] sm:$0xff] %vm2154, %v2131
    %2161 = vst.msk [vmem:[%s11 + $0x30] sm:$0xff] %vm2154, %v2136
    %2162 = vst.msk [vmem:[%s11 + $0x38] sm:$0xff] %vm2154, %v2141
    %2163 = vst.msk [vmem:[%s11 + $0x40] sm:$0xff] %vm2154, %v2146
    %2164 = vst.msk [vmem:[%s11 + $0x48] sm:$0xff] %vm2154, %v2151
    %v2165 = vld [vmem:[%s2] sm:$0xff]
    %v2166 = vld [vmem:[%s2 + $0x8] sm:$0xff]
    %v2167 = vld [vmem:[%s2 + $0x10] sm:$0xff]
    %v2168 = vld [vmem:[%s2 + $0x18] sm:$0xff]
    %v2169 = vld [vmem:[%s2 + $0x20] sm:$0xff]
    %v2170 = vld [vmem:[%s2 + $0x28] sm:$0xff]
    %v2171 = vld [vmem:[%s2 + $0x30] sm:$0xff]
    %v2172 = vld [vmem:[%s2 + $0x38] sm:$0xff]
    %v2173 = vld [vmem:[%s2 + $0x40] sm:$0xff]
    %v2174 = vld [vmem:[%s2 + $0x48] sm:$0x3]
    %s2175 = sld [smem:[#allocation5 + $0xc]]
    %v2176 = vld [vmem:[%s1] sm:$0xff]
    %v2177 = vld [vmem:[%s1 + $0x8] sm:$0xff]
    %v2178 = vld [vmem:[%s1 + $0x10] sm:$0xff]
    %v2179 = vld [vmem:[%s1 + $0x18] sm:$0xff]
    %v2180 = vld [vmem:[%s1 + $0x20] sm:$0xff]
    %v2181 = vld [vmem:[%s1 + $0x28] sm:$0xff]
    %v2182 = vld [vmem:[%s1 + $0x30] sm:$0xff]
    %v2183 = vld [vmem:[%s1 + $0x38] sm:$0xff]
    %v2184 = vld [vmem:[%s1 + $0x40] sm:$0xff]
    %v2185 = vld [vmem:[%s1 + $0x48] sm:$0x3]
    %v2186 = vstv %s2175
    %v2187 = vmul.f32 %v2186, %v2176
    %v2188 = vmul.f32 %v2186, %v2177
    %v2189 = vmul.f32 %v2186, %v2178
    %v2190 = vmul.f32 %v2186, %v2179
    %v2191 = vmul.f32 %v2186, %v2180
    %v2192 = vmul.f32 %v2186, %v2181
    %v2193 = vmul.f32 %v2186, %v2182
    %v2194 = vmul.f32 %v2186, %v2183
    %v2195 = vmul.f32 %v2186, %v2184
    %v2196 = vmul.f32 %v2186, %v2185
    %v2197 = vadd.f32 %v2165, %v2187
    %v2198 = vadd.f32 %v2166, %v2188
    %v2199 = vadd.f32 %v2167, %v2189
    %v2200 = vadd.f32 %v2168, %v2190
    %v2201 = vadd.f32 %v2169, %v2191
    %v2202 = vadd.f32 %v2170, %v2192
    %v2203 = vadd.f32 %v2171, %v2193
    %v2204 = vadd.f32 %v2172, %v2194
    %v2205 = vadd.f32 %v2173, %v2195
    %v2206 = vadd.f32 %v2174, %v2196
    %s2207 = sld [smem:[#allocation5 + $0xd]]
    %v2208 = vld [vmem:[%s94] sm:$0xff]
    %v2209 = vld [vmem:[%s94 + $0x8] sm:$0xff]
    %v2210 = vld [vmem:[%s94 + $0x10] sm:$0xff]
    %v2211 = vld [vmem:[%s94 + $0x18] sm:$0xff]
    %v2212 = vld [vmem:[%s94 + $0x20] sm:$0xff]
    %v2213 = vld [vmem:[%s94 + $0x28] sm:$0xff]
    %v2214 = vld [vmem:[%s94 + $0x30] sm:$0xff]
    %v2215 = vld [vmem:[%s94 + $0x38] sm:$0xff]
    %v2216 = vld [vmem:[%s94 + $0x40] sm:$0xff]
    %v2217 = vld [vmem:[%s94 + $0x48] sm:$0x3]
    %v2218 = vstv %s2207
    %v2219 = vmul.f32 %v2218, %v2208
    %v2220 = vmul.f32 %v2218, %v2209
    %v2221 = vmul.f32 %v2218, %v2210
    %v2222 = vmul.f32 %v2218, %v2211
    %v2223 = vmul.f32 %v2218, %v2212
    %v2224 = vmul.f32 %v2218, %v2213
    %v2225 = vmul.f32 %v2218, %v2214
    %v2226 = vmul.f32 %v2218, %v2215
    %v2227 = vmul.f32 %v2218, %v2216
    %v2228 = vmul.f32 %v2218, %v2217
    %v2229 = vadd.f32 %v2197, %v2219
    %v2230 = vadd.f32 %v2198, %v2220
    %v2231 = vadd.f32 %v2199, %v2221
    %v2232 = vadd.f32 %v2200, %v2222
    %v2233 = vadd.f32 %v2201, %v2223
    %v2234 = vadd.f32 %v2202, %v2224
    %v2235 = vadd.f32 %v2203, %v2225
    %v2236 = vadd.f32 %v2204, %v2226
    %v2237 = vadd.f32 %v2205, %v2227
    %v2238 = vadd.f32 %v2206, %v2228
    %s2239 = sld [smem:[#allocation5 + $0xe]]
    %v2240 = vld [vmem:[%s127] sm:$0xff]
    %v2241 = vld [vmem:[%s127 + $0x8] sm:$0xff]
    %v2242 = vld [vmem:[%s127 + $0x10] sm:$0xff]
    %v2243 = vld [vmem:[%s127 + $0x18] sm:$0xff]
    %v2244 = vld [vmem:[%s127 + $0x20] sm:$0xff]
    %v2245 = vld [vmem:[%s127 + $0x28] sm:$0xff]
    %v2246 = vld [vmem:[%s127 + $0x30] sm:$0xff]
    %v2247 = vld [vmem:[%s127 + $0x38] sm:$0xff]
    %v2248 = vld [vmem:[%s127 + $0x40] sm:$0xff]
    %v2249 = vld [vmem:[%s127 + $0x48] sm:$0x3]
    %v2250 = vstv %s2239
    %v2251 = vmul.f32 %v2250, %v2240
    %v2252 = vmul.f32 %v2250, %v2241
    %v2253 = vmul.f32 %v2250, %v2242
    %v2254 = vmul.f32 %v2250, %v2243
    %v2255 = vmul.f32 %v2250, %v2244
    %v2256 = vmul.f32 %v2250, %v2245
    %v2257 = vmul.f32 %v2250, %v2246
    %v2258 = vmul.f32 %v2250, %v2247
    %v2259 = vmul.f32 %v2250, %v2248
    %v2260 = vmul.f32 %v2250, %v2249
    %v2261 = vadd.f32 %v2229, %v2251
    %v2262 = vadd.f32 %v2230, %v2252
    %v2263 = vadd.f32 %v2231, %v2253
    %v2264 = vadd.f32 %v2232, %v2254
    %v2265 = vadd.f32 %v2233, %v2255
    %v2266 = vadd.f32 %v2234, %v2256
    %v2267 = vadd.f32 %v2235, %v2257
    %v2268 = vadd.f32 %v2236, %v2258
    %v2269 = vadd.f32 %v2237, %v2259
    %v2270 = vadd.f32 %v2238, %v2260
    %s2271 = sld [smem:[#allocation5 + $0xf]]
    %v2272 = vld [vmem:[%s160] sm:$0xff]
    %v2273 = vld [vmem:[%s160 + $0x8] sm:$0xff]
    %v2274 = vld [vmem:[%s160 + $0x10] sm:$0xff]
    %v2275 = vld [vmem:[%s160 + $0x18] sm:$0xff]
    %v2276 = vld [vmem:[%s160 + $0x20] sm:$0xff]
    %v2277 = vld [vmem:[%s160 + $0x28] sm:$0xff]
    %v2278 = vld [vmem:[%s160 + $0x30] sm:$0xff]
    %v2279 = vld [vmem:[%s160 + $0x38] sm:$0xff]
    %v2280 = vld [vmem:[%s160 + $0x40] sm:$0xff]
    %v2281 = vld [vmem:[%s160 + $0x48] sm:$0x3]
    %v2282 = vstv %s2271
    %v2283 = vmul.f32 %v2282, %v2272
    %v2284 = vmul.f32 %v2282, %v2273
    %v2285 = vmul.f32 %v2282, %v2274
    %v2286 = vmul.f32 %v2282, %v2275
    %v2287 = vmul.f32 %v2282, %v2276
    %v2288 = vmul.f32 %v2282, %v2277
    %v2289 = vmul.f32 %v2282, %v2278
    %v2290 = vmul.f32 %v2282, %v2279
    %v2291 = vmul.f32 %v2282, %v2280
    %v2292 = vmul.f32 %v2282, %v2281
    %v2293 = vadd.f32 %v2261, %v2283
    %v2294 = vadd.f32 %v2262, %v2284
    %v2295 = vadd.f32 %v2263, %v2285
    %v2296 = vadd.f32 %v2264, %v2286
    %v2297 = vadd.f32 %v2265, %v2287
    %v2298 = vadd.f32 %v2266, %v2288
    %v2299 = vadd.f32 %v2267, %v2289
    %v2300 = vadd.f32 %v2268, %v2290
    %v2301 = vadd.f32 %v2269, %v2291
    %v2302 = vadd.f32 %v2270, %v2292
    %s2303 = sld [smem:[#allocation5 + $0x10]]
    %v2304 = vld [vmem:[%s193] sm:$0xff]
    %v2305 = vld [vmem:[%s193 + $0x8] sm:$0xff]
    %v2306 = vld [vmem:[%s193 + $0x10] sm:$0xff]
    %v2307 = vld [vmem:[%s193 + $0x18] sm:$0xff]
    %v2308 = vld [vmem:[%s193 + $0x20] sm:$0xff]
    %v2309 = vld [vmem:[%s193 + $0x28] sm:$0xff]
    %v2310 = vld [vmem:[%s193 + $0x30] sm:$0xff]
    %v2311 = vld [vmem:[%s193 + $0x38] sm:$0xff]
    %v2312 = vld [vmem:[%s193 + $0x40] sm:$0xff]
    %v2313 = vld [vmem:[%s193 + $0x48] sm:$0x3]
    %v2314 = vstv %s2303
    %v2315 = vmul.f32 %v2314, %v2304
    %v2316 = vmul.f32 %v2314, %v2305
    %v2317 = vmul.f32 %v2314, %v2306
    %v2318 = vmul.f32 %v2314, %v2307
    %v2319 = vmul.f32 %v2314, %v2308
    %v2320 = vmul.f32 %v2314, %v2309
    %v2321 = vmul.f32 %v2314, %v2310
    %v2322 = vmul.f32 %v2314, %v2311
    %v2323 = vmul.f32 %v2314, %v2312
    %v2324 = vmul.f32 %v2314, %v2313
    %v2325 = vadd.f32 %v2293, %v2315
    %v2326 = vadd.f32 %v2294, %v2316
    %v2327 = vadd.f32 %v2295, %v2317
    %v2328 = vadd.f32 %v2296, %v2318
    %v2329 = vadd.f32 %v2297, %v2319
    %v2330 = vadd.f32 %v2298, %v2320
    %v2331 = vadd.f32 %v2299, %v2321
    %v2332 = vadd.f32 %v2300, %v2322
    %v2333 = vadd.f32 %v2301, %v2323
    %v2334 = vadd.f32 %v2302, %v2324
    %s2335 = sld [smem:[#allocation5 + $0x11]]
    %v2336 = vld [vmem:[%s226] sm:$0xff]
    %v2337 = vld [vmem:[%s226 + $0x8] sm:$0xff]
    %v2338 = vld [vmem:[%s226 + $0x10] sm:$0xff]
    %v2339 = vld [vmem:[%s226 + $0x18] sm:$0xff]
    %v2340 = vld [vmem:[%s226 + $0x20] sm:$0xff]
    %v2341 = vld [vmem:[%s226 + $0x28] sm:$0xff]
    %v2342 = vld [vmem:[%s226 + $0x30] sm:$0xff]
    %v2343 = vld [vmem:[%s226 + $0x38] sm:$0xff]
    %v2344 = vld [vmem:[%s226 + $0x40] sm:$0xff]
    %v2345 = vld [vmem:[%s226 + $0x48] sm:$0x3]
    %v2346 = vstv %s2335
    %v2347 = vmul.f32 %v2346, %v2336
    %v2348 = vmul.f32 %v2346, %v2337
    %v2349 = vmul.f32 %v2346, %v2338
    %v2350 = vmul.f32 %v2346, %v2339
    %v2351 = vmul.f32 %v2346, %v2340
    %v2352 = vmul.f32 %v2346, %v2341
    %v2353 = vmul.f32 %v2346, %v2342
    %v2354 = vmul.f32 %v2346, %v2343
    %v2355 = vmul.f32 %v2346, %v2344
    %v2356 = vmul.f32 %v2346, %v2345
    %v2357 = vadd.f32 %v2325, %v2347
    %v2358 = vadd.f32 %v2326, %v2348
    %v2359 = vadd.f32 %v2327, %v2349
    %v2360 = vadd.f32 %v2328, %v2350
    %v2361 = vadd.f32 %v2329, %v2351
    %v2362 = vadd.f32 %v2330, %v2352
    %v2363 = vadd.f32 %v2331, %v2353
    %v2364 = vadd.f32 %v2332, %v2354
    %v2365 = vadd.f32 %v2333, %v2355
    %v2366 = vadd.f32 %v2334, %v2356
    %s2367 = sld [smem:[#allocation5 + $0x12]]
    %v2368 = vld [vmem:[%s259] sm:$0xff]
    %v2369 = vld [vmem:[%s259 + $0x8] sm:$0xff]
    %v2370 = vld [vmem:[%s259 + $0x10] sm:$0xff]
    %v2371 = vld [vmem:[%s259 + $0x18] sm:$0xff]
    %v2372 = vld [vmem:[%s259 + $0x20] sm:$0xff]
    %v2373 = vld [vmem:[%s259 + $0x28] sm:$0xff]
    %v2374 = vld [vmem:[%s259 + $0x30] sm:$0xff]
    %v2375 = vld [vmem:[%s259 + $0x38] sm:$0xff]
    %v2376 = vld [vmem:[%s259 + $0x40] sm:$0xff]
    %v2377 = vld [vmem:[%s259 + $0x48] sm:$0x3]
    %v2378 = vstv %s2367
    %v2379 = vmul.f32 %v2378, %v2368
    %v2380 = vmul.f32 %v2378, %v2369
    %v2381 = vmul.f32 %v2378, %v2370
    %v2382 = vmul.f32 %v2378, %v2371
    %v2383 = vmul.f32 %v2378, %v2372
    %v2384 = vmul.f32 %v2378, %v2373
    %v2385 = vmul.f32 %v2378, %v2374
    %v2386 = vmul.f32 %v2378, %v2375
    %v2387 = vmul.f32 %v2378, %v2376
    %v2388 = vmul.f32 %v2378, %v2377
    %v2389 = vadd.f32 %v2357, %v2379
    %v2390 = vadd.f32 %v2358, %v2380
    %v2391 = vadd.f32 %v2359, %v2381
    %v2392 = vadd.f32 %v2360, %v2382
    %v2393 = vadd.f32 %v2361, %v2383
    %v2394 = vadd.f32 %v2362, %v2384
    %v2395 = vadd.f32 %v2363, %v2385
    %v2396 = vadd.f32 %v2364, %v2386
    %v2397 = vadd.f32 %v2365, %v2387
    %v2398 = vadd.f32 %v2366, %v2388
    %s2399 = sld [smem:[#allocation5 + $0x13]]
    %v2400 = vld [vmem:[%s292] sm:$0xff]
    %v2401 = vld [vmem:[%s292 + $0x8] sm:$0xff]
    %v2402 = vld [vmem:[%s292 + $0x10] sm:$0xff]
    %v2403 = vld [vmem:[%s292 + $0x18] sm:$0xff]
    %v2404 = vld [vmem:[%s292 + $0x20] sm:$0xff]
    %v2405 = vld [vmem:[%s292 + $0x28] sm:$0xff]
    %v2406 = vld [vmem:[%s292 + $0x30] sm:$0xff]
    %v2407 = vld [vmem:[%s292 + $0x38] sm:$0xff]
    %v2408 = vld [vmem:[%s292 + $0x40] sm:$0xff]
    %v2409 = vld [vmem:[%s292 + $0x48] sm:$0x3]
    %v2410 = vstv %s2399
    %v2411 = vmul.f32 %v2410, %v2400
    %v2412 = vmul.f32 %v2410, %v2401
    %v2413 = vmul.f32 %v2410, %v2402
    %v2414 = vmul.f32 %v2410, %v2403
    %v2415 = vmul.f32 %v2410, %v2404
    %v2416 = vmul.f32 %v2410, %v2405
    %v2417 = vmul.f32 %v2410, %v2406
    %v2418 = vmul.f32 %v2410, %v2407
    %v2419 = vmul.f32 %v2410, %v2408
    %v2420 = vmul.f32 %v2410, %v2409
    %v2421 = vadd.f32 %v2389, %v2411
    %v2422 = vadd.f32 %v2390, %v2412
    %v2423 = vadd.f32 %v2391, %v2413
    %v2424 = vadd.f32 %v2392, %v2414
    %v2425 = vadd.f32 %v2393, %v2415
    %v2426 = vadd.f32 %v2394, %v2416
    %v2427 = vadd.f32 %v2395, %v2417
    %v2428 = vadd.f32 %v2396, %v2418
    %v2429 = vadd.f32 %v2397, %v2419
    %v2430 = vadd.f32 %v2398, %v2420
    %s2431 = sld [smem:[#allocation5 + $0x14]]
    %v2432 = vld [vmem:[%s325] sm:$0xff]
    %v2433 = vld [vmem:[%s325 + $0x8] sm:$0xff]
    %v2434 = vld [vmem:[%s325 + $0x10] sm:$0xff]
    %v2435 = vld [vmem:[%s325 + $0x18] sm:$0xff]
    %v2436 = vld [vmem:[%s325 + $0x20] sm:$0xff]
    %v2437 = vld [vmem:[%s325 + $0x28] sm:$0xff]
    %v2438 = vld [vmem:[%s325 + $0x30] sm:$0xff]
    %v2439 = vld [vmem:[%s325 + $0x38] sm:$0xff]
    %v2440 = vld [vmem:[%s325 + $0x40] sm:$0xff]
    %v2441 = vld [vmem:[%s325 + $0x48] sm:$0x3]
    %v2442 = vstv %s2431
    %v2443 = vmul.f32 %v2442, %v2432
    %v2444 = vmul.f32 %v2442, %v2433
    %v2445 = vmul.f32 %v2442, %v2434
    %v2446 = vmul.f32 %v2442, %v2435
    %v2447 = vmul.f32 %v2442, %v2436
    %v2448 = vmul.f32 %v2442, %v2437
    %v2449 = vmul.f32 %v2442, %v2438
    %v2450 = vmul.f32 %v2442, %v2439
    %v2451 = vmul.f32 %v2442, %v2440
    %v2452 = vmul.f32 %v2442, %v2441
    %v2453 = vadd.f32 %v2421, %v2443
    %v2454 = vadd.f32 %v2422, %v2444
    %v2455 = vadd.f32 %v2423, %v2445
    %v2456 = vadd.f32 %v2424, %v2446
    %v2457 = vadd.f32 %v2425, %v2447
    %v2458 = vadd.f32 %v2426, %v2448
    %v2459 = vadd.f32 %v2427, %v2449
    %v2460 = vadd.f32 %v2428, %v2450
    %v2461 = vadd.f32 %v2429, %v2451
    %v2462 = vadd.f32 %v2430, %v2452
    %s2463 = sld [smem:[#allocation5 + $0x15]]
    %v2464 = vld [vmem:[%s358] sm:$0xff]
    %v2465 = vld [vmem:[%s358 + $0x8] sm:$0xff]
    %v2466 = vld [vmem:[%s358 + $0x10] sm:$0xff]
    %v2467 = vld [vmem:[%s358 + $0x18] sm:$0xff]
    %v2468 = vld [vmem:[%s358 + $0x20] sm:$0xff]
    %v2469 = vld [vmem:[%s358 + $0x28] sm:$0xff]
    %v2470 = vld [vmem:[%s358 + $0x30] sm:$0xff]
    %v2471 = vld [vmem:[%s358 + $0x38] sm:$0xff]
    %v2472 = vld [vmem:[%s358 + $0x40] sm:$0xff]
    %v2473 = vld [vmem:[%s358 + $0x48] sm:$0x3]
    %v2474 = vstv %s2463
    %v2475 = vmul.f32 %v2474, %v2464
    %v2476 = vmul.f32 %v2474, %v2465
    %v2477 = vmul.f32 %v2474, %v2466
    %v2478 = vmul.f32 %v2474, %v2467
    %v2479 = vmul.f32 %v2474, %v2468
    %v2480 = vmul.f32 %v2474, %v2469
    %v2481 = vmul.f32 %v2474, %v2470
    %v2482 = vmul.f32 %v2474, %v2471
    %v2483 = vmul.f32 %v2474, %v2472
    %v2484 = vmul.f32 %v2474, %v2473
    %v2485 = vadd.f32 %v2453, %v2475
    %v2486 = vadd.f32 %v2454, %v2476
    %v2487 = vadd.f32 %v2455, %v2477
    %v2488 = vadd.f32 %v2456, %v2478
    %v2489 = vadd.f32 %v2457, %v2479
    %v2490 = vadd.f32 %v2458, %v2480
    %v2491 = vadd.f32 %v2459, %v2481
    %v2492 = vadd.f32 %v2460, %v2482
    %v2493 = vadd.f32 %v2461, %v2483
    %v2494 = vadd.f32 %v2462, %v2484
    %s2495 = sld [smem:[#allocation5 + $0x16]]
    %v2496 = vld [vmem:[%s391] sm:$0xff]
    %v2497 = vld [vmem:[%s391 + $0x8] sm:$0xff]
    %v2498 = vld [vmem:[%s391 + $0x10] sm:$0xff]
    %v2499 = vld [vmem:[%s391 + $0x18] sm:$0xff]
    %v2500 = vld [vmem:[%s391 + $0x20] sm:$0xff]
    %v2501 = vld [vmem:[%s391 + $0x28] sm:$0xff]
    %v2502 = vld [vmem:[%s391 + $0x30] sm:$0xff]
    %v2503 = vld [vmem:[%s391 + $0x38] sm:$0xff]
    %v2504 = vld [vmem:[%s391 + $0x40] sm:$0xff]
    %v2505 = vld [vmem:[%s391 + $0x48] sm:$0x3]
    %v2506 = vstv %s2495
    %v2507 = vmul.f32 %v2506, %v2496
    %v2508 = vmul.f32 %v2506, %v2497
    %v2509 = vmul.f32 %v2506, %v2498
    %v2510 = vmul.f32 %v2506, %v2499
    %v2511 = vmul.f32 %v2506, %v2500
    %v2512 = vmul.f32 %v2506, %v2501
    %v2513 = vmul.f32 %v2506, %v2502
    %v2514 = vmul.f32 %v2506, %v2503
    %v2515 = vmul.f32 %v2506, %v2504
    %v2516 = vmul.f32 %v2506, %v2505
    %v2517 = vadd.f32 %v2485, %v2507
    %v2518 = vadd.f32 %v2486, %v2508
    %v2519 = vadd.f32 %v2487, %v2509
    %v2520 = vadd.f32 %v2488, %v2510
    %v2521 = vadd.f32 %v2489, %v2511
    %v2522 = vadd.f32 %v2490, %v2512
    %v2523 = vadd.f32 %v2491, %v2513
    %v2524 = vadd.f32 %v2492, %v2514
    %v2525 = vadd.f32 %v2493, %v2515
    %v2526 = vadd.f32 %v2494, %v2516
    %s2527 = sld [smem:[#allocation5 + $0x17]]
    %v2528 = vld [vmem:[%s424] sm:$0xff]
    %v2529 = vld [vmem:[%s424 + $0x8] sm:$0xff]
    %v2530 = vld [vmem:[%s424 + $0x10] sm:$0xff]
    %v2531 = vld [vmem:[%s424 + $0x18] sm:$0xff]
    %v2532 = vld [vmem:[%s424 + $0x20] sm:$0xff]
    %v2533 = vld [vmem:[%s424 + $0x28] sm:$0xff]
    %v2534 = vld [vmem:[%s424 + $0x30] sm:$0xff]
    %v2535 = vld [vmem:[%s424 + $0x38] sm:$0xff]
    %v2536 = vld [vmem:[%s424 + $0x40] sm:$0xff]
    %v2537 = vld [vmem:[%s424 + $0x48] sm:$0x3]
    %v2538 = vstv %s2527
    %v2539 = vmul.f32 %v2538, %v2528
    %v2540 = vmul.f32 %v2538, %v2529
    %v2541 = vmul.f32 %v2538, %v2530
    %v2542 = vmul.f32 %v2538, %v2531
    %v2543 = vmul.f32 %v2538, %v2532
    %v2544 = vmul.f32 %v2538, %v2533
    %v2545 = vmul.f32 %v2538, %v2534
    %v2546 = vmul.f32 %v2538, %v2535
    %v2547 = vmul.f32 %v2538, %v2536
    %v2548 = vmul.f32 %v2538, %v2537
    %v2549 = vadd.f32 %v2517, %v2539
    %v2550 = vadd.f32 %v2518, %v2540
    %v2551 = vadd.f32 %v2519, %v2541
    %v2552 = vadd.f32 %v2520, %v2542
    %v2553 = vadd.f32 %v2521, %v2543
    %v2554 = vadd.f32 %v2522, %v2544
    %v2555 = vadd.f32 %v2523, %v2545
    %v2556 = vadd.f32 %v2524, %v2546
    %v2557 = vadd.f32 %v2525, %v2547
    %v2558 = vadd.f32 %v2526, %v2548
    %v2559 = vmax.f32 %v2549, 0.0
    %v2560 = vmax.f32 %v2550, 0.0
    %v2561 = vmax.f32 %v2551, 0.0
    %v2562 = vmax.f32 %v2552, 0.0
    %v2563 = vmax.f32 %v2553, 0.0
    %v2564 = vmax.f32 %v2554, 0.0
    %v2565 = vmax.f32 %v2555, 0.0
    %v2566 = vmax.f32 %v2556, 0.0
    %v2567 = vmax.f32 %v2557, 0.0
    %v2568 = vmax.f32 %v2558, 0.0
    %v2569 = vld [vmem:[%s4] sm:$0x1]
    %v2571 = vlaneseq
    %v2572 = vshrl.u32 %v2571, 7
    %v2573 = vsub.s32 0, %v2572
    %v2574 = vrot.slane %v2569, %v2573
    %2576 = vst.msk [vmem:[#allocation2] sm:$0xff] %vm473, %v2574
    %2577 = vst.msk [vmem:[#allocation2 + $0x8] sm:$0xff] %vm473, %v2574
    %2578 = vst.msk [vmem:[#allocation2 + $0x10] sm:$0xff] %vm473, %v2574
    %2579 = vst.msk [vmem:[#allocation2 + $0x18] sm:$0xff] %vm473, %v2574
    %2580 = vst.msk [vmem:[#allocation2 + $0x20] sm:$0xff] %vm473, %v2574
    %2581 = vst.msk [vmem:[#allocation2 + $0x28] sm:$0xff] %vm473, %v2574
    %2582 = vst.msk [vmem:[#allocation2 + $0x30] sm:$0xff] %vm473, %v2574
    %2583 = vst.msk [vmem:[#allocation2 + $0x38] sm:$0xff] %vm473, %v2574
    %2584 = vst.msk [vmem:[#allocation2 + $0x40] sm:$0xff] %vm473, %v2574
    %2585 = vst.msk [vmem:[#allocation2 + $0x48] sm:$0xf] %vm483, %v2574
    %v2586 = vld [vmem:[%s3] sm:$0xff]
    %v2587 = vld [vmem:[%s3 + $0x8] sm:$0xf]
    %v2589 = vsel %vm487, %v2559, 0
    %v2592 = vsel %vm487, %v2560, 0
    %v2595 = vsel %vm487, %v2561, 0
    %v2598 = vsel %vm487, %v2562, 0
    %v2601 = vsel %vm487, %v2563, 0
    %v2604 = vsel %vm487, %v2564, 0
    %v2607 = vsel %vm487, %v2565, 0
    %v2610 = vsel %vm487, %v2566, 0
    %v2613 = vsel %vm487, %v2567, 0
    %v2616 = vsel %vm487, %v2568, 0
    %v2619 = vsel %vm518, %v2587, 0
    %2621 = vmatprep.subr.mxu0 0.0
    %2622 = vmatpush1.msra.mxu0 %v2586
    %2623 = vmatprep.subr.mxu0 0.0
    %2624 = vmatpush1.msra.mxu0 %v2619
    %2625 = vmatprep.subr.mxu0 0.0
    %2626 = vmatpush1.msra.mxu0 0.0
    %2627 = vmatprep.subr.mxu0 0.0
    %2628 = vmatpush1.msra.mxu0 0.0
    %2629 = vmatprep.subr.mxu0 0.0
    %2630 = vmatpush1.msra.mxu0 0.0
    %2631 = vmatprep.subr.mxu0 0.0
    %2632 = vmatpush1.msra.mxu0 0.0
    %2633 = vmatprep.subr.mxu0 0.0
    %2634 = vmatpush1.msra.mxu0 0.0
    %2635 = vmatprep.subr.mxu0 0.0
    %2636 = vmatpush1.msra.mxu0 0.0
    %2637 = vmatprep.subr.mxu0 0.0
    %2638 = vmatpush1.msra.mxu0 0.0
    %2639 = vmatprep.subr.mxu0 0.0
    %2640 = vmatpush1.msra.mxu0 0.0
    %2641 = vmatprep.subr.mxu0 0.0
    %2642 = vmatpush1.msra.mxu0 0.0
    %2643 = vmatprep.subr.mxu0 0.0
    %2644 = vmatpush1.msra.mxu0 0.0
    %2645 = vmatprep.subr.mxu0 0.0
    %2646 = vmatpush1.msra.mxu0 0.0
    %2647 = vmatprep.subr.mxu0 0.0
    %2648 = vmatpush1.msra.mxu0 0.0
    %2649 = vmatprep.subr.mxu0 0.0
    %2650 = vmatpush1.msra.mxu0 0.0
    %2651 = vmatprep.subr.mxu0 0.0
    %2652 = vmatpush1.msra.mxu0 0.0
    %2653 = vmatprep.subr.mxu0 0.0
    %2654 = vmatpush1.msra.mxu0 0.0
    %2655 = vmatprep.subr.mxu0 0.0
    %2656 = vmatpush1.msra.mxu0 0.0
    %2657 = vmatprep.subr.mxu0 0.0
    %2658 = vmatpush1.msra.mxu0 0.0
    %2659 = vmatprep.subr.mxu0 0.0
    %2660 = vmatpush1.msra.mxu0 0.0
    %2661 = vmatprep.subr.mxu0 0.0
    %2662 = vmatpush1.msra.mxu0 0.0
    %2663 = vmatprep.subr.mxu0 0.0
    %2664 = vmatpush1.msra.mxu0 0.0
    %2665 = vmatprep.subr.mxu0 0.0
    %2666 = vmatpush1.msra.mxu0 0.0
    %2667 = vmatprep.subr.mxu0 0.0
    %2668 = vmatpush1.msra.mxu0 0.0
    %2669 = vmatprep.subr.mxu0 0.0
    %2670 = vmatpush1.msra.mxu0 0.0
    %2671 = vmatprep.subr.mxu0 0.0
    %2672 = vmatpush1.msra.mxu0 0.0
    %2673 = vmatprep.subr.mxu0 0.0
    %2674 = vmatpush1.msra.mxu0 0.0
    %2675 = vmatprep.subr.mxu0 0.0
    %2676 = vmatpush1.msra.mxu0 0.0
    %2677 = vmatprep.subr.mxu0 0.0
    %2678 = vmatpush1.msra.mxu0 0.0
    %2679 = vmatprep.subr.mxu0 0.0
    %2680 = vmatpush1.msra.mxu0 0.0
    %2681 = vmatprep.subr.mxu0 0.0
    %2682 = vmatpush1.msra.mxu0 0.0
    %2683 = vmatprep.subr.mxu0 0.0
    %2684 = vmatpush1.msra.mxu0 0.0
    %2685 = vmatprep.mubr.f32.mxu0 0.0
    %2686 = vmatmul.mubr.f32.gmra.mrb[0].mxu0 %v2589
    %v2687 = vpop.f32.mrb[0].mxu0
    %v2688 = vadd.f32 0.0, %v2687
    %v2689 = vpop.f32.mrb[0].mxu0
    %2690 = vmatprep.mubr.f32.mxu0 0.0
    %2691 = vmatmul.mubr.f32.gmra.mrb[0].mxu0 %v2592
    %v2692 = vpop.f32.mrb[0].mxu0
    %v2693 = vadd.f32 0.0, %v2692
    %v2694 = vpop.f32.mrb[0].mxu0
    %2695 = vmatprep.mubr.f32.mxu0 0.0
    %2696 = vmatmul.mubr.f32.gmra.mrb[0].mxu0 %v2595
    %v2697 = vpop.f32.mrb[0].mxu0
    %v2698 = vadd.f32 0.0, %v2697
    %v2699 = vpop.f32.mrb[0].mxu0
    %2700 = vmatprep.mubr.f32.mxu0 0.0
    %2701 = vmatmul.mubr.f32.gmra.mrb[0].mxu0 %v2598
    %v2702 = vpop.f32.mrb[0].mxu0
    %v2703 = vadd.f32 0.0, %v2702
    %v2704 = vpop.f32.mrb[0].mxu0
    %2705 = vmatprep.mubr.f32.mxu0 0.0
    %2706 = vmatmul.mubr.f32.gmra.mrb[0].mxu0 %v2601
    %v2707 = vpop.f32.mrb[0].mxu0
    %v2708 = vadd.f32 0.0, %v2707
    %v2709 = vpop.f32.mrb[0].mxu0
    %2710 = vmatprep.mubr.f32.mxu0 0.0
    %2711 = vmatmul.mubr.f32.gmra.mrb[0].mxu0 %v2604
    %v2712 = vpop.f32.mrb[0].mxu0
    %v2713 = vadd.f32 0.0, %v2712
    %v2714 = vpop.f32.mrb[0].mxu0
    %2715 = vmatprep.mubr.f32.mxu0 0.0
    %2716 = vmatmul.mubr.f32.gmra.mrb[0].mxu0 %v2607
    %v2717 = vpop.f32.mrb[0].mxu0
    %v2718 = vadd.f32 0.0, %v2717
    %v2719 = vpop.f32.mrb[0].mxu0
    %2720 = vmatprep.mubr.f32.mxu0 0.0
    %2721 = vmatmul.mubr.f32.gmra.mrb[0].mxu0 %v2610
    %v2722 = vpop.f32.mrb[0].mxu0
    %v2723 = vadd.f32 0.0, %v2722
    %v2724 = vpop.f32.mrb[0].mxu0
    %2725 = vmatprep.mubr.f32.mxu0 0.0
    %2726 = vmatmul.mubr.f32.gmra.mrb[0].mxu0 %v2613
    %v2727 = vpop.f32.mrb[0].mxu0
    %v2728 = vadd.f32 0.0, %v2727
    %v2729 = vpop.f32.mrb[0].mxu0
    %2730 = vmatprep.mubr.f32.mxu0 0.0
    %2731 = vmatmul.mubr.f32.gmra.mrb[0].mxu0 %v2616
    %v2732 = vpop.f32.mrb[0].mxu0
    %v2733 = vadd.f32 0.0, %v2732
    %v2734 = vpop.f32.mrb[0].mxu0
    %2735 = vdwg.mxu0
    %v2736 = vld [vmem:[#allocation2] sm:$0xff]
    %v2737 = vld [vmem:[#allocation2 + $0x8] sm:$0xff]
    %v2738 = vld [vmem:[#allocation2 + $0x10] sm:$0xff]
    %v2739 = vld [vmem:[#allocation2 + $0x18] sm:$0xff]
    %v2740 = vld [vmem:[#allocation2 + $0x20] sm:$0xff]
    %v2741 = vld [vmem:[#allocation2 + $0x28] sm:$0xff]
    %v2742 = vld [vmem:[#allocation2 + $0x30] sm:$0xff]
    %v2743 = vld [vmem:[#allocation2 + $0x38] sm:$0xff]
    %v2744 = vld [vmem:[#allocation2 + $0x40] sm:$0xff]
    %v2745 = vld [vmem:[#allocation2 + $0x48] sm:$0x3]
    %v2746 = vadd.f32 %v2736, %v2688
    %v2747 = vadd.f32 %v2737, %v2693
    %v2748 = vadd.f32 %v2738, %v2698
    %v2749 = vadd.f32 %v2739, %v2703
    %v2750 = vadd.f32 %v2740, %v2708
    %v2751 = vadd.f32 %v2741, %v2713
    %v2752 = vadd.f32 %v2742, %v2718
    %v2753 = vadd.f32 %v2743, %v2723
    %v2754 = vadd.f32 %v2744, %v2728
    %v2755 = vadd.f32 %v2745, %v2733
    %2756 = vst.msk [vmem:[#allocation2] sm:$0xff] %vm473, %v2746
    %2757 = vst.msk [vmem:[#allocation2 + $0x8] sm:$0xff] %vm473, %v2747
    %2758 = vst.msk [vmem:[#allocation2 + $0x10] sm:$0xff] %vm473, %v2748
    %2759 = vst.msk [vmem:[#allocation2 + $0x18] sm:$0xff] %vm473, %v2749
    %2760 = vst.msk [vmem:[#allocation2 + $0x20] sm:$0xff] %vm473, %v2750
    %2761 = vst.msk [vmem:[#allocation2 + $0x28] sm:$0xff] %vm473, %v2751
    %2762 = vst.msk [vmem:[#allocation2 + $0x30] sm:$0xff] %vm473, %v2752
    %2763 = vst.msk [vmem:[#allocation2 + $0x38] sm:$0xff] %vm473, %v2753
    %2764 = vst.msk [vmem:[#allocation2 + $0x40] sm:$0xff] %vm473, %v2754
    %2765 = vst.msk [vmem:[#allocation2 + $0x48] sm:$0x3] %vm666, %v2755
    %v2766 = vld [vmem:[%s668] sm:$0xff]
    %v2767 = vld [vmem:[%s668 + $0x8] sm:$0xf]
    %v2769 = vsel %vm518, %v2767, 0
    %2771 = vmatprep.subr.mxu0 0.0
    %2772 = vmatpush1.msra.mxu0 %v2766
    %2773 = vmatprep.subr.mxu0 0.0
    %2774 = vmatpush1.msra.mxu0 %v2769
    %2775 = vmatprep.subr.mxu0 0.0
    %2776 = vmatpush1.msra.mxu0 0.0
    %2777 = vmatprep.subr.mxu0 0.0
    %2778 = vmatpush1.msra.mxu0 0.0
    %2779 = vmatprep.subr.mxu0 0.0
    %2780 = vmatpush1.msra.mxu0 0.0
    %2781 = vmatprep.subr.mxu0 0.0
    %2782 = vmatpush1.msra.mxu0 0.0
    %2783 = vmatprep.subr.mxu0 0.0
    %2784 = vmatpush1.msra.mxu0 0.0
    %2785 = vmatprep.subr.mxu0 0.0
    %2786 = vmatpush1.msra.mxu0 0.0
    %2787 = vmatprep.subr.mxu0 0.0
    %2788 = vmatpush1.msra.mxu0 0.0
    %2789 = vmatprep.subr.mxu0 0.0
    %2790 = vmatpush1.msra.mxu0 0.0
    %2791 = vmatprep.subr.mxu0 0.0
    %2792 = vmatpush1.msra.mxu0 0.0
    %2793 = vmatprep.subr.mxu0 0.0
    %2794 = vmatpush1.msra.mxu0 0.0
    %2795 = vmatprep.subr.mxu0 0.0
    %2796 = vmatpush1.msra.mxu0 0.0
    %2797 = vmatprep.subr.mxu0 0.0
    %2798 = vmatpush1.msra.mxu0 0.0
    %2799 = vmatprep.subr.mxu0 0.0
    %2800 = vmatpush1.msra.mxu0 0.0
    %2801 = vmatprep.subr.mxu0 0.0
    %2802 = vmatpush1.msra.mxu0 0.0
    %2803 = vmatprep.subr.mxu0 0.0
    %2804 = vmatpush1.msra.mxu0 0.0
    %2805 = vmatprep.subr.mxu0 0.0
    %2806 = vmatpush1.msra.mxu0 0.0
    %2807 = vmatprep.subr.mxu0 0.0
    %2808 = vmatpush1.msra.mxu0 0.0
    %2809 = vmatprep.subr.mxu0 0.0
    %2810 = vmatpush1.msra.mxu0 0.0
    %2811 = vmatprep.subr.mxu0 0.0
    %2812 = vmatpush1.msra.mxu0 0.0
    %2813 = vmatprep.subr.mxu0 0.0
    %2814 = vmatpush1.msra.mxu0 0.0
    %2815 = vmatprep.subr.mxu0 0.0
    %2816 = vmatpush1.msra.mxu0 0.0
    %2817 = vmatprep.subr.mxu0 0.0
    %2818 = vmatpush1.msra.mxu0 0.0
    %2819 = vmatprep.subr.mxu0 0.0
    %2820 = vmatpush1.msra.mxu0 0.0
    %2821 = vmatprep.subr.mxu0 0.0
    %2822 = vmatpush1.msra.mxu0 0.0
    %2823 = vmatprep.subr.mxu0 0.0
    %2824 = vmatpush1.msra.mxu0 0.0
    %2825 = vmatprep.subr.mxu0 0.0
    %2826 = vmatpush1.msra.mxu0 0.0
    %2827 = vmatprep.subr.mxu0 0.0
    %2828 = vmatpush1.msra.mxu0 0.0
    %2829 = vmatprep.subr.mxu0 0.0
    %2830 = vmatpush1.msra.mxu0 0.0
    %2831 = vmatprep.subr.mxu0 0.0
    %2832 = vmatpush1.msra.mxu0 0.0
    %2833 = vmatprep.subr.mxu0 0.0
    %2834 = vmatpush1.msra.mxu0 0.0
    %2835 = vmatprep.mubr.f32.mxu0 0.0
    %2836 = vmatmul.mubr.f32.gmra.mrb[0].mxu0 %v2589
    %v2837 = vpop.f32.mrb[0].mxu0
    %v2838 = vadd.f32 0.0, %v2837
    %v2839 = vpop.f32.mrb[0].mxu0
    %2840 = vmatprep.mubr.f32.mxu0 0.0
    %2841 = vmatmul.mubr.f32.gmra.mrb[0].mxu0 %v2592
    %v2842 = vpop.f32.mrb[0].mxu0
    %v2843 = vadd.f32 0.0, %v2842
    %v2844 = vpop.f32.mrb[0].mxu0
    %2845 = vmatprep.mubr.f32.mxu0 0.0
    %2846 = vmatmul.mubr.f32.gmra.mrb[0].mxu0 %v2595
    %v2847 = vpop.f32.mrb[0].mxu0
    %v2848 = vadd.f32 0.0, %v2847
    %v2849 = vpop.f32.mrb[0].mxu0
    %2850 = vmatprep.mubr.f32.mxu0 0.0
    %2851 = vmatmul.mubr.f32.gmra.mrb[0].mxu0 %v2598
    %v2852 = vpop.f32.mrb[0].mxu0
    %v2853 = vadd.f32 0.0, %v2852
    %v2854 = vpop.f32.mrb[0].mxu0
    %2855 = vmatprep.mubr.f32.mxu0 0.0
    %2856 = vmatmul.mubr.f32.gmra.mrb[0].mxu0 %v2601
    %v2857 = vpop.f32.mrb[0].mxu0
    %v2858 = vadd.f32 0.0, %v2857
    %v2859 = vpop.f32.mrb[0].mxu0
    %2860 = vmatprep.mubr.f32.mxu0 0.0
    %2861 = vmatmul.mubr.f32.gmra.mrb[0].mxu0 %v2604
    %v2862 = vpop.f32.mrb[0].mxu0
    %v2863 = vadd.f32 0.0, %v2862
    %v2864 = vpop.f32.mrb[0].mxu0
    %2865 = vmatprep.mubr.f32.mxu0 0.0
    %2866 = vmatmul.mubr.f32.gmra.mrb[0].mxu0 %v2607
    %v2867 = vpop.f32.mrb[0].mxu0
    %v2868 = vadd.f32 0.0, %v2867
    %v2869 = vpop.f32.mrb[0].mxu0
    %2870 = vmatprep.mubr.f32.mxu0 0.0
    %2871 = vmatmul.mubr.f32.gmra.mrb[0].mxu0 %v2610
    %v2872 = vpop.f32.mrb[0].mxu0
    %v2873 = vadd.f32 0.0, %v2872
    %v2874 = vpop.f32.mrb[0].mxu0
    %2875 = vmatprep.mubr.f32.mxu0 0.0
    %2876 = vmatmul.mubr.f32.gmra.mrb[0].mxu0 %v2613
    %v2877 = vpop.f32.mrb[0].mxu0
    %v2878 = vadd.f32 0.0, %v2877
    %v2879 = vpop.f32.mrb[0].mxu0
    %2880 = vmatprep.mubr.f32.mxu0 0.0
    %2881 = vmatmul.mubr.f32.gmra.mrb[0].mxu0 %v2616
    %v2882 = vpop.f32.mrb[0].mxu0
    %v2883 = vadd.f32 0.0, %v2882
    %v2884 = vpop.f32.mrb[0].mxu0
    %2885 = vdwg.mxu0
    %v2886 = vld [vmem:[#allocation2 + $0x1] sm:$0xff]
    %v2887 = vld [vmem:[#allocation2 + $0x9] sm:$0xff]
    %v2888 = vld [vmem:[#allocation2 + $0x11] sm:$0xff]
    %v2889 = vld [vmem:[#allocation2 + $0x19] sm:$0xff]
    %v2890 = vld [vmem:[#allocation2 + $0x21] sm:$0xff]
    %v2891 = vld [vmem:[#allocation2 + $0x29] sm:$0xff]
    %v2892 = vld [vmem:[#allocation2 + $0x31] sm:$0xff]
    %v2893 = vld [vmem:[#allocation2 + $0x39] sm:$0xff]
    %v2894 = vld [vmem:[#allocation2 + $0x41] sm:$0xff]
    %v2895 = vld [vmem:[#allocation2 + $0x49] sm:$0x3]
    %v2896 = vadd.f32 %v2886, %v2838
    %v2897 = vadd.f32 %v2887, %v2843
    %v2898 = vadd.f32 %v2888, %v2848
    %v2899 = vadd.f32 %v2889, %v2853
    %v2900 = vadd.f32 %v2890, %v2858
    %v2901 = vadd.f32 %v2891, %v2863
    %v2902 = vadd.f32 %v2892, %v2868
    %v2903 = vadd.f32 %v2893, %v2873
    %v2904 = vadd.f32 %v2894, %v2878
    %v2905 = vadd.f32 %v2895, %v2883
    %2906 = vst.msk [vmem:[#allocation2 + $0x1] sm:$0xff] %vm473, %v2896
    %2907 = vst.msk [vmem:[#allocation2 + $0x9] sm:$0xff] %vm473, %v2897
    %2908 = vst.msk [vmem:[#allocation2 + $0x11] sm:$0xff] %vm473, %v2898
    %2909 = vst.msk [vmem:[#allocation2 + $0x19] sm:$0xff] %vm473, %v2899
    %2910 = vst.msk [vmem:[#allocation2 + $0x21] sm:$0xff] %vm473, %v2900
    %2911 = vst.msk [vmem:[#allocation2 + $0x29] sm:$0xff] %vm473, %v2901
    %2912 = vst.msk [vmem:[#allocation2 + $0x31] sm:$0xff] %vm473, %v2902
    %2913 = vst.msk [vmem:[#allocation2 + $0x39] sm:$0xff] %vm473, %v2903
    %2914 = vst.msk [vmem:[#allocation2 + $0x41] sm:$0xff] %vm473, %v2904
    %2915 = vst.msk [vmem:[#allocation2 + $0x49] sm:$0x3] %vm666, %v2905
    %v2916 = vld [vmem:[%s819] sm:$0xff]
    %v2917 = vld [vmem:[%s819 + $0x8] sm:$0xf]
    %v2919 = vsel %vm518, %v2917, 0
    %2921 = vmatprep.subr.mxu0 0.0
    %2922 = vmatpush1.msra.mxu0 %v2916
    %2923 = vmatprep.subr.mxu0 0.0
    %2924 = vmatpush1.msra.mxu0 %v2919
    %2925 = vmatprep.subr.mxu0 0.0
    %2926 = vmatpush1.msra.mxu0 0.0
    %2927 = vmatprep.subr.mxu0 0.0
    %2928 = vmatpush1.msra.mxu0 0.0
    %2929 = vmatprep.subr.mxu0 0.0
    %2930 = vmatpush1.msra.mxu0 0.0
    %2931 = vmatprep.subr.mxu0 0.0
    %2932 = vmatpush1.msra.mxu0 0.0
    %2933 = vmatprep.subr.mxu0 0.0
    %2934 = vmatpush1.msra.mxu0 0.0
    %2935 = vmatprep.subr.mxu0 0.0
    %2936 = vmatpush1.msra.mxu0 0.0
    %2937 = vmatprep.subr.mxu0 0.0
    %2938 = vmatpush1.msra.mxu0 0.0
    %2939 = vmatprep.subr.mxu0 0.0
    %2940 = vmatpush1.msra.mxu0 0.0
    %2941 = vmatprep.subr.mxu0 0.0
    %2942 = vmatpush1.msra.mxu0 0.0
    %2943 = vmatprep.subr.mxu0 0.0
    %2944 = vmatpush1.msra.mxu0 0.0
    %2945 = vmatprep.subr.mxu0 0.0
    %2946 = vmatpush1.msra.mxu0 0.0
    %2947 = vmatprep.subr.mxu0 0.0
    %2948 = vmatpush1.msra.mxu0 0.0
    %2949 = vmatprep.subr.mxu0 0.0
    %2950 = vmatpush1.msra.mxu0 0.0
    %2951 = vmatprep.subr.mxu0 0.0
    %2952 = vmatpush1.msra.mxu0 0.0
    %2953 = vmatprep.subr.mxu0 0.0
    %2954 = vmatpush1.msra.mxu0 0.0
    %2955 = vmatprep.subr.mxu0 0.0
    %2956 = vmatpush1.msra.mxu0 0.0
    %2957 = vmatprep.subr.mxu0 0.0
    %2958 = vmatpush1.msra.mxu0 0.0
    %2959 = vmatprep.subr.mxu0 0.0
    %2960 = vmatpush1.msra.mxu0 0.0
    %2961 = vmatprep.subr.mxu0 0.0
    %2962 = vmatpush1.msra.mxu0 0.0
    %2963 = vmatprep.subr.mxu0 0.0
    %2964 = vmatpush1.msra.mxu0 0.0
    %2965 = vmatprep.subr.mxu0 0.0
    %2966 = vmatpush1.msra.mxu0 0.0
    %2967 = vmatprep.subr.mxu0 0.0
    %2968 = vmatpush1.msra.mxu0 0.0
    %2969 = vmatprep.subr.mxu0 0.0
    %2970 = vmatpush1.msra.mxu0 0.0
    %2971 = vmatprep.subr.mxu0 0.0
    %2972 = vmatpush1.msra.mxu0 0.0
    %2973 = vmatprep.subr.mxu0 0.0
    %2974 = vmatpush1.msra.mxu0 0.0
    %2975 = vmatprep.subr.mxu0 0.0
    %2976 = vmatpush1.msra.mxu0 0.0
    %2977 = vmatprep.subr.mxu0 0.0
    %2978 = vmatpush1.msra.mxu0 0.0
    %2979 = vmatprep.subr.mxu0 0.0
    %2980 = vmatpush1.msra.mxu0 0.0
    %2981 = vmatprep.subr.mxu0 0.0
    %2982 = vmatpush1.msra.mxu0 0.0
    %2983 = vmatprep.subr.mxu0 0.0
    %2984 = vmatpush1.msra.mxu0 0.0
    %2985 = vmatprep.mubr.f32.mxu0 0.0
    %2986 = vmatmul.mubr.f32.gmra.mrb[0].mxu0 %v2589
    %v2987 = vpop.f32.mrb[0].mxu0
    %v2988 = vadd.f32 0.0, %v2987
    %v2989 = vpop.f32.mrb[0].mxu0
    %2990 = vmatprep.mubr.f32.mxu0 0.0
    %2991 = vmatmul.mubr.f32.gmra.mrb[0].mxu0 %v2592
    %v2992 = vpop.f32.mrb[0].mxu0
    %v2993 = vadd.f32 0.0, %v2992
    %v2994 = vpop.f32.mrb[0].mxu0
    %2995 = vmatprep.mubr.f32.mxu0 0.0
    %2996 = vmatmul.mubr.f32.gmra.mrb[0].mxu0 %v2595
    %v2997 = vpop.f32.mrb[0].mxu0
    %v2998 = vadd.f32 0.0, %v2997
    %v2999 = vpop.f32.mrb[0].mxu0
    %3000 = vmatprep.mubr.f32.mxu0 0.0
    %3001 = vmatmul.mubr.f32.gmra.mrb[0].mxu0 %v2598
    %v3002 = vpop.f32.mrb[0].mxu0
    %v3003 = vadd.f32 0.0, %v3002
    %v3004 = vpop.f32.mrb[0].mxu0
    %3005 = vmatprep.mubr.f32.mxu0 0.0
    %3006 = vmatmul.mubr.f32.gmra.mrb[0].mxu0 %v2601
    %v3007 = vpop.f32.mrb[0].mxu0
    %v3008 = vadd.f32 0.0, %v3007
    %v3009 = vpop.f32.mrb[0].mxu0
    %3010 = vmatprep.mubr.f32.mxu0 0.0
    %3011 = vmatmul.mubr.f32.gmra.mrb[0].mxu0 %v2604
    %v3012 = vpop.f32.mrb[0].mxu0
    %v3013 = vadd.f32 0.0, %v3012
    %v3014 = vpop.f32.mrb[0].mxu0
    %3015 = vmatprep.mubr.f32.mxu0 0.0
    %3016 = vmatmul.mubr.f32.gmra.mrb[0].mxu0 %v2607
    %v3017 = vpop.f32.mrb[0].mxu0
    %v3018 = vadd.f32 0.0, %v3017
    %v3019 = vpop.f32.mrb[0].mxu0
    %3020 = vmatprep.mubr.f32.mxu0 0.0
    %3021 = vmatmul.mubr.f32.gmra.mrb[0].mxu0 %v2610
    %v3022 = vpop.f32.mrb[0].mxu0
    %v3023 = vadd.f32 0.0, %v3022
    %v3024 = vpop.f32.mrb[0].mxu0
    %3025 = vmatprep.mubr.f32.mxu0 0.0
    %3026 = vmatmul.mubr.f32.gmra.mrb[0].mxu0 %v2613
    %v3027 = vpop.f32.mrb[0].mxu0
    %v3028 = vadd.f32 0.0, %v3027
    %v3029 = vpop.f32.mrb[0].mxu0
    %3030 = vmatprep.mubr.f32.mxu0 0.0
    %3031 = vmatmul.mubr.f32.gmra.mrb[0].mxu0 %v2616
    %v3032 = vpop.f32.mrb[0].mxu0
    %v3033 = vadd.f32 0.0, %v3032
    %v3034 = vpop.f32.mrb[0].mxu0
    %3035 = vdwg.mxu0
    %v3036 = vld [vmem:[#allocation2 + $0x2] sm:$0xff]
    %v3037 = vld [vmem:[#allocation2 + $0xa] sm:$0xff]
    %v3038 = vld [vmem:[#allocation2 + $0x12] sm:$0xff]
    %v3039 = vld [vmem:[#allocation2 + $0x1a] sm:$0xff]
    %v3040 = vld [vmem:[#allocation2 + $0x22] sm:$0xff]
    %v3041 = vld [vmem:[#allocation2 + $0x2a] sm:$0xff]
    %v3042 = vld [vmem:[#allocation2 + $0x32] sm:$0xff]
    %v3043 = vld [vmem:[#allocation2 + $0x3a] sm:$0xff]
    %v3044 = vld [vmem:[#allocation2 + $0x42] sm:$0xff]
    %v3045 = vld [vmem:[#allocation2 + $0x4a] sm:$0x3]
    %v3046 = vadd.f32 %v3036, %v2988
    %v3047 = vadd.f32 %v3037, %v2993
    %v3048 = vadd.f32 %v3038, %v2998
    %v3049 = vadd.f32 %v3039, %v3003
    %v3050 = vadd.f32 %v3040, %v3008
    %v3051 = vadd.f32 %v3041, %v3013
    %v3052 = vadd.f32 %v3042, %v3018
    %v3053 = vadd.f32 %v3043, %v3023
    %v3054 = vadd.f32 %v3044, %v3028
    %v3055 = vadd.f32 %v3045, %v3033
    %3056 = vst.msk [vmem:[#allocation2 + $0x2] sm:$0xff] %vm473, %v3046
    %3057 = vst.msk [vmem:[#allocation2 + $0xa] sm:$0xff] %vm473, %v3047
    %3058 = vst.msk [vmem:[#allocation2 + $0x12] sm:$0xff] %vm473, %v3048
    %3059 = vst.msk [vmem:[#allocation2 + $0x1a] sm:$0xff] %vm473, %v3049
    %3060 = vst.msk [vmem:[#allocation2 + $0x22] sm:$0xff] %vm473, %v3050
    %3061 = vst.msk [vmem:[#allocation2 + $0x2a] sm:$0xff] %vm473, %v3051
    %3062 = vst.msk [vmem:[#allocation2 + $0x32] sm:$0xff] %vm473, %v3052
    %3063 = vst.msk [vmem:[#allocation2 + $0x3a] sm:$0xff] %vm473, %v3053
    %3064 = vst.msk [vmem:[#allocation2 + $0x42] sm:$0xff] %vm473, %v3054
    %3065 = vst.msk [vmem:[#allocation2 + $0x4a] sm:$0x3] %vm666, %v3055
    %v3066 = vld [vmem:[#allocation2] sm:$0xff]
    %v3067 = vld [vmem:[#allocation2 + $0x8] sm:$0xff]
    %v3068 = vld [vmem:[#allocation2 + $0x10] sm:$0xff]
    %v3069 = vld [vmem:[#allocation2 + $0x18] sm:$0xff]
    %v3070 = vld [vmem:[#allocation2 + $0x20] sm:$0xff]
    %v3071 = vld [vmem:[#allocation2 + $0x28] sm:$0xff]
    %v3072 = vld [vmem:[#allocation2 + $0x30] sm:$0xff]
    %v3073 = vld [vmem:[#allocation2 + $0x38] sm:$0xff]
    %v3074 = vld [vmem:[#allocation2 + $0x40] sm:$0xff]
    %v3075 = vld [vmem:[#allocation2 + $0x48] sm:$0xf]
    %v3076 = vmax.f32 %v3066, 0.0
    %v3077 = vmax.f32 %v3067, 0.0
    %v3078 = vmax.f32 %v3068, 0.0
    %v3079 = vmax.f32 %v3069, 0.0
    %v3080 = vmax.f32 %v3070, 0.0
    %v3081 = vmax.f32 %v3071, 0.0
    %v3082 = vmax.f32 %v3072, 0.0
    %v3083 = vmax.f32 %v3073, 0.0
    %v3084 = vmax.f32 %v3074, 0.0
    %v3085 = vmax.f32 %v3075, 0.0
    %v3086 = vld [vmem:[%s6] sm:$0x1]
    %v3088 = vlaneseq
    %v3089 = vshrl.u32 %v3088, 7
    %v3090 = vsub.s32 0, %v3089
    %v3091 = vrot.slane %v3086, %v3090
    %3093 = vst.msk [vmem:[#allocation3] sm:$0xff] %vm997, %v3091
    %3094 = vst.msk [vmem:[#allocation3 + $0x8] sm:$0xff] %vm997, %v3091
    %3095 = vst.msk [vmem:[#allocation3 + $0x10] sm:$0xff] %vm997, %v3091
    %3096 = vst.msk [vmem:[#allocation3 + $0x18] sm:$0xff] %vm997, %v3091
    %3097 = vst.msk [vmem:[#allocation3 + $0x20] sm:$0xff] %vm997, %v3091
    %3098 = vst.msk [vmem:[#allocation3 + $0x28] sm:$0xff] %vm997, %v3091
    %3099 = vst.msk [vmem:[#allocation3 + $0x30] sm:$0xff] %vm997, %v3091
    %3100 = vst.msk [vmem:[#allocation3 + $0x38] sm:$0xff] %vm997, %v3091
    %3101 = vst.msk [vmem:[#allocation3 + $0x40] sm:$0xff] %vm997, %v3091
    %3102 = vst.msk [vmem:[#allocation3 + $0x48] sm:$0x3f] %vm1007, %v3091
    %v3103 = vld [vmem:[%s5] sm:$0xff]
    %v3105 = vsel %vm473, %v3076, 0
    %v3108 = vsel %vm473, %v3077, 0
    %v3111 = vsel %vm473, %v3078, 0
    %v3114 = vsel %vm473, %v3079, 0
    %v3117 = vsel %vm473, %v3080, 0
    %v3120 = vsel %vm473, %v3081, 0
    %v3123 = vsel %vm473, %v3082, 0
    %v3126 = vsel %vm473, %v3083, 0
    %v3129 = vsel %vm473, %v3084, 0
    %v3132 = vsel %vm473, %v3085, 0
    %3134 = vmatprep.subr.mxu0 0.0
    %3135 = vmatpush1.msra.mxu0 %v3103
    %3136 = vmatprep.subr.mxu0 0.0
    %3137 = vmatpush1.msra.mxu0 0.0
    %3138 = vmatprep.subr.mxu0 0.0
    %3139 = vmatpush1.msra.mxu0 0.0
    %3140 = vmatprep.subr.mxu0 0.0
    %3141 = vmatpush1.msra.mxu0 0.0
    %3142 = vmatprep.subr.mxu0 0.0
    %3143 = vmatpush1.msra.mxu0 0.0
    %3144 = vmatprep.subr.mxu0 0.0
    %3145 = vmatpush1.msra.mxu0 0.0
    %3146 = vmatprep.subr.mxu0 0.0
    %3147 = vmatpush1.msra.mxu0 0.0
    %3148 = vmatprep.subr.mxu0 0.0
    %3149 = vmatpush1.msra.mxu0 0.0
    %3150 = vmatprep.subr.mxu0 0.0
    %3151 = vmatpush1.msra.mxu0 0.0
    %3152 = vmatprep.subr.mxu0 0.0
    %3153 = vmatpush1.msra.mxu0 0.0
    %3154 = vmatprep.subr.mxu0 0.0
    %3155 = vmatpush1.msra.mxu0 0.0
    %3156 = vmatprep.subr.mxu0 0.0
    %3157 = vmatpush1.msra.mxu0 0.0
    %3158 = vmatprep.subr.mxu0 0.0
    %3159 = vmatpush1.msra.mxu0 0.0
    %3160 = vmatprep.subr.mxu0 0.0
    %3161 = vmatpush1.msra.mxu0 0.0
    %3162 = vmatprep.subr.mxu0 0.0
    %3163 = vmatpush1.msra.mxu0 0.0
    %3164 = vmatprep.subr.mxu0 0.0
    %3165 = vmatpush1.msra.mxu0 0.0
    %3166 = vmatprep.subr.mxu0 0.0
    %3167 = vmatpush1.msra.mxu0 0.0
    %3168 = vmatprep.subr.mxu0 0.0
    %3169 = vmatpush1.msra.mxu0 0.0
    %3170 = vmatprep.subr.mxu0 0.0
    %3171 = vmatpush1.msra.mxu0 0.0
    %3172 = vmatprep.subr.mxu0 0.0
    %3173 = vmatpush1.msra.mxu0 0.0
    %3174 = vmatprep.subr.mxu0 0.0
    %3175 = vmatpush1.msra.mxu0 0.0
    %3176 = vmatprep.subr.mxu0 0.0
    %3177 = vmatpush1.msra.mxu0 0.0
    %3178 = vmatprep.subr.mxu0 0.0
    %3179 = vmatpush1.msra.mxu0 0.0
    %3180 = vmatprep.subr.mxu0 0.0
    %3181 = vmatpush1.msra.mxu0 0.0
    %3182 = vmatprep.subr.mxu0 0.0
    %3183 = vmatpush1.msra.mxu0 0.0
    %3184 = vmatprep.subr.mxu0 0.0
    %3185 = vmatpush1.msra.mxu0 0.0
    %3186 = vmatprep.subr.mxu0 0.0
    %3187 = vmatpush1.msra.mxu0 0.0
    %3188 = vmatprep.subr.mxu0 0.0
    %3189 = vmatpush1.msra.mxu0 0.0
    %3190 = vmatprep.subr.mxu0 0.0
    %3191 = vmatpush1.msra.mxu0 0.0
    %3192 = vmatprep.subr.mxu0 0.0
    %3193 = vmatpush1.msra.mxu0 0.0
    %3194 = vmatprep.subr.mxu0 0.0
    %3195 = vmatpush1.msra.mxu0 0.0
    %3196 = vmatprep.subr.mxu0 0.0
    %3197 = vmatpush1.msra.mxu0 0.0
    %3198 = vmatprep.mubr.f32.mxu0 0.0
    %3199 = vmatmul.mubr.f32.gmra.mrb[0].mxu0 %v3105
    %v3200 = vpop.f32.mrb[0].mxu0
    %v3201 = vadd.f32 0.0, %v3200
    %v3202 = vpop.f32.mrb[0].mxu0
    %3203 = vmatprep.mubr.f32.mxu0 0.0
    %3204 = vmatmul.mubr.f32.gmra.mrb[0].mxu0 %v3108
    %v3205 = vpop.f32.mrb[0].mxu0
    %v3206 = vadd.f32 0.0, %v3205
    %v3207 = vpop.f32.mrb[0].mxu0
    %3208 = vmatprep.mubr.f32.mxu0 0.0
    %3209 = vmatmul.mubr.f32.gmra.mrb[0].mxu0 %v3111
    %v3210 = vpop.f32.mrb[0].mxu0
    %v3211 = vadd.f32 0.0, %v3210
    %v3212 = vpop.f32.mrb[0].mxu0
    %3213 = vmatprep.mubr.f32.mxu0 0.0
    %3214 = vmatmul.mubr.f32.gmra.mrb[0].mxu0 %v3114
    %v3215 = vpop.f32.mrb[0].mxu0
    %v3216 = vadd.f32 0.0, %v3215
    %v3217 = vpop.f32.mrb[0].mxu0
    %3218 = vmatprep.mubr.f32.mxu0 0.0
    %3219 = vmatmul.mubr.f32.gmra.mrb[0].mxu0 %v3117
    %v3220 = vpop.f32.mrb[0].mxu0
    %v3221 = vadd.f32 0.0, %v3220
    %v3222 = vpop.f32.mrb[0].mxu0
    %3223 = vmatprep.mubr.f32.mxu0 0.0
    %3224 = vmatmul.mubr.f32.gmra.mrb[0].mxu0 %v3120
    %v3225 = vpop.f32.mrb[0].mxu0
    %v3226 = vadd.f32 0.0, %v3225
    %v3227 = vpop.f32.mrb[0].mxu0
    %3228 = vmatprep.mubr.f32.mxu0 0.0
    %3229 = vmatmul.mubr.f32.gmra.mrb[0].mxu0 %v3123
    %v3230 = vpop.f32.mrb[0].mxu0
    %v3231 = vadd.f32 0.0, %v3230
    %v3232 = vpop.f32.mrb[0].mxu0
    %3233 = vmatprep.mubr.f32.mxu0 0.0
    %3234 = vmatmul.mubr.f32.gmra.mrb[0].mxu0 %v3126
    %v3235 = vpop.f32.mrb[0].mxu0
    %v3236 = vadd.f32 0.0, %v3235
    %v3237 = vpop.f32.mrb[0].mxu0
    %3238 = vmatprep.mubr.f32.mxu0 0.0
    %3239 = vmatmul.mubr.f32.gmra.mrb[0].mxu0 %v3129
    %v3240 = vpop.f32.mrb[0].mxu0
    %v3241 = vadd.f32 0.0, %v3240
    %v3242 = vpop.f32.mrb[0].mxu0
    %3243 = vmatprep.mubr.f32.mxu0 0.0
    %3244 = vmatmul.mubr.f32.gmra.mrb[0].mxu0 %v3132
    %v3245 = vpop.f32.mrb[0].mxu0
    %v3246 = vadd.f32 0.0, %v3245
    %v3247 = vpop.f32.mrb[0].mxu0
    %3248 = vdwg.mxu0
    %v3249 = vld [vmem:[#allocation3] sm:$0xff]
    %v3250 = vld [vmem:[#allocation3 + $0x8] sm:$0xff]
    %v3251 = vld [vmem:[#allocation3 + $0x10] sm:$0xff]
    %v3252 = vld [vmem:[#allocation3 + $0x18] sm:$0xff]
    %v3253 = vld [vmem:[#allocation3 + $0x20] sm:$0xff]
    %v3254 = vld [vmem:[#allocation3 + $0x28] sm:$0xff]
    %v3255 = vld [vmem:[#allocation3 + $0x30] sm:$0xff]
    %v3256 = vld [vmem:[#allocation3 + $0x38] sm:$0xff]
    %v3257 = vld [vmem:[#allocation3 + $0x40] sm:$0xff]
    %v3258 = vld [vmem:[#allocation3 + $0x48] sm:$0xf]
    %v3259 = vadd.f32 %v3249, %v3201
    %v3260 = vadd.f32 %v3250, %v3206
    %v3261 = vadd.f32 %v3251, %v3211
    %v3262 = vadd.f32 %v3252, %v3216
    %v3263 = vadd.f32 %v3253, %v3221
    %v3264 = vadd.f32 %v3254, %v3226
    %v3265 = vadd.f32 %v3255, %v3231
    %v3266 = vadd.f32 %v3256, %v3236
    %v3267 = vadd.f32 %v3257, %v3241
    %v3268 = vadd.f32 %v3258, %v3246
    %3269 = vst.msk [vmem:[#allocation3] sm:$0xff] %vm997, %v3259
    %3270 = vst.msk [vmem:[#allocation3 + $0x8] sm:$0xff] %vm997, %v3260
    %3271 = vst.msk [vmem:[#allocation3 + $0x10] sm:$0xff] %vm997, %v3261
    %3272 = vst.msk [vmem:[#allocation3 + $0x18] sm:$0xff] %vm997, %v3262
    %3273 = vst.msk [vmem:[#allocation3 + $0x20] sm:$0xff] %vm997, %v3263
    %3274 = vst.msk [vmem:[#allocation3 + $0x28] sm:$0xff] %vm997, %v3264
    %3275 = vst.msk [vmem:[#allocation3 + $0x30] sm:$0xff] %vm997, %v3265
    %3276 = vst.msk [vmem:[#allocation3 + $0x38] sm:$0xff] %vm997, %v3266
    %3277 = vst.msk [vmem:[#allocation3 + $0x40] sm:$0xff] %vm997, %v3267
    %3278 = vst.msk [vmem:[#allocation3 + $0x48] sm:$0xf] %vm1184, %v3268
    %v3279 = vld [vmem:[%s1186] sm:$0xff]
    %3280 = vmatprep.subr.mxu0 0.0
    %3281 = vmatpush1.msra.mxu0 %v3279
    %3282 = vmatprep.subr.mxu0 0.0
    %3283 = vmatpush1.msra.mxu0 0.0
    %3284 = vmatprep.subr.mxu0 0.0
    %3285 = vmatpush1.msra.mxu0 0.0
    %3286 = vmatprep.subr.mxu0 0.0
    %3287 = vmatpush1.msra.mxu0 0.0
    %3288 = vmatprep.subr.mxu0 0.0
    %3289 = vmatpush1.msra.mxu0 0.0
    %3290 = vmatprep.subr.mxu0 0.0
    %3291 = vmatpush1.msra.mxu0 0.0
    %3292 = vmatprep.subr.mxu0 0.0
    %3293 = vmatpush1.msra.mxu0 0.0
    %3294 = vmatprep.subr.mxu0 0.0
    %3295 = vmatpush1.msra.mxu0 0.0
    %3296 = vmatprep.subr.mxu0 0.0
    %3297 = vmatpush1.msra.mxu0 0.0
    %3298 = vmatprep.subr.mxu0 0.0
    %3299 = vmatpush1.msra.mxu0 0.0
    %3300 = vmatprep.subr.mxu0 0.0
    %3301 = vmatpush1.msra.mxu0 0.0
    %3302 = vmatprep.subr.mxu0 0.0
    %3303 = vmatpush1.msra.mxu0 0.0
    %3304 = vmatprep.subr.mxu0 0.0
    %3305 = vmatpush1.msra.mxu0 0.0
    %3306 = vmatprep.subr.mxu0 0.0
    %3307 = vmatpush1.msra.mxu0 0.0
    %3308 = vmatprep.subr.mxu0 0.0
    %3309 = vmatpush1.msra.mxu0 0.0
    %3310 = vmatprep.subr.mxu0 0.0
    %3311 = vmatpush1.msra.mxu0 0.0
    %3312 = vmatprep.subr.mxu0 0.0
    %3313 = vmatpush1.msra.mxu0 0.0
    %3314 = vmatprep.subr.mxu0 0.0
    %3315 = vmatpush1.msra.mxu0 0.0
    %3316 = vmatprep.subr.mxu0 0.0
    %3317 = vmatpush1.msra.mxu0 0.0
    %3318 = vmatprep.subr.mxu0 0.0
    %3319 = vmatpush1.msra.mxu0 0.0
    %3320 = vmatprep.subr.mxu0 0.0
    %3321 = vmatpush1.msra.mxu0 0.0
    %3322 = vmatprep.subr.mxu0 0.0
    %3323 = vmatpush1.msra.mxu0 0.0
    %3324 = vmatprep.subr.mxu0 0.0
    %3325 = vmatpush1.msra.mxu0 0.0
    %3326 = vmatprep.subr.mxu0 0.0
    %3327 = vmatpush1.msra.mxu0 0.0
    %3328 = vmatprep.subr.mxu0 0.0
    %3329 = vmatpush1.msra.mxu0 0.0
    %3330 = vmatprep.subr.mxu0 0.0
    %3331 = vmatpush1.msra.mxu0 0.0
    %3332 = vmatprep.subr.mxu0 0.0
    %3333 = vmatpush1.msra.mxu0 0.0
    %3334 = vmatprep.subr.mxu0 0.0
    %3335 = vmatpush1.msra.mxu0 0.0
    %3336 = vmatprep.subr.mxu0 0.0
    %3337 = vmatpush1.msra.mxu0 0.0
    %3338 = vmatprep.subr.mxu0 0.0
    %3339 = vmatpush1.msra.mxu0 0.0
    %3340 = vmatprep.subr.mxu0 0.0
    %3341 = vmatpush1.msra.mxu0 0.0
    %3342 = vmatprep.subr.mxu0 0.0
    %3343 = vmatpush1.msra.mxu0 0.0
    %3344 = vmatprep.mubr.f32.mxu0 0.0
    %3345 = vmatmul.mubr.f32.gmra.mrb[0].mxu0 %v3105
    %v3346 = vpop.f32.mrb[0].mxu0
    %v3347 = vadd.f32 0.0, %v3346
    %v3348 = vpop.f32.mrb[0].mxu0
    %3349 = vmatprep.mubr.f32.mxu0 0.0
    %3350 = vmatmul.mubr.f32.gmra.mrb[0].mxu0 %v3108
    %v3351 = vpop.f32.mrb[0].mxu0
    %v3352 = vadd.f32 0.0, %v3351
    %v3353 = vpop.f32.mrb[0].mxu0
    %3354 = vmatprep.mubr.f32.mxu0 0.0
    %3355 = vmatmul.mubr.f32.gmra.mrb[0].mxu0 %v3111
    %v3356 = vpop.f32.mrb[0].mxu0
    %v3357 = vadd.f32 0.0, %v3356
    %v3358 = vpop.f32.mrb[0].mxu0
    %3359 = vmatprep.mubr.f32.mxu0 0.0
    %3360 = vmatmul.mubr.f32.gmra.mrb[0].mxu0 %v3114
    %v3361 = vpop.f32.mrb[0].mxu0
    %v3362 = vadd.f32 0.0, %v3361
    %v3363 = vpop.f32.mrb[0].mxu0
    %3364 = vmatprep.mubr.f32.mxu0 0.0
    %3365 = vmatmul.mubr.f32.gmra.mrb[0].mxu0 %v3117
    %v3366 = vpop.f32.mrb[0].mxu0
    %v3367 = vadd.f32 0.0, %v3366
    %v3368 = vpop.f32.mrb[0].mxu0
    %3369 = vmatprep.mubr.f32.mxu0 0.0
    %3370 = vmatmul.mubr.f32.gmra.mrb[0].mxu0 %v3120
    %v3371 = vpop.f32.mrb[0].mxu0
    %v3372 = vadd.f32 0.0, %v3371
    %v3373 = vpop.f32.mrb[0].mxu0
    %3374 = vmatprep.mubr.f32.mxu0 0.0
    %3375 = vmatmul.mubr.f32.gmra.mrb[0].mxu0 %v3123
    %v3376 = vpop.f32.mrb[0].mxu0
    %v3377 = vadd.f32 0.0, %v3376
    %v3378 = vpop.f32.mrb[0].mxu0
    %3379 = vmatprep.mubr.f32.mxu0 0.0
    %3380 = vmatmul.mubr.f32.gmra.mrb[0].mxu0 %v3126
    %v3381 = vpop.f32.mrb[0].mxu0
    %v3382 = vadd.f32 0.0, %v3381
    %v3383 = vpop.f32.mrb[0].mxu0
    %3384 = vmatprep.mubr.f32.mxu0 0.0
    %3385 = vmatmul.mubr.f32.gmra.mrb[0].mxu0 %v3129
    %v3386 = vpop.f32.mrb[0].mxu0
    %v3387 = vadd.f32 0.0, %v3386
    %v3388 = vpop.f32.mrb[0].mxu0
    %3389 = vmatprep.mubr.f32.mxu0 0.0
    %3390 = vmatmul.mubr.f32.gmra.mrb[0].mxu0 %v3132
    %v3391 = vpop.f32.mrb[0].mxu0
    %v3392 = vadd.f32 0.0, %v3391
    %v3393 = vpop.f32.mrb[0].mxu0
    %3394 = vdwg.mxu0
    %v3395 = vld [vmem:[#allocation3 + $0x1] sm:$0xff]
    %v3396 = vld [vmem:[#allocation3 + $0x9] sm:$0xff]
    %v3397 = vld [vmem:[#allocation3 + $0x11] sm:$0xff]
    %v3398 = vld [vmem:[#allocation3 + $0x19] sm:$0xff]
    %v3399 = vld [vmem:[#allocation3 + $0x21] sm:$0xff]
    %v3400 = vld [vmem:[#allocation3 + $0x29] sm:$0xff]
    %v3401 = vld [vmem:[#allocation3 + $0x31] sm:$0xff]
    %v3402 = vld [vmem:[#allocation3 + $0x39] sm:$0xff]
    %v3403 = vld [vmem:[#allocation3 + $0x41] sm:$0xff]
    %v3404 = vld [vmem:[#allocation3 + $0x49] sm:$0xf]
    %v3405 = vadd.f32 %v3395, %v3347
    %v3406 = vadd.f32 %v3396, %v3352
    %v3407 = vadd.f32 %v3397, %v3357
    %v3408 = vadd.f32 %v3398, %v3362
    %v3409 = vadd.f32 %v3399, %v3367
    %v3410 = vadd.f32 %v3400, %v3372
    %v3411 = vadd.f32 %v3401, %v3377
    %v3412 = vadd.f32 %v3402, %v3382
    %v3413 = vadd.f32 %v3403, %v3387
    %v3414 = vadd.f32 %v3404, %v3392
    %3415 = vst.msk [vmem:[#allocation3 + $0x1] sm:$0xff] %vm997, %v3405
    %3416 = vst.msk [vmem:[#allocation3 + $0x9] sm:$0xff] %vm997, %v3406
    %3417 = vst.msk [vmem:[#allocation3 + $0x11] sm:$0xff] %vm997, %v3407
    %3418 = vst.msk [vmem:[#allocation3 + $0x19] sm:$0xff] %vm997, %v3408
    %3419 = vst.msk [vmem:[#allocation3 + $0x21] sm:$0xff] %vm997, %v3409
    %3420 = vst.msk [vmem:[#allocation3 + $0x29] sm:$0xff] %vm997, %v3410
    %3421 = vst.msk [vmem:[#allocation3 + $0x31] sm:$0xff] %vm997, %v3411
    %3422 = vst.msk [vmem:[#allocation3 + $0x39] sm:$0xff] %vm997, %v3412
    %3423 = vst.msk [vmem:[#allocation3 + $0x41] sm:$0xff] %vm997, %v3413
    %3424 = vst.msk [vmem:[#allocation3 + $0x49] sm:$0xf] %vm1184, %v3414
    %v3425 = vld [vmem:[%s1333] sm:$0xff]
    %3426 = vmatprep.subr.mxu0 0.0
    %3427 = vmatpush1.msra.mxu0 %v3425
    %3428 = vmatprep.subr.mxu0 0.0
    %3429 = vmatpush1.msra.mxu0 0.0
    %3430 = vmatprep.subr.mxu0 0.0
    %3431 = vmatpush1.msra.mxu0 0.0
    %3432 = vmatprep.subr.mxu0 0.0
    %3433 = vmatpush1.msra.mxu0 0.0
    %3434 = vmatprep.subr.mxu0 0.0
    %3435 = vmatpush1.msra.mxu0 0.0
    %3436 = vmatprep.subr.mxu0 0.0
    %3437 = vmatpush1.msra.mxu0 0.0
    %3438 = vmatprep.subr.mxu0 0.0
    %3439 = vmatpush1.msra.mxu0 0.0
    %3440 = vmatprep.subr.mxu0 0.0
    %3441 = vmatpush1.msra.mxu0 0.0
    %3442 = vmatprep.subr.mxu0 0.0
    %3443 = vmatpush1.msra.mxu0 0.0
    %3444 = vmatprep.subr.mxu0 0.0
    %3445 = vmatpush1.msra.mxu0 0.0
    %3446 = vmatprep.subr.mxu0 0.0
    %3447 = vmatpush1.msra.mxu0 0.0
    %3448 = vmatprep.subr.mxu0 0.0
    %3449 = vmatpush1.msra.mxu0 0.0
    %3450 = vmatprep.subr.mxu0 0.0
    %3451 = vmatpush1.msra.mxu0 0.0
    %3452 = vmatprep.subr.mxu0 0.0
    %3453 = vmatpush1.msra.mxu0 0.0
    %3454 = vmatprep.subr.mxu0 0.0
    %3455 = vmatpush1.msra.mxu0 0.0
    %3456 = vmatprep.subr.mxu0 0.0
    %3457 = vmatpush1.msra.mxu0 0.0
    %3458 = vmatprep.subr.mxu0 0.0
    %3459 = vmatpush1.msra.mxu0 0.0
    %3460 = vmatprep.subr.mxu0 0.0
    %3461 = vmatpush1.msra.mxu0 0.0
    %3462 = vmatprep.subr.mxu0 0.0
    %3463 = vmatpush1.msra.mxu0 0.0
    %3464 = vmatprep.subr.mxu0 0.0
    %3465 = vmatpush1.msra.mxu0 0.0
    %3466 = vmatprep.subr.mxu0 0.0
    %3467 = vmatpush1.msra.mxu0 0.0
    %3468 = vmatprep.subr.mxu0 0.0
    %3469 = vmatpush1.msra.mxu0 0.0
    %3470 = vmatprep.subr.mxu0 0.0
    %3471 = vmatpush1.msra.mxu0 0.0
    %3472 = vmatprep.subr.mxu0 0.0
    %3473 = vmatpush1.msra.mxu0 0.0
    %3474 = vmatprep.subr.mxu0 0.0
    %3475 = vmatpush1.msra.mxu0 0.0
    %3476 = vmatprep.subr.mxu0 0.0
    %3477 = vmatpush1.msra.mxu0 0.0
    %3478 = vmatprep.subr.mxu0 0.0
    %3479 = vmatpush1.msra.mxu0 0.0
    %3480 = vmatprep.subr.mxu0 0.0
    %3481 = vmatpush1.msra.mxu0 0.0
    %3482 = vmatprep.subr.mxu0 0.0
    %3483 = vmatpush1.msra.mxu0 0.0
    %3484 = vmatprep.subr.mxu0 0.0
    %3485 = vmatpush1.msra.mxu0 0.0
    %3486 = vmatprep.subr.mxu0 0.0
    %3487 = vmatpush1.msra.mxu0 0.0
    %3488 = vmatprep.subr.mxu0 0.0
    %3489 = vmatpush1.msra.mxu0 0.0
    %3490 = vmatprep.mubr.f32.mxu0 0.0
    %3491 = vmatmul.mubr.f32.gmra.mrb[0].mxu0 %v3105
    %v3492 = vpop.f32.mrb[0].mxu0
    %v3493 = vadd.f32 0.0, %v3492
    %v3494 = vpop.f32.mrb[0].mxu0
    %3495 = vmatprep.mubr.f32.mxu0 0.0
    %3496 = vmatmul.mubr.f32.gmra.mrb[0].mxu0 %v3108
    %v3497 = vpop.f32.mrb[0].mxu0
    %v3498 = vadd.f32 0.0, %v3497
    %v3499 = vpop.f32.mrb[0].mxu0
    %3500 = vmatprep.mubr.f32.mxu0 0.0
    %3501 = vmatmul.mubr.f32.gmra.mrb[0].mxu0 %v3111
    %v3502 = vpop.f32.mrb[0].mxu0
    %v3503 = vadd.f32 0.0, %v3502
    %v3504 = vpop.f32.mrb[0].mxu0
    %3505 = vmatprep.mubr.f32.mxu0 0.0
    %3506 = vmatmul.mubr.f32.gmra.mrb[0].mxu0 %v3114
    %v3507 = vpop.f32.mrb[0].mxu0
    %v3508 = vadd.f32 0.0, %v3507
    %v3509 = vpop.f32.mrb[0].mxu0
    %3510 = vmatprep.mubr.f32.mxu0 0.0
    %3511 = vmatmul.mubr.f32.gmra.mrb[0].mxu0 %v3117
    %v3512 = vpop.f32.mrb[0].mxu0
    %v3513 = vadd.f32 0.0, %v3512
    %v3514 = vpop.f32.mrb[0].mxu0
    %3515 = vmatprep.mubr.f32.mxu0 0.0
    %3516 = vmatmul.mubr.f32.gmra.mrb[0].mxu0 %v3120
    %v3517 = vpop.f32.mrb[0].mxu0
    %v3518 = vadd.f32 0.0, %v3517
    %v3519 = vpop.f32.mrb[0].mxu0
    %3520 = vmatprep.mubr.f32.mxu0 0.0
    %3521 = vmatmul.mubr.f32.gmra.mrb[0].mxu0 %v3123
    %v3522 = vpop.f32.mrb[0].mxu0
    %v3523 = vadd.f32 0.0, %v3522
    %v3524 = vpop.f32.mrb[0].mxu0
    %3525 = vmatprep.mubr.f32.mxu0 0.0
    %3526 = vmatmul.mubr.f32.gmra.mrb[0].mxu0 %v3126
    %v3527 = vpop.f32.mrb[0].mxu0
    %v3528 = vadd.f32 0.0, %v3527
    %v3529 = vpop.f32.mrb[0].mxu0
    %3530 = vmatprep.mubr.f32.mxu0 0.0
    %3531 = vmatmul.mubr.f32.gmra.mrb[0].mxu0 %v3129
    %v3532 = vpop.f32.mrb[0].mxu0
    %v3533 = vadd.f32 0.0, %v3532
    %v3534 = vpop.f32.mrb[0].mxu0
    %3535 = vmatprep.mubr.f32.mxu0 0.0
    %3536 = vmatmul.mubr.f32.gmra.mrb[0].mxu0 %v3132
    %v3537 = vpop.f32.mrb[0].mxu0
    %v3538 = vadd.f32 0.0, %v3537
    %v3539 = vpop.f32.mrb[0].mxu0
    %3540 = vdwg.mxu0
    %v3541 = vld [vmem:[#allocation3 + $0x2] sm:$0xff]
    %v3542 = vld [vmem:[#allocation3 + $0xa] sm:$0xff]
    %v3543 = vld [vmem:[#allocation3 + $0x12] sm:$0xff]
    %v3544 = vld [vmem:[#allocation3 + $0x1a] sm:$0xff]
    %v3545 = vld [vmem:[#allocation3 + $0x22] sm:$0xff]
    %v3546 = vld [vmem:[#allocation3 + $0x2a] sm:$0xff]
    %v3547 = vld [vmem:[#allocation3 + $0x32] sm:$0xff]
    %v3548 = vld [vmem:[#allocation3 + $0x3a] sm:$0xff]
    %v3549 = vld [vmem:[#allocation3 + $0x42] sm:$0xff]
    %v3550 = vld [vmem:[#allocation3 + $0x4a] sm:$0xf]
    %v3551 = vadd.f32 %v3541, %v3493
    %v3552 = vadd.f32 %v3542, %v3498
    %v3553 = vadd.f32 %v3543, %v3503
    %v3554 = vadd.f32 %v3544, %v3508
    %v3555 = vadd.f32 %v3545, %v3513
    %v3556 = vadd.f32 %v3546, %v3518
    %v3557 = vadd.f32 %v3547, %v3523
    %v3558 = vadd.f32 %v3548, %v3528
    %v3559 = vadd.f32 %v3549, %v3533
    %v3560 = vadd.f32 %v3550, %v3538
    %3561 = vst.msk [vmem:[#allocation3 + $0x2] sm:$0xff] %vm997, %v3551
    %3562 = vst.msk [vmem:[#allocation3 + $0xa] sm:$0xff] %vm997, %v3552
    %3563 = vst.msk [vmem:[#allocation3 + $0x12] sm:$0xff] %vm997, %v3553
    %3564 = vst.msk [vmem:[#allocation3 + $0x1a] sm:$0xff] %vm997, %v3554
    %3565 = vst.msk [vmem:[#allocation3 + $0x22] sm:$0xff] %vm997, %v3555
    %3566 = vst.msk [vmem:[#allocation3 + $0x2a] sm:$0xff] %vm997, %v3556
    %3567 = vst.msk [vmem:[#allocation3 + $0x32] sm:$0xff] %vm997, %v3557
    %3568 = vst.msk [vmem:[#allocation3 + $0x3a] sm:$0xff] %vm997, %v3558
    %3569 = vst.msk [vmem:[#allocation3 + $0x42] sm:$0xff] %vm997, %v3559
    %3570 = vst.msk [vmem:[#allocation3 + $0x4a] sm:$0xf] %vm1184, %v3560
    %v3571 = vld [vmem:[#allocation3] sm:$0xff]
    %v3572 = vld [vmem:[#allocation3 + $0x8] sm:$0xff]
    %v3573 = vld [vmem:[#allocation3 + $0x10] sm:$0xff]
    %v3574 = vld [vmem:[#allocation3 + $0x18] sm:$0xff]
    %v3575 = vld [vmem:[#allocation3 + $0x20] sm:$0xff]
    %v3576 = vld [vmem:[#allocation3 + $0x28] sm:$0xff]
    %v3577 = vld [vmem:[#allocation3 + $0x30] sm:$0xff]
    %v3578 = vld [vmem:[#allocation3 + $0x38] sm:$0xff]
    %v3579 = vld [vmem:[#allocation3 + $0x40] sm:$0xff]
    %v3580 = vld [vmem:[#allocation3 + $0x48] sm:$0x3f]
    %v3581 = vmax.f32 %v3571, 0.0
    %v3582 = vmax.f32 %v3572, 0.0
    %v3583 = vmax.f32 %v3573, 0.0
    %v3584 = vmax.f32 %v3574, 0.0
    %v3585 = vmax.f32 %v3575, 0.0
    %v3586 = vmax.f32 %v3576, 0.0
    %v3587 = vmax.f32 %v3577, 0.0
    %v3588 = vmax.f32 %v3578, 0.0
    %v3589 = vmax.f32 %v3579, 0.0
    %v3590 = vmax.f32 %v3580, 0.0
    %v3591 = vld [vmem:[%s8] sm:$0x1]
    %v3593 = vlaneseq
    %v3594 = vshrl.u32 %v3593, 7
    %v3595 = vsub.s32 0, %v3594
    %v3596 = vrot.slane %v3591, %v3595
    %3598 = vst [vmem:[#allocation4] sm:$0xff] %v3596
    %3599 = vst [vmem:[#allocation4 + $0x8] sm:$0xff] %v3596
    %3600 = vst [vmem:[#allocation4 + $0x10] sm:$0xff] %v3596
    %3601 = vst [vmem:[#allocation4 + $0x18] sm:$0xff] %v3596
    %3602 = vst [vmem:[#allocation4 + $0x20] sm:$0xff] %v3596
    %3603 = vst [vmem:[#allocation4 + $0x28] sm:$0xff] %v3596
    %3604 = vst [vmem:[#allocation4 + $0x30] sm:$0xff] %v3596
    %3605 = vst [vmem:[#allocation4 + $0x38] sm:$0xff] %v3596
    %3606 = vst [vmem:[#allocation4 + $0x40] sm:$0xff] %v3596
    %3607 = vst [vmem:[#allocation4 + $0x48] sm:$0xff] %v3596
    %v3608 = vld [vmem:[%s7] sm:$0xf]
    %v3610 = vsel %vm997, %v3581, 0
    %v3613 = vsel %vm997, %v3582, 0
    %v3616 = vsel %vm997, %v3583, 0
    %v3619 = vsel %vm997, %v3584, 0
    %v3622 = vsel %vm997, %v3585, 0
    %v3625 = vsel %vm997, %v3586, 0
    %v3628 = vsel %vm997, %v3587, 0
    %v3631 = vsel %vm997, %v3588, 0
    %v3634 = vsel %vm997, %v3589, 0
    %v3637 = vsel %vm997, %v3590, 0
    %v3640 = vsel %vm518, %v3608, 0
    %3642 = vmatprep.subr.mxu0 0.0
    %3643 = vmatpush1.msra.mxu0 %v3640
    %3644 = vmatprep.subr.mxu0 0.0
    %3645 = vmatpush1.msra.mxu0 0.0
    %3646 = vmatprep.subr.mxu0 0.0
    %3647 = vmatpush1.msra.mxu0 0.0
    %3648 = vmatprep.subr.mxu0 0.0
    %3649 = vmatpush1.msra.mxu0 0.0
    %3650 = vmatprep.subr.mxu0 0.0
    %3651 = vmatpush1.msra.mxu0 0.0
    %3652 = vmatprep.subr.mxu0 0.0
    %3653 = vmatpush1.msra.mxu0 0.0
    %3654 = vmatprep.subr.mxu0 0.0
    %3655 = vmatpush1.msra.mxu0 0.0
    %3656 = vmatprep.subr.mxu0 0.0
    %3657 = vmatpush1.msra.mxu0 0.0
    %3658 = vmatprep.subr.mxu0 0.0
    %3659 = vmatpush1.msra.mxu0 0.0
    %3660 = vmatprep.subr.mxu0 0.0
    %3661 = vmatpush1.msra.mxu0 0.0
    %3662 = vmatprep.subr.mxu0 0.0
    %3663 = vmatpush1.msra.mxu0 0.0
    %3664 = vmatprep.subr.mxu0 0.0
    %3665 = vmatpush1.msra.mxu0 0.0
    %3666 = vmatprep.subr.mxu0 0.0
    %3667 = vmatpush1.msra.mxu0 0.0
    %3668 = vmatprep.subr.mxu0 0.0
    %3669 = vmatpush1.msra.mxu0 0.0
    %3670 = vmatprep.subr.mxu0 0.0
    %3671 = vmatpush1.msra.mxu0 0.0
    %3672 = vmatprep.subr.mxu0 0.0
    %3673 = vmatpush1.msra.mxu0 0.0
    %3674 = vmatprep.subr.mxu0 0.0
    %3675 = vmatpush1.msra.mxu0 0.0
    %3676 = vmatprep.subr.mxu0 0.0
    %3677 = vmatpush1.msra.mxu0 0.0
    %3678 = vmatprep.subr.mxu0 0.0
    %3679 = vmatpush1.msra.mxu0 0.0
    %3680 = vmatprep.subr.mxu0 0.0
    %3681 = vmatpush1.msra.mxu0 0.0
    %3682 = vmatprep.subr.mxu0 0.0
    %3683 = vmatpush1.msra.mxu0 0.0
    %3684 = vmatprep.subr.mxu0 0.0
    %3685 = vmatpush1.msra.mxu0 0.0
    %3686 = vmatprep.subr.mxu0 0.0
    %3687 = vmatpush1.msra.mxu0 0.0
    %3688 = vmatprep.subr.mxu0 0.0
    %3689 = vmatpush1.msra.mxu0 0.0
    %3690 = vmatprep.subr.mxu0 0.0
    %3691 = vmatpush1.msra.mxu0 0.0
    %3692 = vmatprep.subr.mxu0 0.0
    %3693 = vmatpush1.msra.mxu0 0.0
    %3694 = vmatprep.subr.mxu0 0.0
    %3695 = vmatpush1.msra.mxu0 0.0
    %3696 = vmatprep.subr.mxu0 0.0
    %3697 = vmatpush1.msra.mxu0 0.0
    %3698 = vmatprep.subr.mxu0 0.0
    %3699 = vmatpush1.msra.mxu0 0.0
    %3700 = vmatprep.subr.mxu0 0.0
    %3701 = vmatpush1.msra.mxu0 0.0
    %3702 = vmatprep.subr.mxu0 0.0
    %3703 = vmatpush1.msra.mxu0 0.0
    %3704 = vmatprep.subr.mxu0 0.0
    %3705 = vmatpush1.msra.mxu0 0.0
    %3706 = vmatprep.mubr.f32.mxu0 0.0
    %3707 = vmatmul.mubr.f32.gmra.mrb[0].mxu0 %v3610
    %v3708 = vpop.f32.mrb[0].mxu0
    %v3709 = vadd.f32 0.0, %v3708
    %v3710 = vpop.f32.mrb[0].mxu0
    %3711 = vmatprep.mubr.f32.mxu0 0.0
    %3712 = vmatmul.mubr.f32.gmra.mrb[0].mxu0 %v3613
    %v3713 = vpop.f32.mrb[0].mxu0
    %v3714 = vadd.f32 0.0, %v3713
    %v3715 = vpop.f32.mrb[0].mxu0
    %3716 = vmatprep.mubr.f32.mxu0 0.0
    %3717 = vmatmul.mubr.f32.gmra.mrb[0].mxu0 %v3616
    %v3718 = vpop.f32.mrb[0].mxu0
    %v3719 = vadd.f32 0.0, %v3718
    %v3720 = vpop.f32.mrb[0].mxu0
    %3721 = vmatprep.mubr.f32.mxu0 0.0
    %3722 = vmatmul.mubr.f32.gmra.mrb[0].mxu0 %v3619
    %v3723 = vpop.f32.mrb[0].mxu0
    %v3724 = vadd.f32 0.0, %v3723
    %v3725 = vpop.f32.mrb[0].mxu0
    %3726 = vmatprep.mubr.f32.mxu0 0.0
    %3727 = vmatmul.mubr.f32.gmra.mrb[0].mxu0 %v3622
    %v3728 = vpop.f32.mrb[0].mxu0
    %v3729 = vadd.f32 0.0, %v3728
    %v3730 = vpop.f32.mrb[0].mxu0
    %3731 = vmatprep.mubr.f32.mxu0 0.0
    %3732 = vmatmul.mubr.f32.gmra.mrb[0].mxu0 %v3625
    %v3733 = vpop.f32.mrb[0].mxu0
    %v3734 = vadd.f32 0.0, %v3733
    %v3735 = vpop.f32.mrb[0].mxu0
    %3736 = vmatprep.mubr.f32.mxu0 0.0
    %3737 = vmatmul.mubr.f32.gmra.mrb[0].mxu0 %v3628
    %v3738 = vpop.f32.mrb[0].mxu0
    %v3739 = vadd.f32 0.0, %v3738
    %v3740 = vpop.f32.mrb[0].mxu0
    %3741 = vmatprep.mubr.f32.mxu0 0.0
    %3742 = vmatmul.mubr.f32.gmra.mrb[0].mxu0 %v3631
    %v3743 = vpop.f32.mrb[0].mxu0
    %v3744 = vadd.f32 0.0, %v3743
    %v3745 = vpop.f32.mrb[0].mxu0
    %3746 = vmatprep.mubr.f32.mxu0 0.0
    %3747 = vmatmul.mubr.f32.gmra.mrb[0].mxu0 %v3634
    %v3748 = vpop.f32.mrb[0].mxu0
    %v3749 = vadd.f32 0.0, %v3748
    %v3750 = vpop.f32.mrb[0].mxu0
    %3751 = vmatprep.mubr.f32.mxu0 0.0
    %3752 = vmatmul.mubr.f32.gmra.mrb[0].mxu0 %v3637
    %v3753 = vpop.f32.mrb[0].mxu0
    %v3754 = vadd.f32 0.0, %v3753
    %v3755 = vpop.f32.mrb[0].mxu0
    %3756 = vdwg.mxu0
    %v3757 = vld [vmem:[#allocation4] sm:$0xff]
    %v3758 = vld [vmem:[#allocation4 + $0x8] sm:$0xff]
    %v3759 = vld [vmem:[#allocation4 + $0x10] sm:$0xff]
    %v3760 = vld [vmem:[#allocation4 + $0x18] sm:$0xff]
    %v3761 = vld [vmem:[#allocation4 + $0x20] sm:$0xff]
    %v3762 = vld [vmem:[#allocation4 + $0x28] sm:$0xff]
    %v3763 = vld [vmem:[#allocation4 + $0x30] sm:$0xff]
    %v3764 = vld [vmem:[#allocation4 + $0x38] sm:$0xff]
    %v3765 = vld [vmem:[#allocation4 + $0x40] sm:$0xff]
    %v3766 = vld [vmem:[#allocation4 + $0x48] sm:$0x3f]
    %v3767 = vadd.f32 %v3757, %v3709
    %v3768 = vadd.f32 %v3758, %v3714
    %v3769 = vadd.f32 %v3759, %v3719
    %v3770 = vadd.f32 %v3760, %v3724
    %v3771 = vadd.f32 %v3761, %v3729
    %v3772 = vadd.f32 %v3762, %v3734
    %v3773 = vadd.f32 %v3763, %v3739
    %v3774 = vadd.f32 %v3764, %v3744
    %v3775 = vadd.f32 %v3765, %v3749
    %v3776 = vadd.f32 %v3766, %v3754
    %3777 = vst [vmem:[#allocation4] sm:$0xff] %v3767
    %3778 = vst [vmem:[#allocation4 + $0x8] sm:$0xff] %v3768
    %3779 = vst [vmem:[#allocation4 + $0x10] sm:$0xff] %v3769
    %3780 = vst [vmem:[#allocation4 + $0x18] sm:$0xff] %v3770
    %3781 = vst [vmem:[#allocation4 + $0x20] sm:$0xff] %v3771
    %3782 = vst [vmem:[#allocation4 + $0x28] sm:$0xff] %v3772
    %3783 = vst [vmem:[#allocation4 + $0x30] sm:$0xff] %v3773
    %3784 = vst [vmem:[#allocation4 + $0x38] sm:$0xff] %v3774
    %3785 = vst [vmem:[#allocation4 + $0x40] sm:$0xff] %v3775
    %3786 = vst [vmem:[#allocation4 + $0x48] sm:$0x3f] %v3776
    %v3787 = vld [vmem:[%s1696] sm:$0xf]
    %v3789 = vsel %vm518, %v3787, 0
    %3791 = vmatprep.subr.mxu0 0.0
    %3792 = vmatpush1.msra.mxu0 %v3789
    %3793 = vmatprep.subr.mxu0 0.0
    %3794 = vmatpush1.msra.mxu0 0.0
    %3795 = vmatprep.subr.mxu0 0.0
    %3796 = vmatpush1.msra.mxu0 0.0
    %3797 = vmatprep.subr.mxu0 0.0
    %3798 = vmatpush1.msra.mxu0 0.0
    %3799 = vmatprep.subr.mxu0 0.0
    %3800 = vmatpush1.msra.mxu0 0.0
    %3801 = vmatprep.subr.mxu0 0.0
    %3802 = vmatpush1.msra.mxu0 0.0
    %3803 = vmatprep.subr.mxu0 0.0
    %3804 = vmatpush1.msra.mxu0 0.0
    %3805 = vmatprep.subr.mxu0 0.0
    %3806 = vmatpush1.msra.mxu0 0.0
    %3807 = vmatprep.subr.mxu0 0.0
    %3808 = vmatpush1.msra.mxu0 0.0
    %3809 = vmatprep.subr.mxu0 0.0
    %3810 = vmatpush1.msra.mxu0 0.0
    %3811 = vmatprep.subr.mxu0 0.0
    %3812 = vmatpush1.msra.mxu0 0.0
    %3813 = vmatprep.subr.mxu0 0.0
    %3814 = vmatpush1.msra.mxu0 0.0
    %3815 = vmatprep.subr.mxu0 0.0
    %3816 = vmatpush1.msra.mxu0 0.0
    %3817 = vmatprep.subr.mxu0 0.0
    %3818 = vmatpush1.msra.mxu0 0.0
    %3819 = vmatprep.subr.mxu0 0.0
    %3820 = vmatpush1.msra.mxu0 0.0
    %3821 = vmatprep.subr.mxu0 0.0
    %3822 = vmatpush1.msra.mxu0 0.0
    %3823 = vmatprep.subr.mxu0 0.0
    %3824 = vmatpush1.msra.mxu0 0.0
    %3825 = vmatprep.subr.mxu0 0.0
    %3826 = vmatpush1.msra.mxu0 0.0
    %3827 = vmatprep.subr.mxu0 0.0
    %3828 = vmatpush1.msra.mxu0 0.0
    %3829 = vmatprep.subr.mxu0 0.0
    %3830 = vmatpush1.msra.mxu0 0.0
    %3831 = vmatprep.subr.mxu0 0.0
    %3832 = vmatpush1.msra.mxu0 0.0
    %3833 = vmatprep.subr.mxu0 0.0
    %3834 = vmatpush1.msra.mxu0 0.0
    %3835 = vmatprep.subr.mxu0 0.0
    %3836 = vmatpush1.msra.mxu0 0.0
    %3837 = vmatprep.subr.mxu0 0.0
    %3838 = vmatpush1.msra.mxu0 0.0
    %3839 = vmatprep.subr.mxu0 0.0
    %3840 = vmatpush1.msra.mxu0 0.0
    %3841 = vmatprep.subr.mxu0 0.0
    %3842 = vmatpush1.msra.mxu0 0.0
    %3843 = vmatprep.subr.mxu0 0.0
    %3844 = vmatpush1.msra.mxu0 0.0
    %3845 = vmatprep.subr.mxu0 0.0
    %3846 = vmatpush1.msra.mxu0 0.0
    %3847 = vmatprep.subr.mxu0 0.0
    %3848 = vmatpush1.msra.mxu0 0.0
    %3849 = vmatprep.subr.mxu0 0.0
    %3850 = vmatpush1.msra.mxu0 0.0
    %3851 = vmatprep.subr.mxu0 0.0
    %3852 = vmatpush1.msra.mxu0 0.0
    %3853 = vmatprep.subr.mxu0 0.0
    %3854 = vmatpush1.msra.mxu0 0.0
    %3855 = vmatprep.mubr.f32.mxu0 0.0
    %3856 = vmatmul.mubr.f32.gmra.mrb[0].mxu0 %v3610
    %v3857 = vpop.f32.mrb[0].mxu0
    %v3858 = vadd.f32 0.0, %v3857
    %v3859 = vpop.f32.mrb[0].mxu0
    %3860 = vmatprep.mubr.f32.mxu0 0.0
    %3861 = vmatmul.mubr.f32.gmra.mrb[0].mxu0 %v3613
    %v3862 = vpop.f32.mrb[0].mxu0
    %v3863 = vadd.f32 0.0, %v3862
    %v3864 = vpop.f32.mrb[0].mxu0
    %3865 = vmatprep.mubr.f32.mxu0 0.0
    %3866 = vmatmul.mubr.f32.gmra.mrb[0].mxu0 %v3616
    %v3867 = vpop.f32.mrb[0].mxu0
    %v3868 = vadd.f32 0.0, %v3867
    %v3869 = vpop.f32.mrb[0].mxu0
    %3870 = vmatprep.mubr.f32.mxu0 0.0
    %3871 = vmatmul.mubr.f32.gmra.mrb[0].mxu0 %v3619
    %v3872 = vpop.f32.mrb[0].mxu0
    %v3873 = vadd.f32 0.0, %v3872
    %v3874 = vpop.f32.mrb[0].mxu0
    %3875 = vmatprep.mubr.f32.mxu0 0.0
    %3876 = vmatmul.mubr.f32.gmra.mrb[0].mxu0 %v3622
    %v3877 = vpop.f32.mrb[0].mxu0
    %v3878 = vadd.f32 0.0, %v3877
    %v3879 = vpop.f32.mrb[0].mxu0
    %3880 = vmatprep.mubr.f32.mxu0 0.0
    %3881 = vmatmul.mubr.f32.gmra.mrb[0].mxu0 %v3625
    %v3882 = vpop.f32.mrb[0].mxu0
    %v3883 = vadd.f32 0.0, %v3882
    %v3884 = vpop.f32.mrb[0].mxu0
    %3885 = vmatprep.mubr.f32.mxu0 0.0
    %3886 = vmatmul.mubr.f32.gmra.mrb[0].mxu0 %v3628
    %v3887 = vpop.f32.mrb[0].mxu0
    %v3888 = vadd.f32 0.0, %v3887
    %v3889 = vpop.f32.mrb[0].mxu0
    %3890 = vmatprep.mubr.f32.mxu0 0.0
    %3891 = vmatmul.mubr.f32.gmra.mrb[0].mxu0 %v3631
    %v3892 = vpop.f32.mrb[0].mxu0
    %v3893 = vadd.f32 0.0, %v3892
    %v3894 = vpop.f32.mrb[0].mxu0
    %3895 = vmatprep.mubr.f32.mxu0 0.0
    %3896 = vmatmul.mubr.f32.gmra.mrb[0].mxu0 %v3634
    %v3897 = vpop.f32.mrb[0].mxu0
    %v3898 = vadd.f32 0.0, %v3897
    %v3899 = vpop.f32.mrb[0].mxu0
    %3900 = vmatprep.mubr.f32.mxu0 0.0
    %3901 = vmatmul.mubr.f32.gmra.mrb[0].mxu0 %v3637
    %v3902 = vpop.f32.mrb[0].mxu0
    %v3903 = vadd.f32 0.0, %v3902
    %v3904 = vpop.f32.mrb[0].mxu0
    %3905 = vdwg.mxu0
    %v3906 = vld [vmem:[#allocation4 + $0x1] sm:$0xff]
    %v3907 = vld [vmem:[#allocation4 + $0x9] sm:$0xff]
    %v3908 = vld [vmem:[#allocation4 + $0x11] sm:$0xff]
    %v3909 = vld [vmem:[#allocation4 + $0x19] sm:$0xff]
    %v3910 = vld [vmem:[#allocation4 + $0x21] sm:$0xff]
    %v3911 = vld [vmem:[#allocation4 + $0x29] sm:$0xff]
    %v3912 = vld [vmem:[#allocation4 + $0x31] sm:$0xff]
    %v3913 = vld [vmem:[#allocation4 + $0x39] sm:$0xff]
    %v3914 = vld [vmem:[#allocation4 + $0x41] sm:$0xff]
    %v3915 = vld [vmem:[#allocation4 + $0x49] sm:$0x3f]
    %v3916 = vadd.f32 %v3906, %v3858
    %v3917 = vadd.f32 %v3907, %v3863
    %v3918 = vadd.f32 %v3908, %v3868
    %v3919 = vadd.f32 %v3909, %v3873
    %v3920 = vadd.f32 %v3910, %v3878
    %v3921 = vadd.f32 %v3911, %v3883
    %v3922 = vadd.f32 %v3912, %v3888
    %v3923 = vadd.f32 %v3913, %v3893
    %v3924 = vadd.f32 %v3914, %v3898
    %v3925 = vadd.f32 %v3915, %v3903
    %3926 = vst [vmem:[#allocation4 + $0x1] sm:$0xff] %v3916
    %3927 = vst [vmem:[#allocation4 + $0x9] sm:$0xff] %v3917
    %3928 = vst [vmem:[#allocation4 + $0x11] sm:$0xff] %v3918
    %3929 = vst [vmem:[#allocation4 + $0x19] sm:$0xff] %v3919
    %3930 = vst [vmem:[#allocation4 + $0x21] sm:$0xff] %v3920
    %3931 = vst [vmem:[#allocation4 + $0x29] sm:$0xff] %v3921
    %3932 = vst [vmem:[#allocation4 + $0x31] sm:$0xff] %v3922
    %3933 = vst [vmem:[#allocation4 + $0x39] sm:$0xff] %v3923
    %3934 = vst [vmem:[#allocation4 + $0x41] sm:$0xff] %v3924
    %3935 = vst [vmem:[#allocation4 + $0x49] sm:$0x3f] %v3925
    %v3936 = vld [vmem:[%s1846] sm:$0xf]
    %v3938 = vsel %vm518, %v3936, 0
    %3940 = vmatprep.subr.mxu0 0.0
    %3941 = vmatpush1.msra.mxu0 %v3938
    %3942 = vmatprep.subr.mxu0 0.0
    %3943 = vmatpush1.msra.mxu0 0.0
    %3944 = vmatprep.subr.mxu0 0.0
    %3945 = vmatpush1.msra.mxu0 0.0
    %3946 = vmatprep.subr.mxu0 0.0
    %3947 = vmatpush1.msra.mxu0 0.0
    %3948 = vmatprep.subr.mxu0 0.0
    %3949 = vmatpush1.msra.mxu0 0.0
    %3950 = vmatprep.subr.mxu0 0.0
    %3951 = vmatpush1.msra.mxu0 0.0
    %3952 = vmatprep.subr.mxu0 0.0
    %3953 = vmatpush1.msra.mxu0 0.0
    %3954 = vmatprep.subr.mxu0 0.0
    %3955 = vmatpush1.msra.mxu0 0.0
    %3956 = vmatprep.subr.mxu0 0.0
    %3957 = vmatpush1.msra.mxu0 0.0
    %3958 = vmatprep.subr.mxu0 0.0
    %3959 = vmatpush1.msra.mxu0 0.0
    %3960 = vmatprep.subr.mxu0 0.0
    %3961 = vmatpush1.msra.mxu0 0.0
    %3962 = vmatprep.subr.mxu0 0.0
    %3963 = vmatpush1.msra.mxu0 0.0
    %3964 = vmatprep.subr.mxu0 0.0
    %3965 = vmatpush1.msra.mxu0 0.0
    %3966 = vmatprep.subr.mxu0 0.0
    %3967 = vmatpush1.msra.mxu0 0.0
    %3968 = vmatprep.subr.mxu0 0.0
    %3969 = vmatpush1.msra.mxu0 0.0
    %3970 = vmatprep.subr.mxu0 0.0
    %3971 = vmatpush1.msra.mxu0 0.0
    %3972 = vmatprep.subr.mxu0 0.0
    %3973 = vmatpush1.msra.mxu0 0.0
    %3974 = vmatprep.subr.mxu0 0.0
    %3975 = vmatpush1.msra.mxu0 0.0
    %3976 = vmatprep.subr.mxu0 0.0
    %3977 = vmatpush1.msra.mxu0 0.0
    %3978 = vmatprep.subr.mxu0 0.0
    %3979 = vmatpush1.msra.mxu0 0.0
    %3980 = vmatprep.subr.mxu0 0.0
    %3981 = vmatpush1.msra.mxu0 0.0
    %3982 = vmatprep.subr.mxu0 0.0
    %3983 = vmatpush1.msra.mxu0 0.0
    %3984 = vmatprep.subr.mxu0 0.0
    %3985 = vmatpush1.msra.mxu0 0.0
    %3986 = vmatprep.subr.mxu0 0.0
    %3987 = vmatpush1.msra.mxu0 0.0
    %3988 = vmatprep.subr.mxu0 0.0
    %3989 = vmatpush1.msra.mxu0 0.0
    %3990 = vmatprep.subr.mxu0 0.0
    %3991 = vmatpush1.msra.mxu0 0.0
    %3992 = vmatprep.subr.mxu0 0.0
    %3993 = vmatpush1.msra.mxu0 0.0
    %3994 = vmatprep.subr.mxu0 0.0
    %3995 = vmatpush1.msra.mxu0 0.0
    %3996 = vmatprep.subr.mxu0 0.0
    %3997 = vmatpush1.msra.mxu0 0.0
    %3998 = vmatprep.subr.mxu0 0.0
    %3999 = vmatpush1.msra.mxu0 0.0
    %4000 = vmatprep.subr.mxu0 0.0
    %4001 = vmatpush1.msra.mxu0 0.0
    %4002 = vmatprep.subr.mxu0 0.0
    %4003 = vmatpush1.msra.mxu0 0.0
    %4004 = vmatprep.mubr.f32.mxu0 0.0
    %4005 = vmatmul.mubr.f32.gmra.mrb[0].mxu0 %v3610
    %v4006 = vpop.f32.mrb[0].mxu0
    %v4007 = vadd.f32 0.0, %v4006
    %v4008 = vpop.f32.mrb[0].mxu0
    %4009 = vmatprep.mubr.f32.mxu0 0.0
    %4010 = vmatmul.mubr.f32.gmra.mrb[0].mxu0 %v3613
    %v4011 = vpop.f32.mrb[0].mxu0
    %v4012 = vadd.f32 0.0, %v4011
    %v4013 = vpop.f32.mrb[0].mxu0
    %4014 = vmatprep.mubr.f32.mxu0 0.0
    %4015 = vmatmul.mubr.f32.gmra.mrb[0].mxu0 %v3616
    %v4016 = vpop.f32.mrb[0].mxu0
    %v4017 = vadd.f32 0.0, %v4016
    %v4018 = vpop.f32.mrb[0].mxu0
    %4019 = vmatprep.mubr.f32.mxu0 0.0
    %4020 = vmatmul.mubr.f32.gmra.mrb[0].mxu0 %v3619
    %v4021 = vpop.f32.mrb[0].mxu0
    %v4022 = vadd.f32 0.0, %v4021
    %v4023 = vpop.f32.mrb[0].mxu0
    %4024 = vmatprep.mubr.f32.mxu0 0.0
    %4025 = vmatmul.mubr.f32.gmra.mrb[0].mxu0 %v3622
    %v4026 = vpop.f32.mrb[0].mxu0
    %v4027 = vadd.f32 0.0, %v4026
    %v4028 = vpop.f32.mrb[0].mxu0
    %4029 = vmatprep.mubr.f32.mxu0 0.0
    %4030 = vmatmul.mubr.f32.gmra.mrb[0].mxu0 %v3625
    %v4031 = vpop.f32.mrb[0].mxu0
    %v4032 = vadd.f32 0.0, %v4031
    %v4033 = vpop.f32.mrb[0].mxu0
    %4034 = vmatprep.mubr.f32.mxu0 0.0
    %4035 = vmatmul.mubr.f32.gmra.mrb[0].mxu0 %v3628
    %v4036 = vpop.f32.mrb[0].mxu0
    %v4037 = vadd.f32 0.0, %v4036
    %v4038 = vpop.f32.mrb[0].mxu0
    %4039 = vmatprep.mubr.f32.mxu0 0.0
    %4040 = vmatmul.mubr.f32.gmra.mrb[0].mxu0 %v3631
    %v4041 = vpop.f32.mrb[0].mxu0
    %v4042 = vadd.f32 0.0, %v4041
    %v4043 = vpop.f32.mrb[0].mxu0
    %4044 = vmatprep.mubr.f32.mxu0 0.0
    %4045 = vmatmul.mubr.f32.gmra.mrb[0].mxu0 %v3634
    %v4046 = vpop.f32.mrb[0].mxu0
    %v4047 = vadd.f32 0.0, %v4046
    %v4048 = vpop.f32.mrb[0].mxu0
    %4049 = vmatprep.mubr.f32.mxu0 0.0
    %4050 = vmatmul.mubr.f32.gmra.mrb[0].mxu0 %v3637
    %v4051 = vpop.f32.mrb[0].mxu0
    %v4052 = vadd.f32 0.0, %v4051
    %v4053 = vpop.f32.mrb[0].mxu0
    %4054 = vdwg.mxu0
    %v4055 = vld [vmem:[#allocation4 + $0x2] sm:$0xff]
    %v4056 = vld [vmem:[#allocation4 + $0xa] sm:$0xff]
    %v4057 = vld [vmem:[#allocation4 + $0x12] sm:$0xff]
    %v4058 = vld [vmem:[#allocation4 + $0x1a] sm:$0xff]
    %v4059 = vld [vmem:[#allocation4 + $0x22] sm:$0xff]
    %v4060 = vld [vmem:[#allocation4 + $0x2a] sm:$0xff]
    %v4061 = vld [vmem:[#allocation4 + $0x32] sm:$0xff]
    %v4062 = vld [vmem:[#allocation4 + $0x3a] sm:$0xff]
    %v4063 = vld [vmem:[#allocation4 + $0x42] sm:$0xff]
    %v4064 = vld [vmem:[#allocation4 + $0x4a] sm:$0x3f]
    %v4065 = vadd.f32 %v4055, %v4007
    %v4066 = vadd.f32 %v4056, %v4012
    %v4067 = vadd.f32 %v4057, %v4017
    %v4068 = vadd.f32 %v4058, %v4022
    %v4069 = vadd.f32 %v4059, %v4027
    %v4070 = vadd.f32 %v4060, %v4032
    %v4071 = vadd.f32 %v4061, %v4037
    %v4072 = vadd.f32 %v4062, %v4042
    %v4073 = vadd.f32 %v4063, %v4047
    %v4074 = vadd.f32 %v4064, %v4052
    %4075 = vst [vmem:[#allocation4 + $0x2] sm:$0xff] %v4065
    %4076 = vst [vmem:[#allocation4 + $0xa] sm:$0xff] %v4066
    %4077 = vst [vmem:[#allocation4 + $0x12] sm:$0xff] %v4067
    %4078 = vst [vmem:[#allocation4 + $0x1a] sm:$0xff] %v4068
    %4079 = vst [vmem:[#allocation4 + $0x22] sm:$0xff] %v4069
    %4080 = vst [vmem:[#allocation4 + $0x2a] sm:$0xff] %v4070
    %4081 = vst [vmem:[#allocation4 + $0x32] sm:$0xff] %v4071
    %4082 = vst [vmem:[#allocation4 + $0x3a] sm:$0xff] %v4072
    %4083 = vst [vmem:[#allocation4 + $0x42] sm:$0xff] %v4073
    %4084 = vst [vmem:[#allocation4 + $0x4a] sm:$0x3f] %v4074
    %v4085 = vld [vmem:[#allocation4] sm:$0xff]
    %v4086 = vld [vmem:[#allocation4 + $0x8] sm:$0xff]
    %v4087 = vld [vmem:[#allocation4 + $0x10] sm:$0xff]
    %v4088 = vld [vmem:[#allocation4 + $0x18] sm:$0xff]
    %v4089 = vld [vmem:[#allocation4 + $0x20] sm:$0xff]
    %v4090 = vld [vmem:[#allocation4 + $0x28] sm:$0xff]
    %v4091 = vld [vmem:[#allocation4 + $0x30] sm:$0xff]
    %v4092 = vld [vmem:[#allocation4 + $0x38] sm:$0xff]
    %v4093 = vld [vmem:[#allocation4 + $0x40] sm:$0xff]
    %v4094 = vld [vmem:[#allocation4 + $0x48] sm:$0xff]
    %v4095 = vmax.f32 %v4085, 0.0
    %v4096 = vmax.f32 %v4086, 0.0
    %v4097 = vmax.f32 %v4087, 0.0
    %v4098 = vmax.f32 %v4088, 0.0
    %v4099 = vmax.f32 %v4089, 0.0
    %v4100 = vmax.f32 %v4090, 0.0
    %v4101 = vmax.f32 %v4091, 0.0
    %v4102 = vmax.f32 %v4092, 0.0
    %v4103 = vmax.f32 %v4093, 0.0
    %v4104 = vmax.f32 %v4094, 0.0
    %v4105 = vld [vmem:[%s9] sm:$0xff]
    %v4106 = vld [vmem:[%s9 + $0x8] sm:$0xff]
    %v4107 = vld [vmem:[%s9 + $0x10] sm:$0xff]
    %v4108 = vld [vmem:[%s9 + $0x18] sm:$0xff]
    %v4109 = vld [vmem:[%s9 + $0x20] sm:$0xff]
    %v4110 = vld [vmem:[%s9 + $0x28] sm:$0xff]
    %v4111 = vld [vmem:[%s9 + $0x30] sm:$0xff]
    %v4112 = vld [vmem:[%s9 + $0x38] sm:$0xff]
    %v4113 = vld [vmem:[%s9 + $0x40] sm:$0xff]
    %v4114 = vld [vmem:[%s9 + $0x48] sm:$0xff]
    %v4115 = vld [vmem:[%s9 + $0x50] sm:$0xff]
    %v4116 = vld [vmem:[%s9 + $0x58] sm:$0xff]
    %v4117 = vld [vmem:[%s9 + $0x60] sm:$0xff]
    %v4118 = vld [vmem:[%s9 + $0x68] sm:$0xff]
    %v4119 = vld [vmem:[%s9 + $0x70] sm:$0xff]
    %v4120 = vld [vmem:[%s9 + $0x78] sm:$0xff]
    %v4121 = vld [vmem:[%s10] sm:$0x1]
    %v4123 = vlaneseq
    %v4124 = vshrl.u32 %v4123, 7
    %v4125 = vsub.s32 0, %v4124
    %v4126 = vrot.slane %v4121, %v4125
    %4128 = vmatprep.subr.mxu0 0.0
    %4129 = vmatpush1.msra.mxu0 %v4105
    %4130 = vmatprep.subr.mxu0 0.0
    %4131 = vmatpush1.msra.mxu0 %v4106
    %4132 = vmatprep.subr.mxu0 0.0
    %4133 = vmatpush1.msra.mxu0 %v4107
    %4134 = vmatprep.subr.mxu0 0.0
    %4135 = vmatpush1.msra.mxu0 %v4108
    %4136 = vmatprep.subr.mxu0 0.0
    %4137 = vmatpush1.msra.mxu0 %v4109
    %4138 = vmatprep.subr.mxu0 0.0
    %4139 = vmatpush1.msra.mxu0 %v4110
    %4140 = vmatprep.subr.mxu0 0.0
    %4141 = vmatpush1.msra.mxu0 %v4111
    %4142 = vmatprep.subr.mxu0 0.0
    %4143 = vmatpush1.msra.mxu0 %v4112
    %4144 = vmatprep.subr.mxu0 0.0
    %4145 = vmatpush1.msra.mxu0 %v4113
    %4146 = vmatprep.subr.mxu0 0.0
    %4147 = vmatpush1.msra.mxu0 %v4114
    %4148 = vmatprep.subr.mxu0 0.0
    %4149 = vmatpush1.msra.mxu0 %v4115
    %4150 = vmatprep.subr.mxu0 0.0
    %4151 = vmatpush1.msra.mxu0 %v4116
    %4152 = vmatprep.subr.mxu0 0.0
    %4153 = vmatpush1.msra.mxu0 %v4117
    %4154 = vmatprep.subr.mxu0 0.0
    %4155 = vmatpush1.msra.mxu0 %v4118
    %4156 = vmatprep.subr.mxu0 0.0
    %4157 = vmatpush1.msra.mxu0 %v4119
    %4158 = vmatprep.subr.mxu0 0.0
    %4159 = vmatpush1.msra.mxu0 %v4120
    %4160 = vmatprep.subr.mxu0 0.0
    %4161 = vmatpush1.msra.mxu0 0.0
    %4162 = vmatprep.subr.mxu0 0.0
    %4163 = vmatpush1.msra.mxu0 0.0
    %4164 = vmatprep.subr.mxu0 0.0
    %4165 = vmatpush1.msra.mxu0 0.0
    %4166 = vmatprep.subr.mxu0 0.0
    %4167 = vmatpush1.msra.mxu0 0.0
    %4168 = vmatprep.subr.mxu0 0.0
    %4169 = vmatpush1.msra.mxu0 0.0
    %4170 = vmatprep.subr.mxu0 0.0
    %4171 = vmatpush1.msra.mxu0 0.0
    %4172 = vmatprep.subr.mxu0 0.0
    %4173 = vmatpush1.msra.mxu0 0.0
    %4174 = vmatprep.subr.mxu0 0.0
    %4175 = vmatpush1.msra.mxu0 0.0
    %4176 = vmatprep.subr.mxu0 0.0
    %4177 = vmatpush1.msra.mxu0 0.0
    %4178 = vmatprep.subr.mxu0 0.0
    %4179 = vmatpush1.msra.mxu0 0.0
    %4180 = vmatprep.subr.mxu0 0.0
    %4181 = vmatpush1.msra.mxu0 0.0
    %4182 = vmatprep.subr.mxu0 0.0
    %4183 = vmatpush1.msra.mxu0 0.0
    %4184 = vmatprep.subr.mxu0 0.0
    %4185 = vmatpush1.msra.mxu0 0.0
    %4186 = vmatprep.subr.mxu0 0.0
    %4187 = vmatpush1.msra.mxu0 0.0
    %4188 = vmatprep.subr.mxu0 0.0
    %4189 = vmatpush1.msra.mxu0 0.0
    %4190 = vmatprep.subr.mxu0 0.0
    %4191 = vmatpush1.msra.mxu0 0.0
    %4192 = vmatprep.mubr.f32.mxu0 0.0
    %4193 = vmatmul.mubr.f32.gmra.mrb[0].mxu0 %v4095
    %v4194 = vpop.f32.mrb[0].mxu0
    %v4195 = vadd.f32 %v4126, %v4194
    %v4196 = vpop.f32.mrb[0].mxu0
    %4197 = vmatprep.mubr.f32.mxu0 0.0
    %4198 = vmatmul.mubr.f32.gmra.mrb[0].mxu0 %v4096
    %v4199 = vpop.f32.mrb[0].mxu0
    %v4200 = vadd.f32 %v4126, %v4199
    %v4201 = vpop.f32.mrb[0].mxu0
    %4202 = vmatprep.mubr.f32.mxu0 0.0
    %4203 = vmatmul.mubr.f32.gmra.mrb[0].mxu0 %v4097
    %v4204 = vpop.f32.mrb[0].mxu0
    %v4205 = vadd.f32 %v4126, %v4204
    %v4206 = vpop.f32.mrb[0].mxu0
    %4207 = vmatprep.mubr.f32.mxu0 0.0
    %4208 = vmatmul.mubr.f32.gmra.mrb[0].mxu0 %v4098
    %v4209 = vpop.f32.mrb[0].mxu0
    %v4210 = vadd.f32 %v4126, %v4209
    %v4211 = vpop.f32.mrb[0].mxu0
    %4212 = vmatprep.mubr.f32.mxu0 0.0
    %4213 = vmatmul.mubr.f32.gmra.mrb[0].mxu0 %v4099
    %v4214 = vpop.f32.mrb[0].mxu0
    %v4215 = vadd.f32 %v4126, %v4214
    %v4216 = vpop.f32.mrb[0].mxu0
    %4217 = vmatprep.mubr.f32.mxu0 0.0
    %4218 = vmatmul.mubr.f32.gmra.mrb[0].mxu0 %v4100
    %v4219 = vpop.f32.mrb[0].mxu0
    %v4220 = vadd.f32 %v4126, %v4219
    %v4221 = vpop.f32.mrb[0].mxu0
    %4222 = vmatprep.mubr.f32.mxu0 0.0
    %4223 = vmatmul.mubr.f32.gmra.mrb[0].mxu0 %v4101
    %v4224 = vpop.f32.mrb[0].mxu0
    %v4225 = vadd.f32 %v4126, %v4224
    %v4226 = vpop.f32.mrb[0].mxu0
    %4227 = vmatprep.mubr.f32.mxu0 0.0
    %4228 = vmatmul.mubr.f32.gmra.mrb[0].mxu0 %v4102
    %v4229 = vpop.f32.mrb[0].mxu0
    %v4230 = vadd.f32 %v4126, %v4229
    %v4231 = vpop.f32.mrb[0].mxu0
    %4232 = vmatprep.mubr.f32.mxu0 0.0
    %4233 = vmatmul.mubr.f32.gmra.mrb[0].mxu0 %v4103
    %v4234 = vpop.f32.mrb[0].mxu0
    %v4235 = vadd.f32 %v4126, %v4234
    %v4236 = vpop.f32.mrb[0].mxu0
    %4237 = vmatprep.mubr.f32.mxu0 0.0
    %4238 = vmatmul.mubr.f32.gmra.mrb[0].mxu0 %v4104
    %v4239 = vpop.f32.mrb[0].mxu0
    %v4240 = vadd.f32 %v4126, %v4239
    %v4241 = vpop.f32.mrb[0].mxu0
    %4242 = vdwg.mxu0
    %s4243 = scalar_lea.vmem %s11, 80
    %4244 = vst.msk [vmem:[%s4243] sm:$0xff] %vm2154, %v4195
    %4245 = vst.msk [vmem:[%s4243 + $0x8] sm:$0xff] %vm2154, %v4200
    %4246 = vst.msk [vmem:[%s4243 + $0x10] sm:$0xff] %vm2154, %v4205
    %4247 = vst.msk [vmem:[%s4243 + $0x18] sm:$0xff] %vm2154, %v4210
    %4248 = vst.msk [vmem:[%s4243 + $0x20] sm:$0xff] %vm2154, %v4215
    %4249 = vst.msk [vmem:[%s4243 + $0x28] sm:$0xff] %vm2154, %v4220
    %4250 = vst.msk [vmem:[%s4243 + $0x30] sm:$0xff] %vm2154, %v4225
    %4251 = vst.msk [vmem:[%s4243 + $0x38] sm:$0xff] %vm2154, %v4230
    %4252 = vst.msk [vmem:[%s4243 + $0x40] sm:$0xff] %vm2154, %v4235
    %4253 = vst.msk [vmem:[%s4243 + $0x48] sm:$0xff] %vm2154, %v4240
    // Predicated region
    $region50: #{deconvo_forward.1} parent=1 // pred_check
      _
    $region51: #{deconvo_forward.1} parent=1 // pred_check_branch
      %4255 = sbr.rel (0) target = $region53
    $region52: #{deconvo_forward.1} parent=1 // pred_region
      _
    $region53: #{deconvo_forward.1} parent=1 // pred_fallthru
      _
    // Predicated region
    $region54: #{deconvo_forward.1} parent=1 // pred_check
      _
    $region55: #{deconvo_forward.1} parent=1 // pred_check_branch
      %4257 = sbr.rel (0) target = $region57
    $region56: #{deconvo_forward.1} parent=1 // pred_region
      _
    $region57: #{deconvo_forward.1} parent=1 // pred_fallthru
      _
    %4258 = vsyncpa [#allocation6], 1

</llo_original>
